<compile_context>
chip_gen: v6e
topology: v6e:2x2x1
jax: 0.10.0
libtpu: 0.0.40
codegen_flags: <defaults>
</compile_context>

<pallas_src>
import jax
import jax.numpy as jnp
from jax.experimental import pallas as pl
from jax.experimental.pallas import tpu as pltpu

# TODO(synk): the real EfficientNet/MobileNet/ViT conv/attention trunks are
# torch.hub pretrained networks and are not translated; only the ensemble
# head/sum/fc compute (plus a synthetic GAP+Linear+ReLU trunk stand-in) is
# implemented.

EFFICIENTNET_FEATS = 1280   # nvidia_efficientnet_b0 classifier.fc.in_features
MOBILENET_FEATS = 1280      # mobilenet_v2 classifier[1].in_features
VIT_FEATS = 768             # deit_base_patch16_224 head.in_features
ENSEMBLE_DIM = 128          # each replaced head projects to 128
LANE = 128
SUBLANE = 8


def _ensemble_kernel(x_ref, tw_ref, tb_ref, hw_ref, hb_ref,
                     wfc_ref, bfc_ref, out_ref):
    """Fused: GAP(x) -> relu(@Tw + Tb) -> @Hw + hb -> @Wfc + bfc.

    Weights arrive as bf16 and are upcast to f32 in VMEM; all matmuls request
    f32 accumulation, biases are f32.
    """
    # Global average pool over the flattened spatial axis (lane reduction).
    pooled = jnp.mean(x_ref[...], axis=-1)                        # [Bp, Cp]
    # All branch trunk stand-ins in one matmul (trunk weights concatenated).
    f = jnp.maximum(
        jnp.dot(pooled, tw_ref[...].astype(jnp.float32),
                preferred_element_type=jnp.float32) + tb_ref[...],
        0.0)                                                       # [Bp, Ftot]
    # All replaced heads fused into one K = sum(F_i) matmul; biases pre-summed.
    h = jnp.dot(f, hw_ref[...].astype(jnp.float32),
                preferred_element_type=jnp.float32) + hb_ref[...]  # [Bp, 128]
    # Final fc; output columns padded to a multiple of 128 lanes.
    out_ref[...] = jnp.dot(h, wfc_ref[...].astype(jnp.float32),
                           preferred_element_type=jnp.float32) + bfc_ref[...]


def prepare_params(params, *, use_efficient=True, use_mobile=True,
                   use_vit=True):
    """One-time host-side weight prep: concat/stack/pad/cast to bf16."""
    if not (use_efficient or use_mobile or use_vit):
        # Mirrors the PyTorch module, whose forward crashes with out=None.
        raise ValueError("At least one branch must be enabled.")

    names = []
    if use_efficient:
        names.append("efficientnet")
    if use_mobile:
        names.append("mobilenet")
    if use_vit:
        names.append("vit")

    tw_list, tb_list, hw_list, hb_sum = [], [], [], None
    for name in names:
        tw, tb, hw, hb = params[name]
        tw_list.append(tw)
        tb_list.append(tb)
        hw_list.append(hw)
        hb_sum = hb if hb_sum is None else hb_sum + hb

    in_channels = tw_list[0].shape[0]
    c_pad = -(-in_channels // SUBLANE) * SUBLANE   # sublane-aligned trunk K

    tw_cat = jnp.concatenate(tw_list, axis=1)                 # [C, Ftot]
    tw_cat = jnp.pad(tw_cat, ((0, c_pad - in_channels), (0, 0)))
    tb_cat = jnp.concatenate(tb_list, axis=0)[None, :]        # [1, Ftot]
    hw_stack = jnp.concatenate(hw_list, axis=0)               # [Ftot, 128]

    w_fc, b_fc = params["fc"]
    num_classes = w_fc.shape[1]
    n_pad = -(-num_classes // LANE) * LANE                    # lane-dense out
    w_fc_pad = jnp.pad(w_fc, ((0, 0), (0, n_pad - num_classes)))
    b_fc_pad = jnp.pad(b_fc, (0, n_pad - num_classes))[None, :]

    return dict(
        tw=tw_cat.astype(jnp.bfloat16),
        tb=tb_cat.astype(jnp.float32),
        hw=hw_stack.astype(jnp.bfloat16),
        hb=hb_sum.astype(jnp.float32)[None, :],
        wfc=w_fc_pad.astype(jnp.bfloat16),
        bfc=b_fc_pad.astype(jnp.float32),
        num_classes=num_classes,
        in_channels=in_channels,
    )


def early_ensemble_forward(x, prep):
    """One fused Pallas kernel: GAP + trunk stand-ins + heads + sum + fc."""
    B, C, H, W = x.shape
    hw_len = H * W
    c_pad = prep["tw"].shape[0]
    b_pad = -(-B // SUBLANE) * SUBLANE
    n_pad = prep["wfc"].shape[1]
    f_tot = prep["hw"].shape[0]

    # Free row-major reshape + tiny zero-pad so the kernel sees sublane/lane
    # aligned dims; padded rows/channels multiply zero weights, then sliced.
    x3 = x.astype(jnp.float32).reshape(B, C, hw_len)
    x3 = jnp.pad(x3, ((0, b_pad - B), (0, c_pad - C), (0, 0)))

    operands = [x3, prep["tw"], prep["tb"], prep["hw"], prep["hb"],
                prep["wfc"], prep["bfc"]]

    flops = (2 * b_pad * (c_pad * f_tot + f_tot * ENSEMBLE_DIM
                          + ENSEMBLE_DIM * n_pad)
             + b_pad * c_pad * hw_len)                     # matmuls + GAP
    bytes_accessed = sum(int(a.size) * a.dtype.itemsize for a in operands)
    bytes_accessed += b_pad * n_pad * 4

    out = pl.pallas_call(
        _ensemble_kernel,
        out_shape=jax.ShapeDtypeStruct((b_pad, n_pad), jnp.float32),
        in_specs=[pl.BlockSpec(memory_space=pltpu.MemorySpace.VMEM)]
        * len(operands),
        out_specs=pl.BlockSpec(memory_space=pltpu.MemorySpace.VMEM),
        cost_estimate=pl.CostEstimate(flops=flops, transcendentals=0,
                                      bytes_accessed=bytes_accessed),
        compiler_params=pltpu.CompilerParams(
            vmem_limit_bytes=64 * 1024 * 1024),
    )(*operands)
    return out[:B, :prep["num_classes"]]


def init_params(key, in_channels, num_classes):
    """Deterministic synthetic parameters with the shapes the module implies."""
    def _linear(key, fan_in, fan_out):
        kw, kb = jax.random.split(key)
        scale = 1.0 / jnp.sqrt(jnp.float32(fan_in))
        w = jax.random.uniform(kw, (fan_in, fan_out), jnp.float32, -scale, scale)
        b = jax.random.uniform(kb, (fan_out,), jnp.float32, -scale, scale)
        return w, b

    keys = jax.random.split(key, 7)
    params = {}
    tw, tb = _linear(keys[0], in_channels, EFFICIENTNET_FEATS)
    hw, hb = _linear(keys[1], EFFICIENTNET_FEATS, ENSEMBLE_DIM)
    params["efficientnet"] = (tw, tb, hw, hb)

    tw, tb = _linear(keys[2], in_channels, MOBILENET_FEATS)
    hw, hb = _linear(keys[3], MOBILENET_FEATS, ENSEMBLE_DIM)
    params["mobilenet"] = (tw, tb, hw, hb)

    tw, tb = _linear(keys[4], in_channels, VIT_FEATS)
    hw, hb = _linear(keys[5], VIT_FEATS, ENSEMBLE_DIM)
    params["vit"] = (tw, tb, hw, hb)

    params["fc"] = _linear(keys[6], ENSEMBLE_DIM, num_classes)
    return params


def reference_forward(x, params, *, use_efficient=True, use_mobile=True,
                      use_vit=True):
    """Plain-JAX reference of the same computation (bf16-quantized weights,
    f32 math) for correctness check of the fused kernel."""
    q = lambda w: w.astype(jnp.bfloat16).astype(jnp.float32)
    pooled = jnp.mean(x.astype(jnp.float32), axis=(2, 3))
    out = None
    for flag, name in [(use_efficient, "efficientnet"),
                       (use_mobile, "mobilenet"),
                       (use_vit, "vit")]:
        if not flag:
            continue
        trunk_w, trunk_b, head_w, head_b = params[name]
        f = jax.nn.relu(pooled @ q(trunk_w) + trunk_b)
        o = f @ q(head_w) + head_b
        out = o if out is None else out + o
    w_fc, b_fc = params["fc"]
    return out @ q(w_fc) + b_fc


if __name__ == "__main__":
    key = jax.random.PRNGKey(0)
    k_x, k_p = jax.random.split(key)

    batch, channels, spatial = 2, 3, 32
    num_classes = 10

    x = jax.random.normal(k_x, (batch, channels, spatial, spatial), jnp.float32)
    params = init_params(k_p, channels, num_classes)

    prep = prepare_params(params, use_efficient=True, use_mobile=True,
                          use_vit=True)
    out = early_ensemble_forward(x, prep)
    out = jax.block_until_ready(out)

    ref = reference_forward(x, params, use_efficient=True, use_mobile=True,
                            use_vit=True)
    assert out.shape == (batch, num_classes)
    assert jnp.allclose(out, ref, atol=1e-4, rtol=1e-4)

    print("KERNEL_OK")
</pallas_src>

<mosaic_0001>
module attributes {stable_mosaic.version = 11 : i64} {
  func.func @_ensemble_kernel(%arg0: memref<8x8x1024xf32, #tpu.memory_space<vmem>>, %arg1: memref<8x3328xbf16, #tpu.memory_space<vmem>>, %arg2: memref<1x3328xf32, #tpu.memory_space<vmem>>, %arg3: memref<3328x128xbf16, #tpu.memory_space<vmem>>, %arg4: memref<1x128xf32, #tpu.memory_space<vmem>>, %arg5: memref<128x128xbf16, #tpu.memory_space<vmem>>, %arg6: memref<1x128xf32, #tpu.memory_space<vmem>>, %arg7: memref<8x128xf32, #tpu.memory_space<vmem>>) attributes {dimension_semantics = [], scalar_prefetch = 0 : i64, scratch_operands = 0 : i64, tpu.core_type = #tpu.core_type<tc>} {
    %c0 = arith.constant 0 : index
    %c0_0 = arith.constant 0 : index
    %c0_1 = arith.constant 0 : index
    %0 = vector.load %arg0[%c0, %c0_0, %c0_1] : memref<8x8x1024xf32, #tpu.memory_space<vmem>>, vector<8x8x1024xf32>
    %cst = arith.constant dense<0.000000e+00> : vector<8x8xf32>
    %1 = vector.multi_reduction <add>, %0, %cst [2] : vector<8x8x1024xf32> to vector<8x8xf32>
    %cst_2 = arith.constant 1.024000e+03 : f32
    %2 = vector.broadcast %cst_2 : f32 to vector<8x8xf32>
    %3 = arith.divf %1, %2 : vector<8x8xf32>
    %c0_3 = arith.constant 0 : index
    %c0_4 = arith.constant 0 : index
    %4 = vector.load %arg1[%c0_3, %c0_4] : memref<8x3328xbf16, #tpu.memory_space<vmem>>, vector<8x3328xbf16>
    %5 = arith.extf %4 : vector<8x3328xbf16> to vector<8x3328xf32>
    %cst_5 = arith.constant dense<0.000000e+00> : vector<8x3328xf32>
    %6 = tpu.matmul %3, %5, %cst_5 {dimension_numbers = #tpu.dot_dimension_numbers<[1], [0], [0], [1], [0, 0, 1, 1], [], []>} : vector<8x8xf32>, vector<8x3328xf32>, vector<8x3328xf32> -> vector<8x3328xf32>
    %c0_6 = arith.constant 0 : index
    %c0_7 = arith.constant 0 : index
    %7 = vector.load %arg2[%c0_6, %c0_7] : memref<1x3328xf32, #tpu.memory_space<vmem>>, vector<1x3328xf32>
    %8 = vector.broadcast %7 : vector<1x3328xf32> to vector<8x3328xf32>
    %9 = arith.addf %6, %8 : vector<8x3328xf32>
    %cst_8 = arith.constant 0.000000e+00 : f32
    %10 = vector.broadcast %cst_8 : f32 to vector<8x3328xf32>
    %11 = arith.maximumf %9, %10 : vector<8x3328xf32>
    %c0_9 = arith.constant 0 : index
    %c0_10 = arith.constant 0 : index
    %12 = vector.load %arg3[%c0_9, %c0_10] : memref<3328x128xbf16, #tpu.memory_space<vmem>>, vector<3328x128xbf16>
    %13 = arith.extf %12 : vector<3328x128xbf16> to vector<3328x128xf32>
    %cst_11 = arith.constant dense<0.000000e+00> : vector<8x128xf32>
    %14 = tpu.matmul %11, %13, %cst_11 {dimension_numbers = #tpu.dot_dimension_numbers<[1], [0], [0], [1], [0, 0, 1, 1], [], []>} : vector<8x3328xf32>, vector<3328x128xf32>, vector<8x128xf32> -> vector<8x128xf32>
    %c0_12 = arith.constant 0 : index
    %c0_13 = arith.constant 0 : index
    %15 = vector.load %arg4[%c0_12, %c0_13] : memref<1x128xf32, #tpu.memory_space<vmem>>, vector<1x128xf32>
    %16 = vector.broadcast %15 : vector<1x128xf32> to vector<8x128xf32>
    %17 = arith.addf %14, %16 : vector<8x128xf32>
    %c0_14 = arith.constant 0 : index
    %c0_15 = arith.constant 0 : index
    %18 = vector.load %arg5[%c0_14, %c0_15] : memref<128x128xbf16, #tpu.memory_space<vmem>>, vector<128x128xbf16>
    %19 = arith.extf %18 : vector<128x128xbf16> to vector<128x128xf32>
    %cst_16 = arith.constant dense<0.000000e+00> : vector<8x128xf32>
    %20 = tpu.matmul %17, %19, %cst_16 {dimension_numbers = #tpu.dot_dimension_numbers<[1], [0], [0], [1], [0, 0, 1, 1], [], []>} : vector<8x128xf32>, vector<128x128xf32>, vector<8x128xf32> -> vector<8x128xf32>
    %c0_17 = arith.constant 0 : index
    %c0_18 = arith.constant 0 : index
    %21 = vector.load %arg6[%c0_17, %c0_18] : memref<1x128xf32, #tpu.memory_space<vmem>>, vector<1x128xf32>
    %22 = vector.broadcast %21 : vector<1x128xf32> to vector<8x128xf32>
    %23 = arith.addf %20, %22 : vector<8x128xf32>
    %c0_19 = arith.constant 0 : index
    %c0_20 = arith.constant 0 : index
    %24 = vector.load %arg7[%c0_19, %c0_20] : memref<8x128xf32, #tpu.memory_space<vmem>>, vector<8x128xf32>
    tpu.vector_store %arg7[%c0_19, %c0_20], %23 {strides = array<i32>} : memref<8x128xf32, #tpu.memory_space<vmem>>, vector<8x128xf32>,
    return
  }
}

</mosaic_0001>

<llo_original>
// kernel: tpu_custom_call.1
$region0: #{tpu_custom_call.1}
  #allocation0 [shape = 'u32[]', space=smem, size = 0x4, offset = 0x4, fixed_abs, tag = 'smem constant byte address 0x4 - core index']
  #allocation1 [shape = 'u32[144,128]{1,0:T(1,128)}', space=vmem, size = 0x12000, scoped, tag = 'internal scratch']
  %s0 = inlined_call_operand.hbm [shape: f32[8,8,1024], index: 0, kind: input, shape index: {}]
  %s1 = inlined_call_operand.hbm [shape: bf16[8,3328], index: 1, kind: input, shape index: {}]
  %s2 = inlined_call_operand.hbm [shape: f32[1,3328], index: 2, kind: input, shape index: {}]
  %s3 = inlined_call_operand.hbm [shape: bf16[3328,128], index: 3, kind: input, shape index: {}]
  %s4 = inlined_call_operand.vmem [shape: f32[1,128], index: 4, kind: input, shape index: {}]
  %s5 = inlined_call_operand.hbm [shape: bf16[128,128], index: 5, kind: input, shape index: {}]
  %s6 = inlined_call_operand.vmem [shape: f32[1,128], index: 6, kind: input, shape index: {}]
  %s7 = inlined_call_operand.hbm [shape: f32[8,128], index: 7, kind: output, shape index: {}]
  %s8 = sld [smem:[#allocation0]]
  $region58: #{tpu_custom_call.1} parent=0
    _
  %s10 = ssub.s32 1, %s8
  %s11 = scalar_select 0, %s10, %s8
  $region1: #{tpu_custom_call.1} parent=0
    #allocation2 [shape = 'u8[262144]{0}', space=vmem, size = 0x40000, scoped, tag = 'input window, operand 0, single buffered']
    #allocation3 [shape = 's32[1]{0}', space=sflag, size = 0x4, scoped, tag = 'scoped memory for tpu_custom_call.1']
    #allocation4 [shape = 's32[1]{0}', space=sflag, size = 0x4, scoped, tag = 'scoped memory for tpu_custom_call.1']
    #allocation5 [shape = 'u8[53248]{0}', space=vmem, size = 0xd000, scoped, tag = 'input window, operand 1, single buffered']
    #allocation6 [shape = 's32[1]{0}', space=sflag, size = 0x4, scoped, tag = 'scoped memory for tpu_custom_call.1']
    #allocation7 [shape = 'u8[13312]{0}', space=vmem, size = 0x3400, scoped, tag = 'input window, operand 2, single buffered']
    #allocation8 [shape = 'u8[851968]{0}', space=vmem, size = 0xd0000, scoped, tag = 'input window, operand 3, single buffered']
    #allocation9 [shape = 's32[1]{0}', space=sflag, size = 0x4, scoped, tag = 'scoped memory for tpu_custom_call.1']
    #allocation10 [shape = 'u8[32768]{0}', space=vmem, size = 0x8000, scoped, tag = 'input window, operand 5, single buffered']
    #allocation11 [shape = 'u8[4096]{0}', space=vmem, size = 0x1000, scoped, tag = 'output window, operand 0, single buffered']
    %12 = vsyncpa [#allocation3], 0
    %13 = vsyncpa [#allocation6], 0
    %14 = vsyncpa [#allocation9], 0
    %15 = vsyncpa [#allocation4], 0
    // Predicated region
    $region2: #{tpu_custom_call.1} parent=1 // pred_check
      _
    $region3: #{tpu_custom_call.1} parent=1 // pred_check_branch
      %17 = sbr.rel (0) target = $region5
    $region4: #{tpu_custom_call.1} parent=1 // pred_region
      %s19 = ssub.s32 8192, 8192
      %20 = vsyncadd [#allocation3], %s19
      %s21 = sshll.u32 [#allocation2], 4
      %s22 = int_to_ptr.vmem [resolvable:$true] %s21
      %27 = dma.hbm_to_vmem [thread:$0]  %s0, 8192, %s22, [#allocation3], 1024, 1024, 64
    $region5: #{tpu_custom_call.1} parent=1 // pred_fallthru
      _
    // Predicated region
    $region6: #{tpu_custom_call.1} parent=1 // pred_check
      _
    $region7: #{tpu_custom_call.1} parent=1 // pred_check_branch
      %29 = sbr.rel (0) target = $region9
    $region8: #{tpu_custom_call.1} parent=1 // pred_region
      %s31 = ssub.s32 1664, 1664
      %32 = vsyncadd [#allocation6], %s31
      %s34 = sshll.u32 [#allocation5], 4
      %s35 = int_to_ptr.vmem [resolvable:$true] %s34
      %37 = dma.hbm_to_vmem [thread:$0]  %s1, 1664, %s35, [#allocation6]
    $region9: #{tpu_custom_call.1} parent=1 // pred_fallthru
      _
    // Predicated region
    $region10: #{tpu_custom_call.1} parent=1 // pred_check
      _
    $region11: #{tpu_custom_call.1} parent=1 // pred_check_branch
      %39 = sbr.rel (0) target = $region13
    $region12: #{tpu_custom_call.1} parent=1 // pred_region
      %s41 = ssub.s32 416, 416
      %42 = vsyncadd [#allocation6], %s41
      %s44 = sshll.u32 [#allocation7], 4
      %s45 = int_to_ptr.vmem [resolvable:$true] %s44
      %47 = dma.hbm_to_vmem [thread:$0]  %s2, 416, %s45, [#allocation6]
    $region13: #{tpu_custom_call.1} parent=1 // pred_fallthru
      _
    // Predicated region
    $region14: #{tpu_custom_call.1} parent=1 // pred_check
      _
    $region15: #{tpu_custom_call.1} parent=1 // pred_check_branch
      %49 = sbr.rel (0) target = $region17
    $region16: #{tpu_custom_call.1} parent=1 // pred_region
      %s51 = ssub.s32 26624, 26624
      %52 = vsyncadd [#allocation9], %s51
      %s53 = sshll.u32 [#allocation8], 4
      %s54 = int_to_ptr.vmem [resolvable:$true] %s53
      %59 = dma.hbm_to_vmem [thread:$0]  %s3, 26624, %s54, [#allocation9], 64, 64, 4
    $region17: #{tpu_custom_call.1} parent=1 // pred_fallthru
      _
    // Predicated region
    $region18: #{tpu_custom_call.1} parent=1 // pred_check
      _
    $region19: #{tpu_custom_call.1} parent=1 // pred_check_branch
      %61 = sbr.rel (0) target = $region21
    $region20: #{tpu_custom_call.1} parent=1 // pred_region
      _
    $region21: #{tpu_custom_call.1} parent=1 // pred_fallthru
      _
    // Predicated region
    $region22: #{tpu_custom_call.1} parent=1 // pred_check
      _
    $region23: #{tpu_custom_call.1} parent=1 // pred_check_branch
      %63 = sbr.rel (0) target = $region25
    $region24: #{tpu_custom_call.1} parent=1 // pred_region
      %s65 = ssub.s32 1024, 1024
      %66 = vsyncadd [#allocation9], %s65
      %s67 = sshll.u32 [#allocation10], 4
      %s68 = int_to_ptr.vmem [resolvable:$true] %s67
      %73 = dma.hbm_to_vmem [thread:$0]  %s5, 1024, %s68, [#allocation9], 64, 64, 4
    $region25: #{tpu_custom_call.1} parent=1 // pred_fallthru
      _
    // Predicated region
    $region26: #{tpu_custom_call.1} parent=1 // pred_check
      _
    $region27: #{tpu_custom_call.1} parent=1 // pred_check_branch
      %75 = sbr.rel (0) target = $region29
    $region28: #{tpu_custom_call.1} parent=1 // pred_region
      _
    $region29: #{tpu_custom_call.1} parent=1 // pred_fallthru
      _
    // Predicated region
    $region30: #{tpu_custom_call.1} parent=1 // pred_check
      _
    $region31: #{tpu_custom_call.1} parent=1 // pred_check_branch
      %77 = sbr.rel (0) target = $region33
    $region32: #{tpu_custom_call.1} parent=1 // pred_region
      %78 = dma.done [#allocation3], 8192
    $region33: #{tpu_custom_call.1} parent=1 // pred_fallthru
      _
    // Predicated region
    $region34: #{tpu_custom_call.1} parent=1 // pred_check
      _
    $region35: #{tpu_custom_call.1} parent=1 // pred_check_branch
      %80 = sbr.rel (0) target = $region37
    $region36: #{tpu_custom_call.1} parent=1 // pred_region
      %81 = dma.done [#allocation6], 1664
    $region37: #{tpu_custom_call.1} parent=1 // pred_fallthru
      _
    // Predicated region
    $region38: #{tpu_custom_call.1} parent=1 // pred_check
      _
    $region39: #{tpu_custom_call.1} parent=1 // pred_check_branch
      %83 = sbr.rel (0) target = $region41
    $region40: #{tpu_custom_call.1} parent=1 // pred_region
      %84 = dma.done [#allocation6], 416
    $region41: #{tpu_custom_call.1} parent=1 // pred_fallthru
      _
    // Predicated region
    $region42: #{tpu_custom_call.1} parent=1 // pred_check
      _
    $region43: #{tpu_custom_call.1} parent=1 // pred_check_branch
      %86 = sbr.rel (0) target = $region45
    $region44: #{tpu_custom_call.1} parent=1 // pred_region
      %87 = dma.done [#allocation9], 26624
    $region45: #{tpu_custom_call.1} parent=1 // pred_fallthru
      _
    // Predicated region
    $region46: #{tpu_custom_call.1} parent=1 // pred_check
      _
    $region47: #{tpu_custom_call.1} parent=1 // pred_check_branch
      %89 = sbr.rel (0) target = $region49
    $region48: #{tpu_custom_call.1} parent=1 // pred_region
      %90 = dma.done [#allocation9], 1024
    $region49: #{tpu_custom_call.1} parent=1 // pred_fallthru
      _
    %v91 = vld [vmem:[#allocation2] sm:$0xff]
    %v92 = vld [vmem:[#allocation2 + $0x8] sm:$0xff]
    %v93 = vld [vmem:[#allocation2 + $0x10] sm:$0xff]
    %v94 = vld [vmem:[#allocation2 + $0x18] sm:$0xff]
    %v95 = vld [vmem:[#allocation2 + $0x20] sm:$0xff]
    %v96 = vld [vmem:[#allocation2 + $0x28] sm:$0xff]
    %v97 = vld [vmem:[#allocation2 + $0x30] sm:$0xff]
    %v98 = vld [vmem:[#allocation2 + $0x38] sm:$0xff]
    %v99 = vld [vmem:[#allocation2 + $0x40] sm:$0xff]
    %v100 = vld [vmem:[#allocation2 + $0x48] sm:$0xff]
    %v101 = vld [vmem:[#allocation2 + $0x50] sm:$0xff]
    %v102 = vld [vmem:[#allocation2 + $0x58] sm:$0xff]
    %v103 = vld [vmem:[#allocation2 + $0x60] sm:$0xff]
    %v104 = vld [vmem:[#allocation2 + $0x68] sm:$0xff]
    %v105 = vld [vmem:[#allocation2 + $0x70] sm:$0xff]
    %v106 = vld [vmem:[#allocation2 + $0x78] sm:$0xff]
    %v107 = vld [vmem:[#allocation2 + $0x80] sm:$0xff]
    %v108 = vld [vmem:[#allocation2 + $0x88] sm:$0xff]
    %v109 = vld [vmem:[#allocation2 + $0x90] sm:$0xff]
    %v110 = vld [vmem:[#allocation2 + $0x98] sm:$0xff]
    %v111 = vld [vmem:[#allocation2 + $0xa0] sm:$0xff]
    %v112 = vld [vmem:[#allocation2 + $0xa8] sm:$0xff]
    %v113 = vld [vmem:[#allocation2 + $0xb0] sm:$0xff]
    %v114 = vld [vmem:[#allocation2 + $0xb8] sm:$0xff]
    %v115 = vld [vmem:[#allocation2 + $0xc0] sm:$0xff]
    %v116 = vld [vmem:[#allocation2 + $0xc8] sm:$0xff]
    %v117 = vld [vmem:[#allocation2 + $0xd0] sm:$0xff]
    %v118 = vld [vmem:[#allocation2 + $0xd8] sm:$0xff]
    %v119 = vld [vmem:[#allocation2 + $0xe0] sm:$0xff]
    %v120 = vld [vmem:[#allocation2 + $0xe8] sm:$0xff]
    %v121 = vld [vmem:[#allocation2 + $0xf0] sm:$0xff]
    %v122 = vld [vmem:[#allocation2 + $0xf8] sm:$0xff]
    %v123 = vld [vmem:[#allocation2 + $0x100] sm:$0xff]
    %v124 = vld [vmem:[#allocation2 + $0x108] sm:$0xff]
    %v125 = vld [vmem:[#allocation2 + $0x110] sm:$0xff]
    %v126 = vld [vmem:[#allocation2 + $0x118] sm:$0xff]
    %v127 = vld [vmem:[#allocation2 + $0x120] sm:$0xff]
    %v128 = vld [vmem:[#allocation2 + $0x128] sm:$0xff]
    %v129 = vld [vmem:[#allocation2 + $0x130] sm:$0xff]
    %v130 = vld [vmem:[#allocation2 + $0x138] sm:$0xff]
    %v131 = vld [vmem:[#allocation2 + $0x140] sm:$0xff]
    %v132 = vld [vmem:[#allocation2 + $0x148] sm:$0xff]
    %v133 = vld [vmem:[#allocation2 + $0x150] sm:$0xff]
    %v134 = vld [vmem:[#allocation2 + $0x158] sm:$0xff]
    %v135 = vld [vmem:[#allocation2 + $0x160] sm:$0xff]
    %v136 = vld [vmem:[#allocation2 + $0x168] sm:$0xff]
    %v137 = vld [vmem:[#allocation2 + $0x170] sm:$0xff]
    %v138 = vld [vmem:[#allocation2 + $0x178] sm:$0xff]
    %v139 = vld [vmem:[#allocation2 + $0x180] sm:$0xff]
    %v140 = vld [vmem:[#allocation2 + $0x188] sm:$0xff]
    %v141 = vld [vmem:[#allocation2 + $0x190] sm:$0xff]
    %v142 = vld [vmem:[#allocation2 + $0x198] sm:$0xff]
    %v143 = vld [vmem:[#allocation2 + $0x1a0] sm:$0xff]
    %v144 = vld [vmem:[#allocation2 + $0x1a8] sm:$0xff]
    %v145 = vld [vmem:[#allocation2 + $0x1b0] sm:$0xff]
    %v146 = vld [vmem:[#allocation2 + $0x1b8] sm:$0xff]
    %v147 = vld [vmem:[#allocation2 + $0x1c0] sm:$0xff]
    %v148 = vld [vmem:[#allocation2 + $0x1c8] sm:$0xff]
    %v149 = vld [vmem:[#allocation2 + $0x1d0] sm:$0xff]
    %v150 = vld [vmem:[#allocation2 + $0x1d8] sm:$0xff]
    %v151 = vld [vmem:[#allocation2 + $0x1e0] sm:$0xff]
    %v152 = vld [vmem:[#allocation2 + $0x1e8] sm:$0xff]
    %v153 = vld [vmem:[#allocation2 + $0x1f0] sm:$0xff]
    %v154 = vld [vmem:[#allocation2 + $0x1f8] sm:$0xff]
    %v155 = vadd.f32 %v91, %v92
    %v156 = vadd.f32 %v155, %v93
    %v157 = vadd.f32 %v156, %v94
    %v158 = vadd.f32 %v157, %v95
    %v159 = vadd.f32 %v158, %v96
    %v160 = vadd.f32 %v159, %v97
    %v161 = vadd.f32 %v160, %v98
    %162 = vadd.xlane.f32.xlu0 %v161
    %v163 = vpop.xlane.xlu0 %162
    %v164 = vadd.f32 %v99, %v100
    %v165 = vadd.f32 %v164, %v101
    %v166 = vadd.f32 %v165, %v102
    %v167 = vadd.f32 %v166, %v103
    %v168 = vadd.f32 %v167, %v104
    %v169 = vadd.f32 %v168, %v105
    %v170 = vadd.f32 %v169, %v106
    %171 = vadd.xlane.f32.xlu0 %v170
    %v172 = vpop.xlane.xlu0 %171
    %v173 = vadd.f32 %v107, %v108
    %v174 = vadd.f32 %v173, %v109
    %v175 = vadd.f32 %v174, %v110
    %v176 = vadd.f32 %v175, %v111
    %v177 = vadd.f32 %v176, %v112
    %v178 = vadd.f32 %v177, %v113
    %v179 = vadd.f32 %v178, %v114
    %180 = vadd.xlane.f32.xlu0 %v179
    %v181 = vpop.xlane.xlu0 %180
    %v182 = vadd.f32 %v115, %v116
    %v183 = vadd.f32 %v182, %v117
    %v184 = vadd.f32 %v183, %v118
    %v185 = vadd.f32 %v184, %v119
    %v186 = vadd.f32 %v185, %v120
    %v187 = vadd.f32 %v186, %v121
    %v188 = vadd.f32 %v187, %v122
    %189 = vadd.xlane.f32.xlu0 %v188
    %v190 = vpop.xlane.xlu0 %189
    %v191 = vadd.f32 %v123, %v124
    %v192 = vadd.f32 %v191, %v125
    %v193 = vadd.f32 %v192, %v126
    %v194 = vadd.f32 %v193, %v127
    %v195 = vadd.f32 %v194, %v128
    %v196 = vadd.f32 %v195, %v129
    %v197 = vadd.f32 %v196, %v130
    %198 = vadd.xlane.f32.xlu0 %v197
    %v199 = vpop.xlane.xlu0 %198
    %v200 = vadd.f32 %v131, %v132
    %v201 = vadd.f32 %v200, %v133
    %v202 = vadd.f32 %v201, %v134
    %v203 = vadd.f32 %v202, %v135
    %v204 = vadd.f32 %v203, %v136
    %v205 = vadd.f32 %v204, %v137
    %v206 = vadd.f32 %v205, %v138
    %207 = vadd.xlane.f32.xlu0 %v206
    %v208 = vpop.xlane.xlu0 %207
    %v209 = vadd.f32 %v139, %v140
    %v210 = vadd.f32 %v209, %v141
    %v211 = vadd.f32 %v210, %v142
    %v212 = vadd.f32 %v211, %v143
    %v213 = vadd.f32 %v212, %v144
    %v214 = vadd.f32 %v213, %v145
    %v215 = vadd.f32 %v214, %v146
    %216 = vadd.xlane.f32.xlu0 %v215
    %v217 = vpop.xlane.xlu0 %216
    %v218 = vadd.f32 %v147, %v148
    %v219 = vadd.f32 %v218, %v149
    %v220 = vadd.f32 %v219, %v150
    %v221 = vadd.f32 %v220, %v151
    %v222 = vadd.f32 %v221, %v152
    %v223 = vadd.f32 %v222, %v153
    %v224 = vadd.f32 %v223, %v154
    %225 = vadd.xlane.f32.xlu0 %v224
    %v226 = vpop.xlane.xlu0 %225
    %v227 = vrcp.pop 1024.0
    %v228 = vmul.f32 %v163, %v227
    %v229 = vmul.f32 %v172, %v227
    %v230 = vmul.f32 %v181, %v227
    %v231 = vmul.f32 %v190, %v227
    %v232 = vmul.f32 %v199, %v227
    %v233 = vmul.f32 %v208, %v227
    %v234 = vmul.f32 %v217, %v227
    %v235 = vmul.f32 %v226, %v227
    %v236 = vld [vmem:[#allocation5] sm:$0xff]
    %v237 = vld [vmem:[#allocation5 + $0x8] sm:$0xff]
    %v238 = vld [vmem:[#allocation5 + $0x10] sm:$0xff]
    %v239 = vld [vmem:[#allocation5 + $0x18] sm:$0xff]
    %v240 = vld [vmem:[#allocation5 + $0x20] sm:$0xff]
    %v241 = vld [vmem:[#allocation5 + $0x28] sm:$0xff]
    %v242 = vld [vmem:[#allocation5 + $0x30] sm:$0xff]
    %v243 = vld [vmem:[#allocation5 + $0x38] sm:$0xff]
    %v244 = vld [vmem:[#allocation5 + $0x40] sm:$0xff]
    %v245 = vld [vmem:[#allocation5 + $0x48] sm:$0xff]
    %v246 = vld [vmem:[#allocation5 + $0x50] sm:$0xff]
    %v247 = vld [vmem:[#allocation5 + $0x58] sm:$0xff]
    %v248 = vld [vmem:[#allocation5 + $0x60] sm:$0xff]
    %v249 = vunpack.c.l.bf16 %v236
    %v250 = vunpack.c.h.bf16 %v236
    %v251 = vunpack.c.l.bf16 %v237
    %v252 = vunpack.c.h.bf16 %v237
    %v253 = vunpack.c.l.bf16 %v238
    %v254 = vunpack.c.h.bf16 %v238
    %v255 = vunpack.c.l.bf16 %v239
    %v256 = vunpack.c.h.bf16 %v239
    %v257 = vunpack.c.l.bf16 %v240
    %v258 = vunpack.c.h.bf16 %v240
    %v259 = vunpack.c.l.bf16 %v241
    %v260 = vunpack.c.h.bf16 %v241
    %v261 = vunpack.c.l.bf16 %v242
    %v262 = vunpack.c.h.bf16 %v242
    %v263 = vunpack.c.l.bf16 %v243
    %v264 = vunpack.c.h.bf16 %v243
    %v265 = vunpack.c.l.bf16 %v244
    %v266 = vunpack.c.h.bf16 %v244
    %v267 = vunpack.c.l.bf16 %v245
    %v268 = vunpack.c.h.bf16 %v245
    %v269 = vunpack.c.l.bf16 %v246
    %v270 = vunpack.c.h.bf16 %v246
    %v271 = vunpack.c.l.bf16 %v247
    %v272 = vunpack.c.h.bf16 %v247
    %v273 = vunpack.c.l.bf16 %v248
    %v274 = vunpack.c.h.bf16 %v248
    %v275 = vld [vmem:[#allocation7] sm:$0xff]
    %v276 = vld [vmem:[#allocation7 + $0x8] sm:$0xff]
    %v277 = vld [vmem:[#allocation7 + $0x10] sm:$0xff]
    %v278 = vld [vmem:[#allocation7 + $0x18] sm:$0x3]
    %v283 = vlaneseq
    %v284 = vshrl.u32 %v283, 7
    %v285 = vsub.s32 0, %v284
    %v286 = vrot.slane %v275, %v285
    %v287 = vlaneseq
    %v288 = vshrl.u32 %v287, 7
    %v289 = vsub.s32 1, %v288
    %v290 = vrot.slane %v275, %v289
    %v291 = vlaneseq
    %v292 = vshrl.u32 %v291, 7
    %v293 = vsub.s32 2, %v292
    %v294 = vrot.slane %v275, %v293
    %v295 = vlaneseq
    %v296 = vshrl.u32 %v295, 7
    %v297 = vsub.s32 3, %v296
    %v298 = vrot.slane %v275, %v297
    %v299 = vlaneseq
    %v300 = vshrl.u32 %v299, 7
    %v301 = vsub.s32 4, %v300
    %v302 = vrot.slane %v275, %v301
    %v303 = vlaneseq
    %v304 = vshrl.u32 %v303, 7
    %v305 = vsub.s32 5, %v304
    %v306 = vrot.slane %v275, %v305
    %v307 = vlaneseq
    %v308 = vshrl.u32 %v307, 7
    %v309 = vsub.s32 6, %v308
    %v310 = vrot.slane %v275, %v309
    %v311 = vlaneseq
    %v312 = vshrl.u32 %v311, 7
    %v313 = vsub.s32 7, %v312
    %v314 = vrot.slane %v275, %v313
    %v315 = vlaneseq
    %v316 = vshrl.u32 %v315, 7
    %v317 = vsub.s32 0, %v316
    %v318 = vrot.slane %v276, %v317
    %v319 = vlaneseq
    %v320 = vshrl.u32 %v319, 7
    %v321 = vsub.s32 1, %v320
    %v322 = vrot.slane %v276, %v321
    %v323 = vlaneseq
    %v324 = vshrl.u32 %v323, 7
    %v325 = vsub.s32 2, %v324
    %v326 = vrot.slane %v276, %v325
    %v327 = vlaneseq
    %v328 = vshrl.u32 %v327, 7
    %v329 = vsub.s32 3, %v328
    %v330 = vrot.slane %v276, %v329
    %v331 = vlaneseq
    %v332 = vshrl.u32 %v331, 7
    %v333 = vsub.s32 4, %v332
    %v334 = vrot.slane %v276, %v333
    %v335 = vlaneseq
    %v336 = vshrl.u32 %v335, 7
    %v337 = vsub.s32 5, %v336
    %v338 = vrot.slane %v276, %v337
    %v339 = vlaneseq
    %v340 = vshrl.u32 %v339, 7
    %v341 = vsub.s32 6, %v340
    %v342 = vrot.slane %v276, %v341
    %v343 = vlaneseq
    %v344 = vshrl.u32 %v343, 7
    %v345 = vsub.s32 7, %v344
    %v346 = vrot.slane %v276, %v345
    %v347 = vlaneseq
    %v348 = vshrl.u32 %v347, 7
    %v349 = vsub.s32 0, %v348
    %v350 = vrot.slane %v277, %v349
    %v351 = vlaneseq
    %v352 = vshrl.u32 %v351, 7
    %v353 = vsub.s32 1, %v352
    %v354 = vrot.slane %v277, %v353
    %v355 = vlaneseq
    %v356 = vshrl.u32 %v355, 7
    %v357 = vsub.s32 2, %v356
    %v358 = vrot.slane %v277, %v357
    %v359 = vlaneseq
    %v360 = vshrl.u32 %v359, 7
    %v361 = vsub.s32 3, %v360
    %v362 = vrot.slane %v277, %v361
    %v363 = vlaneseq
    %v364 = vshrl.u32 %v363, 7
    %v365 = vsub.s32 4, %v364
    %v366 = vrot.slane %v277, %v365
    %v367 = vlaneseq
    %v368 = vshrl.u32 %v367, 7
    %v369 = vsub.s32 5, %v368
    %v370 = vrot.slane %v277, %v369
    %v371 = vlaneseq
    %v372 = vshrl.u32 %v371, 7
    %v373 = vsub.s32 6, %v372
    %v374 = vrot.slane %v277, %v373
    %v375 = vlaneseq
    %v376 = vshrl.u32 %v375, 7
    %v377 = vsub.s32 7, %v376
    %v378 = vrot.slane %v277, %v377
    %v379 = vlaneseq
    %v380 = vshrl.u32 %v379, 7
    %v381 = vsub.s32 0, %v380
    %v382 = vrot.slane %v278, %v381
    %v383 = vlaneseq
    %v384 = vshrl.u32 %v383, 7
    %v385 = vsub.s32 1, %v384
    %v386 = vrot.slane %v278, %v385
    %v421 = vlaneseq
    %v422 = vand.u32 %v421, 127
    %v423 = vlaneseq
    %v424 = vshrl.u32 %v423, 7
    %v425 = vsub.s32 %v422, %v424
    %v426 = vrot.slane %v228, %v425
    %v427 = vlaneseq
    %v428 = vshrl.u32 %v427, 7
    %v429 = vsub.s32 %v422, %v428
    %v430 = vrot.slane %v229, %v429
    %v431 = vlaneseq
    %v432 = vshrl.u32 %v431, 7
    %v433 = vsub.s32 %v422, %v432
    %v434 = vrot.slane %v230, %v433
    %v435 = vlaneseq
    %v436 = vshrl.u32 %v435, 7
    %v437 = vsub.s32 %v422, %v436
    %v438 = vrot.slane %v231, %v437
    %v439 = vlaneseq
    %v440 = vshrl.u32 %v439, 7
    %v441 = vsub.s32 %v422, %v440
    %v442 = vrot.slane %v232, %v441
    %v443 = vlaneseq
    %v444 = vshrl.u32 %v443, 7
    %v445 = vsub.s32 %v422, %v444
    %v446 = vrot.slane %v233, %v445
    %v447 = vlaneseq
    %v448 = vshrl.u32 %v447, 7
    %v449 = vsub.s32 %v422, %v448
    %v450 = vrot.slane %v234, %v449
    %v451 = vlaneseq
    %v452 = vshrl.u32 %v451, 7
    %v453 = vsub.s32 %v422, %v452
    %v454 = vrot.slane %v235, %v453
    %vm455 = vcmask 1041409
    %v456 = vsel %vm455, %v430, %v426
    %vm457 = vcmask 1042434
    %v458 = vsel %vm457, %v434, %v456
    %vm459 = vcmask 1043459
    %v460 = vsel %vm459, %v438, %v458
    %vm461 = vcmask 1044484
    %v462 = vsel %vm461, %v442, %v460
    %vm463 = vcmask 1045509
    %v464 = vsel %vm463, %v446, %v462
    %vm465 = vcmask 1046534
    %v466 = vsel %vm465, %v450, %v464
    %vm467 = vcmask 1047559
    %v468 = vsel %vm467, %v454, %v466
    %vm469 = vcmask 64512
    %v470 = vsel %vm469, %v468, 0
    %472 = vmatprep.subr.mxu0 0.0
    %473 = vmatpush1.msra.mxu0 0.0
    %474 = vmatprep.subr.mxu0 0.0
    %475 = vmatpush1.msra.mxu0 0.0
    %476 = vmatprep.subr.mxu0 0.0
    %477 = vmatpush1.msra.mxu0 0.0
    %478 = vmatprep.subr.mxu0 0.0
    %479 = vmatpush1.msra.mxu0 0.0
    %480 = vmatprep.subr.mxu0 0.0
    %481 = vmatpush1.msra.mxu0 0.0
    %482 = vmatprep.subr.mxu0 0.0
    %483 = vmatpush1.msra.mxu0 0.0
    %484 = vmatprep.subr.mxu0 0.0
    %485 = vmatpush1.msra.mxu0 0.0
    %486 = vmatprep.subr.mxu0 0.0
    %487 = vmatpush1.msra.mxu0 0.0
    %488 = vmatprep.subr.mxu0 0.0
    %489 = vmatpush1.msra.mxu0 0.0
    %490 = vmatprep.subr.mxu0 0.0
    %491 = vmatpush1.msra.mxu0 0.0
    %492 = vmatprep.subr.mxu0 0.0
    %493 = vmatpush1.msra.mxu0 0.0
    %494 = vmatprep.subr.mxu0 0.0
    %495 = vmatpush1.msra.mxu0 0.0
    %496 = vmatprep.subr.mxu0 0.0
    %497 = vmatpush1.msra.mxu0 0.0
    %498 = vmatprep.subr.mxu0 0.0
    %499 = vmatpush1.msra.mxu0 0.0
    %500 = vmatprep.subr.mxu0 0.0
    %501 = vmatpush1.msra.mxu0 0.0
    %502 = vmatprep.subr.mxu0 %v250
    %503 = vmatpush1.msra.mxu0 %v249
    %504 = vmatprep.subr.mxu0 0.0
    %505 = vmatpush2.msra.mxu0 0.0
    %506 = vmatprep.subr.mxu0 0.0
    %507 = vmatpush2.msra.mxu0 0.0
    %508 = vmatprep.subr.mxu0 0.0
    %509 = vmatpush2.msra.mxu0 0.0
    %510 = vmatprep.subr.mxu0 0.0
    %511 = vmatpush2.msra.mxu0 0.0
    %512 = vmatprep.subr.mxu0 0.0
    %513 = vmatpush2.msra.mxu0 0.0
    %514 = vmatprep.subr.mxu0 0.0
    %515 = vmatpush2.msra.mxu0 0.0
    %516 = vmatprep.subr.mxu0 0.0
    %517 = vmatpush2.msra.mxu0 0.0
    %518 = vmatprep.subr.mxu0 0.0
    %519 = vmatpush2.msra.mxu0 0.0
    %520 = vmatprep.subr.mxu0 0.0
    %521 = vmatpush2.msra.mxu0 0.0
    %522 = vmatprep.subr.mxu0 0.0
    %523 = vmatpush2.msra.mxu0 0.0
    %524 = vmatprep.subr.mxu0 0.0
    %525 = vmatpush2.msra.mxu0 0.0
    %526 = vmatprep.subr.mxu0 0.0
    %527 = vmatpush2.msra.mxu0 0.0
    %528 = vmatprep.subr.mxu0 0.0
    %529 = vmatpush2.msra.mxu0 0.0
    %530 = vmatprep.subr.mxu0 0.0
    %531 = vmatpush2.msra.mxu0 0.0
    %532 = vmatprep.subr.mxu0 0.0
    %533 = vmatpush2.msra.mxu0 0.0
    %534 = vmatprep.subr.mxu0 0.0
    %535 = vmatpush2.msra.mxu0 0.0
    %536 = vmatprep.mubr.f32.mxu0 0.0
    %537 = vmatmul.mubr.f32.gmra.mxu0 %v470
    %v538 = vpop.f32.mrf.mxu0
    %v539 = vadd.f32 %v286, %v538
    %v540 = vpop.f32.mrf.mxu0
    %v541 = vadd.f32 %v290, %v540
    %542 = vdwg.mxu0
    %543 = vmatprep.subr.mxu0 0.0
    %544 = vmatpush1.msra.mxu0 0.0
    %545 = vmatprep.subr.mxu0 0.0
    %546 = vmatpush1.msra.mxu0 0.0
    %547 = vmatprep.subr.mxu0 0.0
    %548 = vmatpush1.msra.mxu0 0.0
    %549 = vmatprep.subr.mxu0 0.0
    %550 = vmatpush1.msra.mxu0 0.0
    %551 = vmatprep.subr.mxu0 0.0
    %552 = vmatpush1.msra.mxu0 0.0
    %553 = vmatprep.subr.mxu0 0.0
    %554 = vmatpush1.msra.mxu0 0.0
    %555 = vmatprep.subr.mxu0 0.0
    %556 = vmatpush1.msra.mxu0 0.0
    %557 = vmatprep.subr.mxu0 0.0
    %558 = vmatpush1.msra.mxu0 0.0
    %559 = vmatprep.subr.mxu0 0.0
    %560 = vmatpush1.msra.mxu0 0.0
    %561 = vmatprep.subr.mxu0 0.0
    %562 = vmatpush1.msra.mxu0 0.0
    %563 = vmatprep.subr.mxu0 0.0
    %564 = vmatpush1.msra.mxu0 0.0
    %565 = vmatprep.subr.mxu0 0.0
    %566 = vmatpush1.msra.mxu0 0.0
    %567 = vmatprep.subr.mxu0 0.0
    %568 = vmatpush1.msra.mxu0 0.0
    %569 = vmatprep.subr.mxu0 0.0
    %570 = vmatpush1.msra.mxu0 0.0
    %571 = vmatprep.subr.mxu0 0.0
    %572 = vmatpush1.msra.mxu0 0.0
    %573 = vmatprep.subr.mxu0 %v252
    %574 = vmatpush1.msra.mxu0 %v251
    %575 = vmatprep.subr.mxu0 0.0
    %576 = vmatpush2.msra.mxu0 0.0
    %577 = vmatprep.subr.mxu0 0.0
    %578 = vmatpush2.msra.mxu0 0.0
    %579 = vmatprep.subr.mxu0 0.0
    %580 = vmatpush2.msra.mxu0 0.0
    %581 = vmatprep.subr.mxu0 0.0
    %582 = vmatpush2.msra.mxu0 0.0
    %583 = vmatprep.subr.mxu0 0.0
    %584 = vmatpush2.msra.mxu0 0.0
    %585 = vmatprep.subr.mxu0 0.0
    %586 = vmatpush2.msra.mxu0 0.0
    %587 = vmatprep.subr.mxu0 0.0
    %588 = vmatpush2.msra.mxu0 0.0
    %589 = vmatprep.subr.mxu0 0.0
    %590 = vmatpush2.msra.mxu0 0.0
    %591 = vmatprep.subr.mxu0 0.0
    %592 = vmatpush2.msra.mxu0 0.0
    %593 = vmatprep.subr.mxu0 0.0
    %594 = vmatpush2.msra.mxu0 0.0
    %595 = vmatprep.subr.mxu0 0.0
    %596 = vmatpush2.msra.mxu0 0.0
    %597 = vmatprep.subr.mxu0 0.0
    %598 = vmatpush2.msra.mxu0 0.0
    %599 = vmatprep.subr.mxu0 0.0
    %600 = vmatpush2.msra.mxu0 0.0
    %601 = vmatprep.subr.mxu0 0.0
    %602 = vmatpush2.msra.mxu0 0.0
    %603 = vmatprep.subr.mxu0 0.0
    %604 = vmatpush2.msra.mxu0 0.0
    %605 = vmatprep.subr.mxu0 0.0
    %606 = vmatpush2.msra.mxu0 0.0
    %607 = vmatprep.mubr.f32.mxu0 0.0
    %608 = vmatmul.mubr.f32.gmra.mxu0 %v470
    %v609 = vpop.f32.mrf.mxu0
    %v610 = vadd.f32 %v294, %v609
    %v611 = vpop.f32.mrf.mxu0
    %v612 = vadd.f32 %v298, %v611
    %613 = vdwg.mxu0
    %614 = vmatprep.subr.mxu0 0.0
    %615 = vmatpush1.msra.mxu0 0.0
    %616 = vmatprep.subr.mxu0 0.0
    %617 = vmatpush1.msra.mxu0 0.0
    %618 = vmatprep.subr.mxu0 0.0
    %619 = vmatpush1.msra.mxu0 0.0
    %620 = vmatprep.subr.mxu0 0.0
    %621 = vmatpush1.msra.mxu0 0.0
    %622 = vmatprep.subr.mxu0 0.0
    %623 = vmatpush1.msra.mxu0 0.0
    %624 = vmatprep.subr.mxu0 0.0
    %625 = vmatpush1.msra.mxu0 0.0
    %626 = vmatprep.subr.mxu0 0.0
    %627 = vmatpush1.msra.mxu0 0.0
    %628 = vmatprep.subr.mxu0 0.0
    %629 = vmatpush1.msra.mxu0 0.0
    %630 = vmatprep.subr.mxu0 0.0
    %631 = vmatpush1.msra.mxu0 0.0
    %632 = vmatprep.subr.mxu0 0.0
    %633 = vmatpush1.msra.mxu0 0.0
    %634 = vmatprep.subr.mxu0 0.0
    %635 = vmatpush1.msra.mxu0 0.0
    %636 = vmatprep.subr.mxu0 0.0
    %637 = vmatpush1.msra.mxu0 0.0
    %638 = vmatprep.subr.mxu0 0.0
    %639 = vmatpush1.msra.mxu0 0.0
    %640 = vmatprep.subr.mxu0 0.0
    %641 = vmatpush1.msra.mxu0 0.0
    %642 = vmatprep.subr.mxu0 0.0
    %643 = vmatpush1.msra.mxu0 0.0
    %644 = vmatprep.subr.mxu0 %v254
    %645 = vmatpush1.msra.mxu0 %v253
    %646 = vmatprep.subr.mxu0 0.0
    %647 = vmatpush2.msra.mxu0 0.0
    %648 = vmatprep.subr.mxu0 0.0
    %649 = vmatpush2.msra.mxu0 0.0
    %650 = vmatprep.subr.mxu0 0.0
    %651 = vmatpush2.msra.mxu0 0.0
    %652 = vmatprep.subr.mxu0 0.0
    %653 = vmatpush2.msra.mxu0 0.0
    %654 = vmatprep.subr.mxu0 0.0
    %655 = vmatpush2.msra.mxu0 0.0
    %656 = vmatprep.subr.mxu0 0.0
    %657 = vmatpush2.msra.mxu0 0.0
    %658 = vmatprep.subr.mxu0 0.0
    %659 = vmatpush2.msra.mxu0 0.0
    %660 = vmatprep.subr.mxu0 0.0
    %661 = vmatpush2.msra.mxu0 0.0
    %662 = vmatprep.subr.mxu0 0.0
    %663 = vmatpush2.msra.mxu0 0.0
    %664 = vmatprep.subr.mxu0 0.0
    %665 = vmatpush2.msra.mxu0 0.0
    %666 = vmatprep.subr.mxu0 0.0
    %667 = vmatpush2.msra.mxu0 0.0
    %668 = vmatprep.subr.mxu0 0.0
    %669 = vmatpush2.msra.mxu0 0.0
    %670 = vmatprep.subr.mxu0 0.0
    %671 = vmatpush2.msra.mxu0 0.0
    %672 = vmatprep.subr.mxu0 0.0
    %673 = vmatpush2.msra.mxu0 0.0
    %674 = vmatprep.subr.mxu0 0.0
    %675 = vmatpush2.msra.mxu0 0.0
    %676 = vmatprep.subr.mxu0 0.0
    %677 = vmatpush2.msra.mxu0 0.0
    %678 = vmatprep.mubr.f32.mxu0 0.0
    %679 = vmatmul.mubr.f32.gmra.mxu0 %v470
    %v680 = vpop.f32.mrf.mxu0
    %v681 = vadd.f32 %v302, %v680
    %v682 = vpop.f32.mrf.mxu0
    %v683 = vadd.f32 %v306, %v682
    %684 = vdwg.mxu0
    %685 = vmatprep.subr.mxu0 0.0
    %686 = vmatpush1.msra.mxu0 0.0
    %687 = vmatprep.subr.mxu0 0.0
    %688 = vmatpush1.msra.mxu0 0.0
    %689 = vmatprep.subr.mxu0 0.0
    %690 = vmatpush1.msra.mxu0 0.0
    %691 = vmatprep.subr.mxu0 0.0
    %692 = vmatpush1.msra.mxu0 0.0
    %693 = vmatprep.subr.mxu0 0.0
    %694 = vmatpush1.msra.mxu0 0.0
    %695 = vmatprep.subr.mxu0 0.0
    %696 = vmatpush1.msra.mxu0 0.0
    %697 = vmatprep.subr.mxu0 0.0
    %698 = vmatpush1.msra.mxu0 0.0
    %699 = vmatprep.subr.mxu0 0.0
    %700 = vmatpush1.msra.mxu0 0.0
    %701 = vmatprep.subr.mxu0 0.0
    %702 = vmatpush1.msra.mxu0 0.0
    %703 = vmatprep.subr.mxu0 0.0
    %704 = vmatpush1.msra.mxu0 0.0
    %705 = vmatprep.subr.mxu0 0.0
    %706 = vmatpush1.msra.mxu0 0.0
    %707 = vmatprep.subr.mxu0 0.0
    %708 = vmatpush1.msra.mxu0 0.0
    %709 = vmatprep.subr.mxu0 0.0
    %710 = vmatpush1.msra.mxu0 0.0
    %711 = vmatprep.subr.mxu0 0.0
    %712 = vmatpush1.msra.mxu0 0.0
    %713 = vmatprep.subr.mxu0 0.0
    %714 = vmatpush1.msra.mxu0 0.0
    %715 = vmatprep.subr.mxu0 %v256
    %716 = vmatpush1.msra.mxu0 %v255
    %717 = vmatprep.subr.mxu0 0.0
    %718 = vmatpush2.msra.mxu0 0.0
    %719 = vmatprep.subr.mxu0 0.0
    %720 = vmatpush2.msra.mxu0 0.0
    %721 = vmatprep.subr.mxu0 0.0
    %722 = vmatpush2.msra.mxu0 0.0
    %723 = vmatprep.subr.mxu0 0.0
    %724 = vmatpush2.msra.mxu0 0.0
    %725 = vmatprep.subr.mxu0 0.0
    %726 = vmatpush2.msra.mxu0 0.0
    %727 = vmatprep.subr.mxu0 0.0
    %728 = vmatpush2.msra.mxu0 0.0
    %729 = vmatprep.subr.mxu0 0.0
    %730 = vmatpush2.msra.mxu0 0.0
    %731 = vmatprep.subr.mxu0 0.0
    %732 = vmatpush2.msra.mxu0 0.0
    %733 = vmatprep.subr.mxu0 0.0
    %734 = vmatpush2.msra.mxu0 0.0
    %735 = vmatprep.subr.mxu0 0.0
    %736 = vmatpush2.msra.mxu0 0.0
    %737 = vmatprep.subr.mxu0 0.0
    %738 = vmatpush2.msra.mxu0 0.0
    %739 = vmatprep.subr.mxu0 0.0
    %740 = vmatpush2.msra.mxu0 0.0
    %741 = vmatprep.subr.mxu0 0.0
    %742 = vmatpush2.msra.mxu0 0.0
    %743 = vmatprep.subr.mxu0 0.0
    %744 = vmatpush2.msra.mxu0 0.0
    %745 = vmatprep.subr.mxu0 0.0
    %746 = vmatpush2.msra.mxu0 0.0
    %747 = vmatprep.subr.mxu0 0.0
    %748 = vmatpush2.msra.mxu0 0.0
    %749 = vmatprep.mubr.f32.mxu0 0.0
    %750 = vmatmul.mubr.f32.gmra.mxu0 %v470
    %v751 = vpop.f32.mrf.mxu0
    %v752 = vadd.f32 %v310, %v751
    %v753 = vpop.f32.mrf.mxu0
    %v754 = vadd.f32 %v314, %v753
    %755 = vdwg.mxu0
    %756 = vmatprep.subr.mxu0 0.0
    %757 = vmatpush1.msra.mxu0 0.0
    %758 = vmatprep.subr.mxu0 0.0
    %759 = vmatpush1.msra.mxu0 0.0
    %760 = vmatprep.subr.mxu0 0.0
    %761 = vmatpush1.msra.mxu0 0.0
    %762 = vmatprep.subr.mxu0 0.0
    %763 = vmatpush1.msra.mxu0 0.0
    %764 = vmatprep.subr.mxu0 0.0
    %765 = vmatpush1.msra.mxu0 0.0
    %766 = vmatprep.subr.mxu0 0.0
    %767 = vmatpush1.msra.mxu0 0.0
    %768 = vmatprep.subr.mxu0 0.0
    %769 = vmatpush1.msra.mxu0 0.0
    %770 = vmatprep.subr.mxu0 0.0
    %771 = vmatpush1.msra.mxu0 0.0
    %772 = vmatprep.subr.mxu0 0.0
    %773 = vmatpush1.msra.mxu0 0.0
    %774 = vmatprep.subr.mxu0 0.0
    %775 = vmatpush1.msra.mxu0 0.0
    %776 = vmatprep.subr.mxu0 0.0
    %777 = vmatpush1.msra.mxu0 0.0
    %778 = vmatprep.subr.mxu0 0.0
    %779 = vmatpush1.msra.mxu0 0.0
    %780 = vmatprep.subr.mxu0 0.0
    %781 = vmatpush1.msra.mxu0 0.0
    %782 = vmatprep.subr.mxu0 0.0
    %783 = vmatpush1.msra.mxu0 0.0
    %784 = vmatprep.subr.mxu0 0.0
    %785 = vmatpush1.msra.mxu0 0.0
    %786 = vmatprep.subr.mxu0 %v258
    %787 = vmatpush1.msra.mxu0 %v257
    %788 = vmatprep.subr.mxu0 0.0
    %789 = vmatpush2.msra.mxu0 0.0
    %790 = vmatprep.subr.mxu0 0.0
    %791 = vmatpush2.msra.mxu0 0.0
    %792 = vmatprep.subr.mxu0 0.0
    %793 = vmatpush2.msra.mxu0 0.0
    %794 = vmatprep.subr.mxu0 0.0
    %795 = vmatpush2.msra.mxu0 0.0
    %796 = vmatprep.subr.mxu0 0.0
    %797 = vmatpush2.msra.mxu0 0.0
    %798 = vmatprep.subr.mxu0 0.0
    %799 = vmatpush2.msra.mxu0 0.0
    %800 = vmatprep.subr.mxu0 0.0
    %801 = vmatpush2.msra.mxu0 0.0
    %802 = vmatprep.subr.mxu0 0.0
    %803 = vmatpush2.msra.mxu0 0.0
    %804 = vmatprep.subr.mxu0 0.0
    %805 = vmatpush2.msra.mxu0 0.0
    %806 = vmatprep.subr.mxu0 0.0
    %807 = vmatpush2.msra.mxu0 0.0
    %808 = vmatprep.subr.mxu0 0.0
    %809 = vmatpush2.msra.mxu0 0.0
    %810 = vmatprep.subr.mxu0 0.0
    %811 = vmatpush2.msra.mxu0 0.0
    %812 = vmatprep.subr.mxu0 0.0
    %813 = vmatpush2.msra.mxu0 0.0
    %814 = vmatprep.subr.mxu0 0.0
    %815 = vmatpush2.msra.mxu0 0.0
    %816 = vmatprep.subr.mxu0 0.0
    %817 = vmatpush2.msra.mxu0 0.0
    %818 = vmatprep.subr.mxu0 0.0
    %819 = vmatpush2.msra.mxu0 0.0
    %820 = vmatprep.mubr.f32.mxu0 0.0
    %821 = vmatmul.mubr.f32.gmra.mxu0 %v470
    %v822 = vpop.f32.mrf.mxu0
    %v823 = vadd.f32 %v318, %v822
    %v824 = vpop.f32.mrf.mxu0
    %v825 = vadd.f32 %v322, %v824
    %826 = vdwg.mxu0
    %827 = vmatprep.subr.mxu0 0.0
    %828 = vmatpush1.msra.mxu0 0.0
    %829 = vmatprep.subr.mxu0 0.0
    %830 = vmatpush1.msra.mxu0 0.0
    %831 = vmatprep.subr.mxu0 0.0
    %832 = vmatpush1.msra.mxu0 0.0
    %833 = vmatprep.subr.mxu0 0.0
    %834 = vmatpush1.msra.mxu0 0.0
    %835 = vmatprep.subr.mxu0 0.0
    %836 = vmatpush1.msra.mxu0 0.0
    %837 = vmatprep.subr.mxu0 0.0
    %838 = vmatpush1.msra.mxu0 0.0
    %839 = vmatprep.subr.mxu0 0.0
    %840 = vmatpush1.msra.mxu0 0.0
    %841 = vmatprep.subr.mxu0 0.0
    %842 = vmatpush1.msra.mxu0 0.0
    %843 = vmatprep.subr.mxu0 0.0
    %844 = vmatpush1.msra.mxu0 0.0
    %845 = vmatprep.subr.mxu0 0.0
    %846 = vmatpush1.msra.mxu0 0.0
    %847 = vmatprep.subr.mxu0 0.0
    %848 = vmatpush1.msra.mxu0 0.0
    %849 = vmatprep.subr.mxu0 0.0
    %850 = vmatpush1.msra.mxu0 0.0
    %851 = vmatprep.subr.mxu0 0.0
    %852 = vmatpush1.msra.mxu0 0.0
    %853 = vmatprep.subr.mxu0 0.0
    %854 = vmatpush1.msra.mxu0 0.0
    %855 = vmatprep.subr.mxu0 0.0
    %856 = vmatpush1.msra.mxu0 0.0
    %857 = vmatprep.subr.mxu0 %v260
    %858 = vmatpush1.msra.mxu0 %v259
    %859 = vmatprep.subr.mxu0 0.0
    %860 = vmatpush2.msra.mxu0 0.0
    %861 = vmatprep.subr.mxu0 0.0
    %862 = vmatpush2.msra.mxu0 0.0
    %863 = vmatprep.subr.mxu0 0.0
    %864 = vmatpush2.msra.mxu0 0.0
    %865 = vmatprep.subr.mxu0 0.0
    %866 = vmatpush2.msra.mxu0 0.0
    %867 = vmatprep.subr.mxu0 0.0
    %868 = vmatpush2.msra.mxu0 0.0
    %869 = vmatprep.subr.mxu0 0.0
    %870 = vmatpush2.msra.mxu0 0.0
    %871 = vmatprep.subr.mxu0 0.0
    %872 = vmatpush2.msra.mxu0 0.0
    %873 = vmatprep.subr.mxu0 0.0
    %874 = vmatpush2.msra.mxu0 0.0
    %875 = vmatprep.subr.mxu0 0.0
    %876 = vmatpush2.msra.mxu0 0.0
    %877 = vmatprep.subr.mxu0 0.0
    %878 = vmatpush2.msra.mxu0 0.0
    %879 = vmatprep.subr.mxu0 0.0
    %880 = vmatpush2.msra.mxu0 0.0
    %881 = vmatprep.subr.mxu0 0.0
    %882 = vmatpush2.msra.mxu0 0.0
    %883 = vmatprep.subr.mxu0 0.0
    %884 = vmatpush2.msra.mxu0 0.0
    %885 = vmatprep.subr.mxu0 0.0
    %886 = vmatpush2.msra.mxu0 0.0
    %887 = vmatprep.subr.mxu0 0.0
    %888 = vmatpush2.msra.mxu0 0.0
    %889 = vmatprep.subr.mxu0 0.0
    %890 = vmatpush2.msra.mxu0 0.0
    %891 = vmatprep.mubr.f32.mxu0 0.0
    %892 = vmatmul.mubr.f32.gmra.mxu0 %v470
    %v893 = vpop.f32.mrf.mxu0
    %v894 = vadd.f32 %v326, %v893
    %v895 = vpop.f32.mrf.mxu0
    %v896 = vadd.f32 %v330, %v895
    %897 = vdwg.mxu0
    %898 = vmatprep.subr.mxu0 0.0
    %899 = vmatpush1.msra.mxu0 0.0
    %900 = vmatprep.subr.mxu0 0.0
    %901 = vmatpush1.msra.mxu0 0.0
    %902 = vmatprep.subr.mxu0 0.0
    %903 = vmatpush1.msra.mxu0 0.0
    %904 = vmatprep.subr.mxu0 0.0
    %905 = vmatpush1.msra.mxu0 0.0
    %906 = vmatprep.subr.mxu0 0.0
    %907 = vmatpush1.msra.mxu0 0.0
    %908 = vmatprep.subr.mxu0 0.0
    %909 = vmatpush1.msra.mxu0 0.0
    %910 = vmatprep.subr.mxu0 0.0
    %911 = vmatpush1.msra.mxu0 0.0
    %912 = vmatprep.subr.mxu0 0.0
    %913 = vmatpush1.msra.mxu0 0.0
    %914 = vmatprep.subr.mxu0 0.0
    %915 = vmatpush1.msra.mxu0 0.0
    %916 = vmatprep.subr.mxu0 0.0
    %917 = vmatpush1.msra.mxu0 0.0
    %918 = vmatprep.subr.mxu0 0.0
    %919 = vmatpush1.msra.mxu0 0.0
    %920 = vmatprep.subr.mxu0 0.0
    %921 = vmatpush1.msra.mxu0 0.0
    %922 = vmatprep.subr.mxu0 0.0
    %923 = vmatpush1.msra.mxu0 0.0
    %924 = vmatprep.subr.mxu0 0.0
    %925 = vmatpush1.msra.mxu0 0.0
    %926 = vmatprep.subr.mxu0 0.0
    %927 = vmatpush1.msra.mxu0 0.0
    %928 = vmatprep.subr.mxu0 %v262
    %929 = vmatpush1.msra.mxu0 %v261
    %930 = vmatprep.subr.mxu0 0.0
    %931 = vmatpush2.msra.mxu0 0.0
    %932 = vmatprep.subr.mxu0 0.0
    %933 = vmatpush2.msra.mxu0 0.0
    %934 = vmatprep.subr.mxu0 0.0
    %935 = vmatpush2.msra.mxu0 0.0
    %936 = vmatprep.subr.mxu0 0.0
    %937 = vmatpush2.msra.mxu0 0.0
    %938 = vmatprep.subr.mxu0 0.0
    %939 = vmatpush2.msra.mxu0 0.0
    %940 = vmatprep.subr.mxu0 0.0
    %941 = vmatpush2.msra.mxu0 0.0
    %942 = vmatprep.subr.mxu0 0.0
    %943 = vmatpush2.msra.mxu0 0.0
    %944 = vmatprep.subr.mxu0 0.0
    %945 = vmatpush2.msra.mxu0 0.0
    %946 = vmatprep.subr.mxu0 0.0
    %947 = vmatpush2.msra.mxu0 0.0
    %948 = vmatprep.subr.mxu0 0.0
    %949 = vmatpush2.msra.mxu0 0.0
    %950 = vmatprep.subr.mxu0 0.0
    %951 = vmatpush2.msra.mxu0 0.0
    %952 = vmatprep.subr.mxu0 0.0
    %953 = vmatpush2.msra.mxu0 0.0
    %954 = vmatprep.subr.mxu0 0.0
    %955 = vmatpush2.msra.mxu0 0.0
    %956 = vmatprep.subr.mxu0 0.0
    %957 = vmatpush2.msra.mxu0 0.0
    %958 = vmatprep.subr.mxu0 0.0
    %959 = vmatpush2.msra.mxu0 0.0
    %960 = vmatprep.subr.mxu0 0.0
    %961 = vmatpush2.msra.mxu0 0.0
    %962 = vmatprep.mubr.f32.mxu0 0.0
    %963 = vmatmul.mubr.f32.gmra.mxu0 %v470
    %v964 = vpop.f32.mrf.mxu0
    %v965 = vadd.f32 %v334, %v964
    %v966 = vpop.f32.mrf.mxu0
    %v967 = vadd.f32 %v338, %v966
    %968 = vdwg.mxu0
    %969 = vmatprep.subr.mxu0 0.0
    %970 = vmatpush1.msra.mxu0 0.0
    %971 = vmatprep.subr.mxu0 0.0
    %972 = vmatpush1.msra.mxu0 0.0
    %973 = vmatprep.subr.mxu0 0.0
    %974 = vmatpush1.msra.mxu0 0.0
    %975 = vmatprep.subr.mxu0 0.0
    %976 = vmatpush1.msra.mxu0 0.0
    %977 = vmatprep.subr.mxu0 0.0
    %978 = vmatpush1.msra.mxu0 0.0
    %979 = vmatprep.subr.mxu0 0.0
    %980 = vmatpush1.msra.mxu0 0.0
    %981 = vmatprep.subr.mxu0 0.0
    %982 = vmatpush1.msra.mxu0 0.0
    %983 = vmatprep.subr.mxu0 0.0
    %984 = vmatpush1.msra.mxu0 0.0
    %985 = vmatprep.subr.mxu0 0.0
    %986 = vmatpush1.msra.mxu0 0.0
    %987 = vmatprep.subr.mxu0 0.0
    %988 = vmatpush1.msra.mxu0 0.0
    %989 = vmatprep.subr.mxu0 0.0
    %990 = vmatpush1.msra.mxu0 0.0
    %991 = vmatprep.subr.mxu0 0.0
    %992 = vmatpush1.msra.mxu0 0.0
    %993 = vmatprep.subr.mxu0 0.0
    %994 = vmatpush1.msra.mxu0 0.0
    %995 = vmatprep.subr.mxu0 0.0
    %996 = vmatpush1.msra.mxu0 0.0
    %997 = vmatprep.subr.mxu0 0.0
    %998 = vmatpush1.msra.mxu0 0.0
    %999 = vmatprep.subr.mxu0 %v264
    %1000 = vmatpush1.msra.mxu0 %v263
    %1001 = vmatprep.subr.mxu0 0.0
    %1002 = vmatpush2.msra.mxu0 0.0
    %1003 = vmatprep.subr.mxu0 0.0
    %1004 = vmatpush2.msra.mxu0 0.0
    %1005 = vmatprep.subr.mxu0 0.0
    %1006 = vmatpush2.msra.mxu0 0.0
    %1007 = vmatprep.subr.mxu0 0.0
    %1008 = vmatpush2.msra.mxu0 0.0
    %1009 = vmatprep.subr.mxu0 0.0
    %1010 = vmatpush2.msra.mxu0 0.0
    %1011 = vmatprep.subr.mxu0 0.0
    %1012 = vmatpush2.msra.mxu0 0.0
    %1013 = vmatprep.subr.mxu0 0.0
    %1014 = vmatpush2.msra.mxu0 0.0
    %1015 = vmatprep.subr.mxu0 0.0
    %1016 = vmatpush2.msra.mxu0 0.0
    %1017 = vmatprep.subr.mxu0 0.0
    %1018 = vmatpush2.msra.mxu0 0.0
    %1019 = vmatprep.subr.mxu0 0.0
    %1020 = vmatpush2.msra.mxu0 0.0
    %1021 = vmatprep.subr.mxu0 0.0
    %1022 = vmatpush2.msra.mxu0 0.0
    %1023 = vmatprep.subr.mxu0 0.0
    %1024 = vmatpush2.msra.mxu0 0.0
    %1025 = vmatprep.subr.mxu0 0.0
    %1026 = vmatpush2.msra.mxu0 0.0
    %1027 = vmatprep.subr.mxu0 0.0
    %1028 = vmatpush2.msra.mxu0 0.0
    %1029 = vmatprep.subr.mxu0 0.0
    %1030 = vmatpush2.msra.mxu0 0.0
    %1031 = vmatprep.subr.mxu0 0.0
    %1032 = vmatpush2.msra.mxu0 0.0
    %1033 = vmatprep.mubr.f32.mxu0 0.0
    %1034 = vmatmul.mubr.f32.gmra.mxu0 %v470
    %v1035 = vpop.f32.mrf.mxu0
    %v1036 = vadd.f32 %v342, %v1035
    %v1037 = vpop.f32.mrf.mxu0
    %v1038 = vadd.f32 %v346, %v1037
    %1039 = vdwg.mxu0
    %1040 = vmatprep.subr.mxu0 0.0
    %1041 = vmatpush1.msra.mxu0 0.0
    %1042 = vmatprep.subr.mxu0 0.0
    %1043 = vmatpush1.msra.mxu0 0.0
    %1044 = vmatprep.subr.mxu0 0.0
    %1045 = vmatpush1.msra.mxu0 0.0
    %1046 = vmatprep.subr.mxu0 0.0
    %1047 = vmatpush1.msra.mxu0 0.0
    %1048 = vmatprep.subr.mxu0 0.0
    %1049 = vmatpush1.msra.mxu0 0.0
    %1050 = vmatprep.subr.mxu0 0.0
    %1051 = vmatpush1.msra.mxu0 0.0
    %1052 = vmatprep.subr.mxu0 0.0
    %1053 = vmatpush1.msra.mxu0 0.0
    %1054 = vmatprep.subr.mxu0 0.0
    %1055 = vmatpush1.msra.mxu0 0.0
    %1056 = vmatprep.subr.mxu0 0.0
    %1057 = vmatpush1.msra.mxu0 0.0
    %1058 = vmatprep.subr.mxu0 0.0
    %1059 = vmatpush1.msra.mxu0 0.0
    %1060 = vmatprep.subr.mxu0 0.0
    %1061 = vmatpush1.msra.mxu0 0.0
    %1062 = vmatprep.subr.mxu0 0.0
    %1063 = vmatpush1.msra.mxu0 0.0
    %1064 = vmatprep.subr.mxu0 0.0
    %1065 = vmatpush1.msra.mxu0 0.0
    %1066 = vmatprep.subr.mxu0 0.0
    %1067 = vmatpush1.msra.mxu0 0.0
    %1068 = vmatprep.subr.mxu0 0.0
    %1069 = vmatpush1.msra.mxu0 0.0
    %1070 = vmatprep.subr.mxu0 %v266
    %1071 = vmatpush1.msra.mxu0 %v265
    %1072 = vmatprep.subr.mxu0 0.0
    %1073 = vmatpush2.msra.mxu0 0.0
    %1074 = vmatprep.subr.mxu0 0.0
    %1075 = vmatpush2.msra.mxu0 0.0
    %1076 = vmatprep.subr.mxu0 0.0
    %1077 = vmatpush2.msra.mxu0 0.0
    %1078 = vmatprep.subr.mxu0 0.0
    %1079 = vmatpush2.msra.mxu0 0.0
    %1080 = vmatprep.subr.mxu0 0.0
    %1081 = vmatpush2.msra.mxu0 0.0
    %1082 = vmatprep.subr.mxu0 0.0
    %1083 = vmatpush2.msra.mxu0 0.0
    %1084 = vmatprep.subr.mxu0 0.0
    %1085 = vmatpush2.msra.mxu0 0.0
    %1086 = vmatprep.subr.mxu0 0.0
    %1087 = vmatpush2.msra.mxu0 0.0
    %1088 = vmatprep.subr.mxu0 0.0
    %1089 = vmatpush2.msra.mxu0 0.0
    %1090 = vmatprep.subr.mxu0 0.0
    %1091 = vmatpush2.msra.mxu0 0.0
    %1092 = vmatprep.subr.mxu0 0.0
    %1093 = vmatpush2.msra.mxu0 0.0
    %1094 = vmatprep.subr.mxu0 0.0
    %1095 = vmatpush2.msra.mxu0 0.0
    %1096 = vmatprep.subr.mxu0 0.0
    %1097 = vmatpush2.msra.mxu0 0.0
    %1098 = vmatprep.subr.mxu0 0.0
    %1099 = vmatpush2.msra.mxu0 0.0
    %1100 = vmatprep.subr.mxu0 0.0
    %1101 = vmatpush2.msra.mxu0 0.0
    %1102 = vmatprep.subr.mxu0 0.0
    %1103 = vmatpush2.msra.mxu0 0.0
    %1104 = vmatprep.mubr.f32.mxu0 0.0
    %1105 = vmatmul.mubr.f32.gmra.mxu0 %v470
    %v1106 = vpop.f32.mrf.mxu0
    %v1107 = vadd.f32 %v350, %v1106
    %v1108 = vpop.f32.mrf.mxu0
    %v1109 = vadd.f32 %v354, %v1108
    %1110 = vdwg.mxu0
    %1111 = vmatprep.subr.mxu0 0.0
    %1112 = vmatpush1.msra.mxu0 0.0
    %1113 = vmatprep.subr.mxu0 0.0
    %1114 = vmatpush1.msra.mxu0 0.0
    %1115 = vmatprep.subr.mxu0 0.0
    %1116 = vmatpush1.msra.mxu0 0.0
    %1117 = vmatprep.subr.mxu0 0.0
    %1118 = vmatpush1.msra.mxu0 0.0
    %1119 = vmatprep.subr.mxu0 0.0
    %1120 = vmatpush1.msra.mxu0 0.0
    %1121 = vmatprep.subr.mxu0 0.0
    %1122 = vmatpush1.msra.mxu0 0.0
    %1123 = vmatprep.subr.mxu0 0.0
    %1124 = vmatpush1.msra.mxu0 0.0
    %1125 = vmatprep.subr.mxu0 0.0
    %1126 = vmatpush1.msra.mxu0 0.0
    %1127 = vmatprep.subr.mxu0 0.0
    %1128 = vmatpush1.msra.mxu0 0.0
    %1129 = vmatprep.subr.mxu0 0.0
    %1130 = vmatpush1.msra.mxu0 0.0
    %1131 = vmatprep.subr.mxu0 0.0
    %1132 = vmatpush1.msra.mxu0 0.0
    %1133 = vmatprep.subr.mxu0 0.0
    %1134 = vmatpush1.msra.mxu0 0.0
    %1135 = vmatprep.subr.mxu0 0.0
    %1136 = vmatpush1.msra.mxu0 0.0
    %1137 = vmatprep.subr.mxu0 0.0
    %1138 = vmatpush1.msra.mxu0 0.0
    %1139 = vmatprep.subr.mxu0 0.0
    %1140 = vmatpush1.msra.mxu0 0.0
    %1141 = vmatprep.subr.mxu0 %v268
    %1142 = vmatpush1.msra.mxu0 %v267
    %1143 = vmatprep.subr.mxu0 0.0
    %1144 = vmatpush2.msra.mxu0 0.0
    %1145 = vmatprep.subr.mxu0 0.0
    %1146 = vmatpush2.msra.mxu0 0.0
    %1147 = vmatprep.subr.mxu0 0.0
    %1148 = vmatpush2.msra.mxu0 0.0
    %1149 = vmatprep.subr.mxu0 0.0
    %1150 = vmatpush2.msra.mxu0 0.0
    %1151 = vmatprep.subr.mxu0 0.0
    %1152 = vmatpush2.msra.mxu0 0.0
    %1153 = vmatprep.subr.mxu0 0.0
    %1154 = vmatpush2.msra.mxu0 0.0
    %1155 = vmatprep.subr.mxu0 0.0
    %1156 = vmatpush2.msra.mxu0 0.0
    %1157 = vmatprep.subr.mxu0 0.0
    %1158 = vmatpush2.msra.mxu0 0.0
    %1159 = vmatprep.subr.mxu0 0.0
    %1160 = vmatpush2.msra.mxu0 0.0
    %1161 = vmatprep.subr.mxu0 0.0
    %1162 = vmatpush2.msra.mxu0 0.0
    %1163 = vmatprep.subr.mxu0 0.0
    %1164 = vmatpush2.msra.mxu0 0.0
    %1165 = vmatprep.subr.mxu0 0.0
    %1166 = vmatpush2.msra.mxu0 0.0
    %1167 = vmatprep.subr.mxu0 0.0
    %1168 = vmatpush2.msra.mxu0 0.0
    %1169 = vmatprep.subr.mxu0 0.0
    %1170 = vmatpush2.msra.mxu0 0.0
    %1171 = vmatprep.subr.mxu0 0.0
    %1172 = vmatpush2.msra.mxu0 0.0
    %1173 = vmatprep.subr.mxu0 0.0
    %1174 = vmatpush2.msra.mxu0 0.0
    %1175 = vmatprep.mubr.f32.mxu0 0.0
    %1176 = vmatmul.mubr.f32.gmra.mxu0 %v470
    %v1177 = vpop.f32.mrf.mxu0
    %v1178 = vadd.f32 %v358, %v1177
    %v1179 = vpop.f32.mrf.mxu0
    %v1180 = vadd.f32 %v362, %v1179
    %1181 = vdwg.mxu0
    %1182 = vmatprep.subr.mxu0 0.0
    %1183 = vmatpush1.msra.mxu0 0.0
    %1184 = vmatprep.subr.mxu0 0.0
    %1185 = vmatpush1.msra.mxu0 0.0
    %1186 = vmatprep.subr.mxu0 0.0
    %1187 = vmatpush1.msra.mxu0 0.0
    %1188 = vmatprep.subr.mxu0 0.0
    %1189 = vmatpush1.msra.mxu0 0.0
    %1190 = vmatprep.subr.mxu0 0.0
    %1191 = vmatpush1.msra.mxu0 0.0
    %1192 = vmatprep.subr.mxu0 0.0
    %1193 = vmatpush1.msra.mxu0 0.0
    %1194 = vmatprep.subr.mxu0 0.0
    %1195 = vmatpush1.msra.mxu0 0.0
    %1196 = vmatprep.subr.mxu0 0.0
    %1197 = vmatpush1.msra.mxu0 0.0
    %1198 = vmatprep.subr.mxu0 0.0
    %1199 = vmatpush1.msra.mxu0 0.0
    %1200 = vmatprep.subr.mxu0 0.0
    %1201 = vmatpush1.msra.mxu0 0.0
    %1202 = vmatprep.subr.mxu0 0.0
    %1203 = vmatpush1.msra.mxu0 0.0
    %1204 = vmatprep.subr.mxu0 0.0
    %1205 = vmatpush1.msra.mxu0 0.0
    %1206 = vmatprep.subr.mxu0 0.0
    %1207 = vmatpush1.msra.mxu0 0.0
    %1208 = vmatprep.subr.mxu0 0.0
    %1209 = vmatpush1.msra.mxu0 0.0
    %1210 = vmatprep.subr.mxu0 0.0
    %1211 = vmatpush1.msra.mxu0 0.0
    %1212 = vmatprep.subr.mxu0 %v270
    %1213 = vmatpush1.msra.mxu0 %v269
    %1214 = vmatprep.subr.mxu0 0.0
    %1215 = vmatpush2.msra.mxu0 0.0
    %1216 = vmatprep.subr.mxu0 0.0
    %1217 = vmatpush2.msra.mxu0 0.0
    %1218 = vmatprep.subr.mxu0 0.0
    %1219 = vmatpush2.msra.mxu0 0.0
    %1220 = vmatprep.subr.mxu0 0.0
    %1221 = vmatpush2.msra.mxu0 0.0
    %1222 = vmatprep.subr.mxu0 0.0
    %1223 = vmatpush2.msra.mxu0 0.0
    %1224 = vmatprep.subr.mxu0 0.0
    %1225 = vmatpush2.msra.mxu0 0.0
    %1226 = vmatprep.subr.mxu0 0.0
    %1227 = vmatpush2.msra.mxu0 0.0
    %1228 = vmatprep.subr.mxu0 0.0
    %1229 = vmatpush2.msra.mxu0 0.0
    %1230 = vmatprep.subr.mxu0 0.0
    %1231 = vmatpush2.msra.mxu0 0.0
    %1232 = vmatprep.subr.mxu0 0.0
    %1233 = vmatpush2.msra.mxu0 0.0
    %1234 = vmatprep.subr.mxu0 0.0
    %1235 = vmatpush2.msra.mxu0 0.0
    %1236 = vmatprep.subr.mxu0 0.0
    %1237 = vmatpush2.msra.mxu0 0.0
    %1238 = vmatprep.subr.mxu0 0.0
    %1239 = vmatpush2.msra.mxu0 0.0
    %1240 = vmatprep.subr.mxu0 0.0
    %1241 = vmatpush2.msra.mxu0 0.0
    %1242 = vmatprep.subr.mxu0 0.0
    %1243 = vmatpush2.msra.mxu0 0.0
    %1244 = vmatprep.subr.mxu0 0.0
    %1245 = vmatpush2.msra.mxu0 0.0
    %1246 = vmatprep.mubr.f32.mxu0 0.0
    %1247 = vmatmul.mubr.f32.gmra.mxu0 %v470
    %v1248 = vpop.f32.mrf.mxu0
    %v1249 = vadd.f32 %v366, %v1248
    %v1250 = vpop.f32.mrf.mxu0
    %v1251 = vadd.f32 %v370, %v1250
    %1252 = vdwg.mxu0
    %1253 = vmatprep.subr.mxu0 0.0
    %1254 = vmatpush1.msra.mxu0 0.0
    %1255 = vmatprep.subr.mxu0 0.0
    %1256 = vmatpush1.msra.mxu0 0.0
    %1257 = vmatprep.subr.mxu0 0.0
    %1258 = vmatpush1.msra.mxu0 0.0
    %1259 = vmatprep.subr.mxu0 0.0
    %1260 = vmatpush1.msra.mxu0 0.0
    %1261 = vmatprep.subr.mxu0 0.0
    %1262 = vmatpush1.msra.mxu0 0.0
    %1263 = vmatprep.subr.mxu0 0.0
    %1264 = vmatpush1.msra.mxu0 0.0
    %1265 = vmatprep.subr.mxu0 0.0
    %1266 = vmatpush1.msra.mxu0 0.0
    %1267 = vmatprep.subr.mxu0 0.0
    %1268 = vmatpush1.msra.mxu0 0.0
    %1269 = vmatprep.subr.mxu0 0.0
    %1270 = vmatpush1.msra.mxu0 0.0
    %1271 = vmatprep.subr.mxu0 0.0
    %1272 = vmatpush1.msra.mxu0 0.0
    %1273 = vmatprep.subr.mxu0 0.0
    %1274 = vmatpush1.msra.mxu0 0.0
    %1275 = vmatprep.subr.mxu0 0.0
    %1276 = vmatpush1.msra.mxu0 0.0
    %1277 = vmatprep.subr.mxu0 0.0
    %1278 = vmatpush1.msra.mxu0 0.0
    %1279 = vmatprep.subr.mxu0 0.0
    %1280 = vmatpush1.msra.mxu0 0.0
    %1281 = vmatprep.subr.mxu0 0.0
    %1282 = vmatpush1.msra.mxu0 0.0
    %1283 = vmatprep.subr.mxu0 %v272
    %1284 = vmatpush1.msra.mxu0 %v271
    %1285 = vmatprep.subr.mxu0 0.0
    %1286 = vmatpush2.msra.mxu0 0.0
    %1287 = vmatprep.subr.mxu0 0.0
    %1288 = vmatpush2.msra.mxu0 0.0
    %1289 = vmatprep.subr.mxu0 0.0
    %1290 = vmatpush2.msra.mxu0 0.0
    %1291 = vmatprep.subr.mxu0 0.0
    %1292 = vmatpush2.msra.mxu0 0.0
    %1293 = vmatprep.subr.mxu0 0.0
    %1294 = vmatpush2.msra.mxu0 0.0
    %1295 = vmatprep.subr.mxu0 0.0
    %1296 = vmatpush2.msra.mxu0 0.0
    %1297 = vmatprep.subr.mxu0 0.0
    %1298 = vmatpush2.msra.mxu0 0.0
    %1299 = vmatprep.subr.mxu0 0.0
    %1300 = vmatpush2.msra.mxu0 0.0
    %1301 = vmatprep.subr.mxu0 0.0
    %1302 = vmatpush2.msra.mxu0 0.0
    %1303 = vmatprep.subr.mxu0 0.0
    %1304 = vmatpush2.msra.mxu0 0.0
    %1305 = vmatprep.subr.mxu0 0.0
    %1306 = vmatpush2.msra.mxu0 0.0
    %1307 = vmatprep.subr.mxu0 0.0
    %1308 = vmatpush2.msra.mxu0 0.0
    %1309 = vmatprep.subr.mxu0 0.0
    %1310 = vmatpush2.msra.mxu0 0.0
    %1311 = vmatprep.subr.mxu0 0.0
    %1312 = vmatpush2.msra.mxu0 0.0
    %1313 = vmatprep.subr.mxu0 0.0
    %1314 = vmatpush2.msra.mxu0 0.0
    %1315 = vmatprep.subr.mxu0 0.0
    %1316 = vmatpush2.msra.mxu0 0.0
    %1317 = vmatprep.mubr.f32.mxu0 0.0
    %1318 = vmatmul.mubr.f32.gmra.mxu0 %v470
    %v1319 = vpop.f32.mrf.mxu0
    %v1320 = vadd.f32 %v374, %v1319
    %v1321 = vpop.f32.mrf.mxu0
    %v1322 = vadd.f32 %v378, %v1321
    %1323 = vdwg.mxu0
    %1324 = vmatprep.subr.mxu0 0.0
    %1325 = vmatpush1.msra.mxu0 0.0
    %1326 = vmatprep.subr.mxu0 0.0
    %1327 = vmatpush1.msra.mxu0 0.0
    %1328 = vmatprep.subr.mxu0 0.0
    %1329 = vmatpush1.msra.mxu0 0.0
    %1330 = vmatprep.subr.mxu0 0.0
    %1331 = vmatpush1.msra.mxu0 0.0
    %1332 = vmatprep.subr.mxu0 0.0
    %1333 = vmatpush1.msra.mxu0 0.0
    %1334 = vmatprep.subr.mxu0 0.0
    %1335 = vmatpush1.msra.mxu0 0.0
    %1336 = vmatprep.subr.mxu0 0.0
    %1337 = vmatpush1.msra.mxu0 0.0
    %1338 = vmatprep.subr.mxu0 0.0
    %1339 = vmatpush1.msra.mxu0 0.0
    %1340 = vmatprep.subr.mxu0 0.0
    %1341 = vmatpush1.msra.mxu0 0.0
    %1342 = vmatprep.subr.mxu0 0.0
    %1343 = vmatpush1.msra.mxu0 0.0
    %1344 = vmatprep.subr.mxu0 0.0
    %1345 = vmatpush1.msra.mxu0 0.0
    %1346 = vmatprep.subr.mxu0 0.0
    %1347 = vmatpush1.msra.mxu0 0.0
    %1348 = vmatprep.subr.mxu0 0.0
    %1349 = vmatpush1.msra.mxu0 0.0
    %1350 = vmatprep.subr.mxu0 0.0
    %1351 = vmatpush1.msra.mxu0 0.0
    %1352 = vmatprep.subr.mxu0 0.0
    %1353 = vmatpush1.msra.mxu0 0.0
    %1354 = vmatprep.subr.mxu0 %v274
    %1355 = vmatpush1.msra.mxu0 %v273
    %1356 = vmatprep.subr.mxu0 0.0
    %1357 = vmatpush2.msra.mxu0 0.0
    %1358 = vmatprep.subr.mxu0 0.0
    %1359 = vmatpush2.msra.mxu0 0.0
    %1360 = vmatprep.subr.mxu0 0.0
    %1361 = vmatpush2.msra.mxu0 0.0
    %1362 = vmatprep.subr.mxu0 0.0
    %1363 = vmatpush2.msra.mxu0 0.0
    %1364 = vmatprep.subr.mxu0 0.0
    %1365 = vmatpush2.msra.mxu0 0.0
    %1366 = vmatprep.subr.mxu0 0.0
    %1367 = vmatpush2.msra.mxu0 0.0
    %1368 = vmatprep.subr.mxu0 0.0
    %1369 = vmatpush2.msra.mxu0 0.0
    %1370 = vmatprep.subr.mxu0 0.0
    %1371 = vmatpush2.msra.mxu0 0.0
    %1372 = vmatprep.subr.mxu0 0.0
    %1373 = vmatpush2.msra.mxu0 0.0
    %1374 = vmatprep.subr.mxu0 0.0
    %1375 = vmatpush2.msra.mxu0 0.0
    %1376 = vmatprep.subr.mxu0 0.0
    %1377 = vmatpush2.msra.mxu0 0.0
    %1378 = vmatprep.subr.mxu0 0.0
    %1379 = vmatpush2.msra.mxu0 0.0
    %1380 = vmatprep.subr.mxu0 0.0
    %1381 = vmatpush2.msra.mxu0 0.0
    %1382 = vmatprep.subr.mxu0 0.0
    %1383 = vmatpush2.msra.mxu0 0.0
    %1384 = vmatprep.subr.mxu0 0.0
    %1385 = vmatpush2.msra.mxu0 0.0
    %1386 = vmatprep.subr.mxu0 0.0
    %1387 = vmatpush2.msra.mxu0 0.0
    %1388 = vmatprep.mubr.f32.mxu0 0.0
    %1389 = vmatmul.mubr.f32.gmra.mxu0 %v470
    %v1390 = vpop.f32.mrf.mxu0
    %v1391 = vadd.f32 %v382, %v1390
    %v1392 = vpop.f32.mrf.mxu0
    %v1393 = vadd.f32 %v386, %v1392
    %1394 = vdwg.mxu0
    %v1395 = vmax.f32 %v539, 0.0
    %v1396 = vmax.f32 %v541, 0.0
    %v1397 = vmax.f32 %v610, 0.0
    %v1398 = vmax.f32 %v612, 0.0
    %v1399 = vmax.f32 %v681, 0.0
    %v1400 = vmax.f32 %v683, 0.0
    %v1401 = vmax.f32 %v752, 0.0
    %v1402 = vmax.f32 %v754, 0.0
    %v1403 = vmax.f32 %v823, 0.0
    %v1404 = vmax.f32 %v825, 0.0
    %v1405 = vmax.f32 %v894, 0.0
    %v1406 = vmax.f32 %v896, 0.0
    %v1407 = vmax.f32 %v965, 0.0
    %v1408 = vmax.f32 %v967, 0.0
    %v1409 = vmax.f32 %v1036, 0.0
    %v1410 = vmax.f32 %v1038, 0.0
    %v1411 = vmax.f32 %v1107, 0.0
    %v1412 = vmax.f32 %v1109, 0.0
    %v1413 = vmax.f32 %v1178, 0.0
    %v1414 = vmax.f32 %v1180, 0.0
    %v1415 = vmax.f32 %v1249, 0.0
    %v1416 = vmax.f32 %v1251, 0.0
    %v1417 = vmax.f32 %v1320, 0.0
    %v1418 = vmax.f32 %v1322, 0.0
    %v1419 = vmax.f32 %v1391, 0.0
    %v1420 = vmax.f32 %v1393, 0.0
    %v1421 = vld [vmem:[#allocation8] sm:$0xf]
    %v1422 = vld [vmem:[#allocation8 + $0x4] sm:$0xf]
    %v1423 = vld [vmem:[#allocation8 + $0x8] sm:$0xf]
    %v1424 = vld [vmem:[#allocation8 + $0xc] sm:$0xf]
    %v1425 = vld [vmem:[#allocation8 + $0x10] sm:$0xf]
    %v1426 = vld [vmem:[#allocation8 + $0x14] sm:$0xf]
    %v1427 = vld [vmem:[#allocation8 + $0x18] sm:$0xf]
    %v1428 = vld [vmem:[#allocation8 + $0x1c] sm:$0xf]
    %v1429 = vld [vmem:[#allocation8 + $0x20] sm:$0xf]
    %v1430 = vld [vmem:[#allocation8 + $0x24] sm:$0xf]
    %v1431 = vld [vmem:[#allocation8 + $0x28] sm:$0xf]
    %v1432 = vld [vmem:[#allocation8 + $0x2c] sm:$0xf]
    %v1433 = vld [vmem:[#allocation8 + $0x30] sm:$0xf]
    %v1434 = vld [vmem:[#allocation8 + $0x34] sm:$0xf]
    %v1435 = vld [vmem:[#allocation8 + $0x38] sm:$0xf]
    %v1436 = vld [vmem:[#allocation8 + $0x3c] sm:$0xf]
    %v1437 = vld [vmem:[#allocation8 + $0x40] sm:$0xf]
    %v1438 = vld [vmem:[#allocation8 + $0x44] sm:$0xf]
    %v1439 = vld [vmem:[#allocation8 + $0x48] sm:$0xf]
    %v1440 = vld [vmem:[#allocation8 + $0x4c] sm:$0xf]
    %v1441 = vld [vmem:[#allocation8 + $0x50] sm:$0xf]
    %v1442 = vld [vmem:[#allocation8 + $0x54] sm:$0xf]
    %v1443 = vld [vmem:[#allocation8 + $0x58] sm:$0xf]
    %v1444 = vld [vmem:[#allocation8 + $0x5c] sm:$0xf]
    %v1445 = vld [vmem:[#allocation8 + $0x60] sm:$0xf]
    %v1446 = vld [vmem:[#allocation8 + $0x64] sm:$0xf]
    %v1447 = vld [vmem:[#allocation8 + $0x68] sm:$0xf]
    %v1448 = vld [vmem:[#allocation8 + $0x6c] sm:$0xf]
    %v1449 = vld [vmem:[#allocation8 + $0x70] sm:$0xf]
    %v1450 = vld [vmem:[#allocation8 + $0x74] sm:$0xf]
    %v1451 = vld [vmem:[#allocation8 + $0x78] sm:$0xf]
    %v1452 = vld [vmem:[#allocation8 + $0x7c] sm:$0xf]
    %v1453 = vld [vmem:[#allocation8 + $0x80] sm:$0xf]
    %v1454 = vld [vmem:[#allocation8 + $0x84] sm:$0xf]
    %v1455 = vld [vmem:[#allocation8 + $0x88] sm:$0xf]
    %v1456 = vld [vmem:[#allocation8 + $0x8c] sm:$0xf]
    %v1457 = vld [vmem:[#allocation8 + $0x90] sm:$0xf]
    %v1458 = vld [vmem:[#allocation8 + $0x94] sm:$0xf]
    %v1459 = vld [vmem:[#allocation8 + $0x98] sm:$0xf]
    %v1460 = vld [vmem:[#allocation8 + $0x9c] sm:$0xf]
    %v1461 = vld [vmem:[#allocation8 + $0xa0] sm:$0xf]
    %v1462 = vld [vmem:[#allocation8 + $0xa4] sm:$0xf]
    %v1463 = vld [vmem:[#allocation8 + $0xa8] sm:$0xf]
    %v1464 = vld [vmem:[#allocation8 + $0xac] sm:$0xf]
    %v1465 = vld [vmem:[#allocation8 + $0xb0] sm:$0xf]
    %v1466 = vld [vmem:[#allocation8 + $0xb4] sm:$0xf]
    %v1467 = vld [vmem:[#allocation8 + $0xb8] sm:$0xf]
    %v1468 = vld [vmem:[#allocation8 + $0xbc] sm:$0xf]
    %v1469 = vld [vmem:[#allocation8 + $0xc0] sm:$0xf]
    %v1470 = vld [vmem:[#allocation8 + $0xc4] sm:$0xf]
    %v1471 = vld [vmem:[#allocation8 + $0xc8] sm:$0xf]
    %v1472 = vld [vmem:[#allocation8 + $0xcc] sm:$0xf]
    %v1473 = vld [vmem:[#allocation8 + $0xd0] sm:$0xf]
    %v1474 = vld [vmem:[#allocation8 + $0xd4] sm:$0xf]
    %v1475 = vld [vmem:[#allocation8 + $0xd8] sm:$0xf]
    %v1476 = vld [vmem:[#allocation8 + $0xdc] sm:$0xf]
    %v1477 = vld [vmem:[#allocation8 + $0xe0] sm:$0xf]
    %v1478 = vld [vmem:[#allocation8 + $0xe4] sm:$0xf]
    %v1479 = vld [vmem:[#allocation8 + $0xe8] sm:$0xf]
    %v1480 = vld [vmem:[#allocation8 + $0xec] sm:$0xf]
    %v1481 = vld [vmem:[#allocation8 + $0xf0] sm:$0xf]
    %v1482 = vld [vmem:[#allocation8 + $0xf4] sm:$0xf]
    %v1483 = vld [vmem:[#allocation8 + $0xf8] sm:$0xf]
    %v1484 = vld [vmem:[#allocation8 + $0xfc] sm:$0xf]
    %v1485 = vld [vmem:[#allocation8 + $0x100] sm:$0xf]
    %v1486 = vld [vmem:[#allocation8 + $0x104] sm:$0xf]
    %v1487 = vld [vmem:[#allocation8 + $0x108] sm:$0xf]
    %v1488 = vld [vmem:[#allocation8 + $0x10c] sm:$0xf]
    %v1489 = vld [vmem:[#allocation8 + $0x110] sm:$0xf]
    %v1490 = vld [vmem:[#allocation8 + $0x114] sm:$0xf]
    %v1491 = vld [vmem:[#allocation8 + $0x118] sm:$0xf]
    %v1492 = vld [vmem:[#allocation8 + $0x11c] sm:$0xf]
    %v1493 = vld [vmem:[#allocation8 + $0x120] sm:$0xf]
    %v1494 = vld [vmem:[#allocation8 + $0x124] sm:$0xf]
    %v1495 = vld [vmem:[#allocation8 + $0x128] sm:$0xf]
    %v1496 = vld [vmem:[#allocation8 + $0x12c] sm:$0xf]
    %v1497 = vld [vmem:[#allocation8 + $0x130] sm:$0xf]
    %v1498 = vld [vmem:[#allocation8 + $0x134] sm:$0xf]
    %v1499 = vld [vmem:[#allocation8 + $0x138] sm:$0xf]
    %v1500 = vld [vmem:[#allocation8 + $0x13c] sm:$0xf]
    %v1501 = vld [vmem:[#allocation8 + $0x140] sm:$0xf]
    %v1502 = vld [vmem:[#allocation8 + $0x144] sm:$0xf]
    %v1503 = vld [vmem:[#allocation8 + $0x148] sm:$0xf]
    %v1504 = vld [vmem:[#allocation8 + $0x14c] sm:$0xf]
    %v1505 = vld [vmem:[#allocation8 + $0x150] sm:$0xf]
    %v1506 = vld [vmem:[#allocation8 + $0x154] sm:$0xf]
    %v1507 = vld [vmem:[#allocation8 + $0x158] sm:$0xf]
    %v1508 = vld [vmem:[#allocation8 + $0x15c] sm:$0xf]
    %v1509 = vld [vmem:[#allocation8 + $0x160] sm:$0xf]
    %v1510 = vld [vmem:[#allocation8 + $0x164] sm:$0xf]
    %v1511 = vld [vmem:[#allocation8 + $0x168] sm:$0xf]
    %v1512 = vld [vmem:[#allocation8 + $0x16c] sm:$0xf]
    %v1513 = vld [vmem:[#allocation8 + $0x170] sm:$0xf]
    %v1514 = vld [vmem:[#allocation8 + $0x174] sm:$0xf]
    %v1515 = vld [vmem:[#allocation8 + $0x178] sm:$0xf]
    %v1516 = vld [vmem:[#allocation8 + $0x17c] sm:$0xf]
    %v1517 = vld [vmem:[#allocation8 + $0x180] sm:$0xf]
    %v1518 = vld [vmem:[#allocation8 + $0x184] sm:$0xf]
    %v1519 = vld [vmem:[#allocation8 + $0x188] sm:$0xf]
    %v1520 = vld [vmem:[#allocation8 + $0x18c] sm:$0xf]
    %v1521 = vld [vmem:[#allocation8 + $0x190] sm:$0xf]
    %v1522 = vld [vmem:[#allocation8 + $0x194] sm:$0xf]
    %v1523 = vld [vmem:[#allocation8 + $0x198] sm:$0xf]
    %v1524 = vld [vmem:[#allocation8 + $0x19c] sm:$0xf]
    %v1525 = vld [vmem:[#allocation8 + $0x1a0] sm:$0xf]
    %v1526 = vld [vmem:[#allocation8 + $0x1a4] sm:$0xf]
    %v1527 = vld [vmem:[#allocation8 + $0x1a8] sm:$0xf]
    %v1528 = vld [vmem:[#allocation8 + $0x1ac] sm:$0xf]
    %v1529 = vld [vmem:[#allocation8 + $0x1b0] sm:$0xf]
    %v1530 = vld [vmem:[#allocation8 + $0x1b4] sm:$0xf]
    %v1531 = vld [vmem:[#allocation8 + $0x1b8] sm:$0xf]
    %v1532 = vld [vmem:[#allocation8 + $0x1bc] sm:$0xf]
    %v1533 = vld [vmem:[#allocation8 + $0x1c0] sm:$0xf]
    %v1534 = vld [vmem:[#allocation8 + $0x1c4] sm:$0xf]
    %v1535 = vld [vmem:[#allocation8 + $0x1c8] sm:$0xf]
    %v1536 = vld [vmem:[#allocation8 + $0x1cc] sm:$0xf]
    %v1537 = vld [vmem:[#allocation8 + $0x1d0] sm:$0xf]
    %v1538 = vld [vmem:[#allocation8 + $0x1d4] sm:$0xf]
    %v1539 = vld [vmem:[#allocation8 + $0x1d8] sm:$0xf]
    %v1540 = vld [vmem:[#allocation8 + $0x1dc] sm:$0xf]
    %v1541 = vld [vmem:[#allocation8 + $0x1e0] sm:$0xf]
    %v1542 = vld [vmem:[#allocation8 + $0x1e4] sm:$0xf]
    %v1543 = vld [vmem:[#allocation8 + $0x1e8] sm:$0xf]
    %v1544 = vld [vmem:[#allocation8 + $0x1ec] sm:$0xf]
    %v1545 = vld [vmem:[#allocation8 + $0x1f0] sm:$0xf]
    %v1546 = vld [vmem:[#allocation8 + $0x1f4] sm:$0xf]
    %v1547 = vld [vmem:[#allocation8 + $0x1f8] sm:$0xf]
    %v1548 = vld [vmem:[#allocation8 + $0x1fc] sm:$0xf]
    %v1549 = vld [vmem:[#allocation8 + $0x200] sm:$0xf]
    %v1550 = vld [vmem:[#allocation8 + $0x204] sm:$0xf]
    %v1551 = vld [vmem:[#allocation8 + $0x208] sm:$0xf]
    %v1552 = vld [vmem:[#allocation8 + $0x20c] sm:$0xf]
    %v1553 = vld [vmem:[#allocation8 + $0x210] sm:$0xf]
    %v1554 = vld [vmem:[#allocation8 + $0x214] sm:$0xf]
    %v1555 = vld [vmem:[#allocation8 + $0x218] sm:$0xf]
    %v1556 = vld [vmem:[#allocation8 + $0x21c] sm:$0xf]
    %v1557 = vld [vmem:[#allocation8 + $0x220] sm:$0xf]
    %v1558 = vld [vmem:[#allocation8 + $0x224] sm:$0xf]
    %v1559 = vld [vmem:[#allocation8 + $0x228] sm:$0xf]
    %v1560 = vld [vmem:[#allocation8 + $0x22c] sm:$0xf]
    %v1561 = vld [vmem:[#allocation8 + $0x230] sm:$0xf]
    %v1562 = vld [vmem:[#allocation8 + $0x234] sm:$0xf]
    %v1563 = vld [vmem:[#allocation8 + $0x238] sm:$0xf]
    %v1564 = vld [vmem:[#allocation8 + $0x23c] sm:$0xf]
    %v1565 = vld [vmem:[#allocation8 + $0x240] sm:$0xf]
    %v1566 = vld [vmem:[#allocation8 + $0x244] sm:$0xf]
    %v1567 = vld [vmem:[#allocation8 + $0x248] sm:$0xf]
    %v1568 = vld [vmem:[#allocation8 + $0x24c] sm:$0xf]
    %v1569 = vld [vmem:[#allocation8 + $0x250] sm:$0xf]
    %v1570 = vld [vmem:[#allocation8 + $0x254] sm:$0xf]
    %v1571 = vld [vmem:[#allocation8 + $0x258] sm:$0xf]
    %v1572 = vld [vmem:[#allocation8 + $0x25c] sm:$0xf]
    %v1573 = vld [vmem:[#allocation8 + $0x260] sm:$0xf]
    %v1574 = vld [vmem:[#allocation8 + $0x264] sm:$0xf]
    %v1575 = vld [vmem:[#allocation8 + $0x268] sm:$0xf]
    %v1576 = vld [vmem:[#allocation8 + $0x26c] sm:$0xf]
    %v1577 = vld [vmem:[#allocation8 + $0x270] sm:$0xf]
    %v1578 = vld [vmem:[#allocation8 + $0x274] sm:$0xf]
    %v1579 = vld [vmem:[#allocation8 + $0x278] sm:$0xf]
    %v1580 = vld [vmem:[#allocation8 + $0x27c] sm:$0xf]
    %v1581 = vld [vmem:[#allocation8 + $0x280] sm:$0xf]
    %v1582 = vld [vmem:[#allocation8 + $0x284] sm:$0xf]
    %v1583 = vld [vmem:[#allocation8 + $0x288] sm:$0xf]
    %v1584 = vld [vmem:[#allocation8 + $0x28c] sm:$0xf]
    %v1585 = vld [vmem:[#allocation8 + $0x290] sm:$0xf]
    %v1586 = vld [vmem:[#allocation8 + $0x294] sm:$0xf]
    %v1587 = vld [vmem:[#allocation8 + $0x298] sm:$0xf]
    %v1588 = vld [vmem:[#allocation8 + $0x29c] sm:$0xf]
    %v1589 = vld [vmem:[#allocation8 + $0x2a0] sm:$0xf]
    %v1590 = vld [vmem:[#allocation8 + $0x2a4] sm:$0xf]
    %v1591 = vld [vmem:[#allocation8 + $0x2a8] sm:$0xf]
    %v1592 = vld [vmem:[#allocation8 + $0x2ac] sm:$0xf]
    %v1593 = vld [vmem:[#allocation8 + $0x2b0] sm:$0xf]
    %v1594 = vld [vmem:[#allocation8 + $0x2b4] sm:$0xf]
    %v1595 = vld [vmem:[#allocation8 + $0x2b8] sm:$0xf]
    %v1596 = vld [vmem:[#allocation8 + $0x2bc] sm:$0xf]
    %v1597 = vld [vmem:[#allocation8 + $0x2c0] sm:$0xf]
    %v1598 = vld [vmem:[#allocation8 + $0x2c4] sm:$0xf]
    %v1599 = vld [vmem:[#allocation8 + $0x2c8] sm:$0xf]
    %v1600 = vld [vmem:[#allocation8 + $0x2cc] sm:$0xf]
    %v1601 = vld [vmem:[#allocation8 + $0x2d0] sm:$0xf]
    %v1602 = vld [vmem:[#allocation8 + $0x2d4] sm:$0xf]
    %v1603 = vld [vmem:[#allocation8 + $0x2d8] sm:$0xf]
    %v1604 = vld [vmem:[#allocation8 + $0x2dc] sm:$0xf]
    %v1605 = vld [vmem:[#allocation8 + $0x2e0] sm:$0xf]
    %v1606 = vld [vmem:[#allocation8 + $0x2e4] sm:$0xf]
    %v1607 = vld [vmem:[#allocation8 + $0x2e8] sm:$0xf]
    %v1608 = vld [vmem:[#allocation8 + $0x2ec] sm:$0xf]
    %v1609 = vld [vmem:[#allocation8 + $0x2f0] sm:$0xf]
    %v1610 = vld [vmem:[#allocation8 + $0x2f4] sm:$0xf]
    %v1611 = vld [vmem:[#allocation8 + $0x2f8] sm:$0xf]
    %v1612 = vld [vmem:[#allocation8 + $0x2fc] sm:$0xf]
    %v1613 = vld [vmem:[#allocation8 + $0x300] sm:$0xf]
    %v1614 = vld [vmem:[#allocation8 + $0x304] sm:$0xf]
    %v1615 = vld [vmem:[#allocation8 + $0x308] sm:$0xf]
    %v1616 = vld [vmem:[#allocation8 + $0x30c] sm:$0xf]
    %v1617 = vld [vmem:[#allocation8 + $0x310] sm:$0xf]
    %v1618 = vld [vmem:[#allocation8 + $0x314] sm:$0xf]
    %v1619 = vld [vmem:[#allocation8 + $0x318] sm:$0xf]
    %v1620 = vld [vmem:[#allocation8 + $0x31c] sm:$0xf]
    %v1621 = vld [vmem:[#allocation8 + $0x320] sm:$0xf]
    %v1622 = vld [vmem:[#allocation8 + $0x324] sm:$0xf]
    %v1623 = vld [vmem:[#allocation8 + $0x328] sm:$0xf]
    %v1624 = vld [vmem:[#allocation8 + $0x32c] sm:$0xf]
    %v1625 = vld [vmem:[#allocation8 + $0x330] sm:$0xf]
    %v1626 = vld [vmem:[#allocation8 + $0x334] sm:$0xf]
    %v1627 = vld [vmem:[#allocation8 + $0x338] sm:$0xf]
    %v1628 = vld [vmem:[#allocation8 + $0x33c] sm:$0xf]
    %v1629 = vld [vmem:[#allocation8 + $0x340] sm:$0xf]
    %v1630 = vld [vmem:[#allocation8 + $0x344] sm:$0xf]
    %v1631 = vld [vmem:[#allocation8 + $0x348] sm:$0xf]
    %v1632 = vld [vmem:[#allocation8 + $0x34c] sm:$0xf]
    %v1633 = vld [vmem:[#allocation8 + $0x350] sm:$0xf]
    %v1634 = vld [vmem:[#allocation8 + $0x354] sm:$0xf]
    %v1635 = vld [vmem:[#allocation8 + $0x358] sm:$0xf]
    %v1636 = vld [vmem:[#allocation8 + $0x35c] sm:$0xf]
    %v1637 = vld [vmem:[#allocation8 + $0x360] sm:$0xf]
    %v1638 = vld [vmem:[#allocation8 + $0x364] sm:$0xf]
    %v1639 = vld [vmem:[#allocation8 + $0x368] sm:$0xf]
    %v1640 = vld [vmem:[#allocation8 + $0x36c] sm:$0xf]
    %v1641 = vld [vmem:[#allocation8 + $0x370] sm:$0xf]
    %v1642 = vld [vmem:[#allocation8 + $0x374] sm:$0xf]
    %v1643 = vld [vmem:[#allocation8 + $0x378] sm:$0xf]
    %v1644 = vld [vmem:[#allocation8 + $0x37c] sm:$0xf]
    %v1645 = vld [vmem:[#allocation8 + $0x380] sm:$0xf]
    %v1646 = vld [vmem:[#allocation8 + $0x384] sm:$0xf]
    %v1647 = vld [vmem:[#allocation8 + $0x388] sm:$0xf]
    %v1648 = vld [vmem:[#allocation8 + $0x38c] sm:$0xf]
    %v1649 = vld [vmem:[#allocation8 + $0x390] sm:$0xf]
    %v1650 = vld [vmem:[#allocation8 + $0x394] sm:$0xf]
    %v1651 = vld [vmem:[#allocation8 + $0x398] sm:$0xf]
    %v1652 = vld [vmem:[#allocation8 + $0x39c] sm:$0xf]
    %v1653 = vld [vmem:[#allocation8 + $0x3a0] sm:$0xf]
    %v1654 = vld [vmem:[#allocation8 + $0x3a4] sm:$0xf]
    %v1655 = vld [vmem:[#allocation8 + $0x3a8] sm:$0xf]
    %v1656 = vld [vmem:[#allocation8 + $0x3ac] sm:$0xf]
    %v1657 = vld [vmem:[#allocation8 + $0x3b0] sm:$0xf]
    %v1658 = vld [vmem:[#allocation8 + $0x3b4] sm:$0xf]
    %v1659 = vld [vmem:[#allocation8 + $0x3b8] sm:$0xf]
    %v1660 = vld [vmem:[#allocation8 + $0x3bc] sm:$0xf]
    %v1661 = vld [vmem:[#allocation8 + $0x3c0] sm:$0xf]
    %v1662 = vld [vmem:[#allocation8 + $0x3c4] sm:$0xf]
    %v1663 = vld [vmem:[#allocation8 + $0x3c8] sm:$0xf]
    %v1664 = vld [vmem:[#allocation8 + $0x3cc] sm:$0xf]
    %v1665 = vld [vmem:[#allocation8 + $0x3d0] sm:$0xf]
    %v1666 = vld [vmem:[#allocation8 + $0x3d4] sm:$0xf]
    %v1667 = vld [vmem:[#allocation8 + $0x3d8] sm:$0xf]
    %v1668 = vld [vmem:[#allocation8 + $0x3dc] sm:$0xf]
    %v1669 = vld [vmem:[#allocation8 + $0x3e0] sm:$0xf]
    %v1670 = vld [vmem:[#allocation8 + $0x3e4] sm:$0xf]
    %v1671 = vld [vmem:[#allocation8 + $0x3e8] sm:$0xf]
    %v1672 = vld [vmem:[#allocation8 + $0x3ec] sm:$0xf]
    %v1673 = vld [vmem:[#allocation8 + $0x3f0] sm:$0xf]
    %v1674 = vld [vmem:[#allocation8 + $0x3f4] sm:$0xf]
    %v1675 = vld [vmem:[#allocation8 + $0x3f8] sm:$0xf]
    %v1676 = vld [vmem:[#allocation8 + $0x3fc] sm:$0xf]
    %v1677 = vld [vmem:[#allocation8 + $0x400] sm:$0xf]
    %v1678 = vld [vmem:[#allocation8 + $0x404] sm:$0xf]
    %v1679 = vld [vmem:[#allocation8 + $0x408] sm:$0xf]
    %v1680 = vld [vmem:[#allocation8 + $0x40c] sm:$0xf]
    %v1681 = vld [vmem:[#allocation8 + $0x410] sm:$0xf]
    %v1682 = vld [vmem:[#allocation8 + $0x414] sm:$0xf]
    %v1683 = vld [vmem:[#allocation8 + $0x418] sm:$0xf]
    %v1684 = vld [vmem:[#allocation8 + $0x41c] sm:$0xf]
    %v1685 = vld [vmem:[#allocation8 + $0x420] sm:$0xf]
    %v1686 = vld [vmem:[#allocation8 + $0x424] sm:$0xf]
    %v1687 = vld [vmem:[#allocation8 + $0x428] sm:$0xf]
    %v1688 = vld [vmem:[#allocation8 + $0x42c] sm:$0xf]
    %v1689 = vld [vmem:[#allocation8 + $0x430] sm:$0xf]
    %v1690 = vld [vmem:[#allocation8 + $0x434] sm:$0xf]
    %v1691 = vld [vmem:[#allocation8 + $0x438] sm:$0xf]
    %v1692 = vld [vmem:[#allocation8 + $0x43c] sm:$0xf]
    %v1693 = vld [vmem:[#allocation8 + $0x440] sm:$0xf]
    %v1694 = vld [vmem:[#allocation8 + $0x444] sm:$0xf]
    %v1695 = vld [vmem:[#allocation8 + $0x448] sm:$0xf]
    %v1696 = vld [vmem:[#allocation8 + $0x44c] sm:$0xf]
    %v1697 = vld [vmem:[#allocation8 + $0x450] sm:$0xf]
    %v1698 = vld [vmem:[#allocation8 + $0x454] sm:$0xf]
    %v1699 = vld [vmem:[#allocation8 + $0x458] sm:$0xf]
    %v1700 = vld [vmem:[#allocation8 + $0x45c] sm:$0xf]
    %v1701 = vld [vmem:[#allocation8 + $0x460] sm:$0xf]
    %v1702 = vld [vmem:[#allocation8 + $0x464] sm:$0xf]
    %v1703 = vld [vmem:[#allocation8 + $0x468] sm:$0xf]
    %v1704 = vld [vmem:[#allocation8 + $0x46c] sm:$0xf]
    %v1705 = vld [vmem:[#allocation8 + $0x470] sm:$0xf]
    %v1706 = vld [vmem:[#allocation8 + $0x474] sm:$0xf]
    %v1707 = vld [vmem:[#allocation8 + $0x478] sm:$0xf]
    %v1708 = vld [vmem:[#allocation8 + $0x47c] sm:$0xf]
    %v1709 = vld [vmem:[#allocation8 + $0x480] sm:$0xf]
    %v1710 = vld [vmem:[#allocation8 + $0x484] sm:$0xf]
    %v1711 = vld [vmem:[#allocation8 + $0x488] sm:$0xf]
    %v1712 = vld [vmem:[#allocation8 + $0x48c] sm:$0xf]
    %v1713 = vld [vmem:[#allocation8 + $0x490] sm:$0xf]
    %v1714 = vld [vmem:[#allocation8 + $0x494] sm:$0xf]
    %v1715 = vld [vmem:[#allocation8 + $0x498] sm:$0xf]
    %v1716 = vld [vmem:[#allocation8 + $0x49c] sm:$0xf]
    %v1717 = vld [vmem:[#allocation8 + $0x4a0] sm:$0xf]
    %v1718 = vld [vmem:[#allocation8 + $0x4a4] sm:$0xf]
    %v1719 = vld [vmem:[#allocation8 + $0x4a8] sm:$0xf]
    %v1720 = vld [vmem:[#allocation8 + $0x4ac] sm:$0xf]
    %v1721 = vld [vmem:[#allocation8 + $0x4b0] sm:$0xf]
    %v1722 = vld [vmem:[#allocation8 + $0x4b4] sm:$0xf]
    %v1723 = vld [vmem:[#allocation8 + $0x4b8] sm:$0xf]
    %v1724 = vld [vmem:[#allocation8 + $0x4bc] sm:$0xf]
    %v1725 = vld [vmem:[#allocation8 + $0x4c0] sm:$0xf]
    %v1726 = vld [vmem:[#allocation8 + $0x4c4] sm:$0xf]
    %v1727 = vld [vmem:[#allocation8 + $0x4c8] sm:$0xf]
    %v1728 = vld [vmem:[#allocation8 + $0x4cc] sm:$0xf]
    %v1729 = vld [vmem:[#allocation8 + $0x4d0] sm:$0xf]
    %v1730 = vld [vmem:[#allocation8 + $0x4d4] sm:$0xf]
    %v1731 = vld [vmem:[#allocation8 + $0x4d8] sm:$0xf]
    %v1732 = vld [vmem:[#allocation8 + $0x4dc] sm:$0xf]
    %v1733 = vld [vmem:[#allocation8 + $0x4e0] sm:$0xf]
    %v1734 = vld [vmem:[#allocation8 + $0x4e4] sm:$0xf]
    %v1735 = vld [vmem:[#allocation8 + $0x4e8] sm:$0xf]
    %v1736 = vld [vmem:[#allocation8 + $0x4ec] sm:$0xf]
    %v1737 = vld [vmem:[#allocation8 + $0x4f0] sm:$0xf]
    %v1738 = vld [vmem:[#allocation8 + $0x4f4] sm:$0xf]
    %v1739 = vld [vmem:[#allocation8 + $0x4f8] sm:$0xf]
    %v1740 = vld [vmem:[#allocation8 + $0x4fc] sm:$0xf]
    %v1741 = vld [vmem:[#allocation8 + $0x500] sm:$0xf]
    %v1742 = vld [vmem:[#allocation8 + $0x504] sm:$0xf]
    %v1743 = vld [vmem:[#allocation8 + $0x508] sm:$0xf]
    %v1744 = vld [vmem:[#allocation8 + $0x50c] sm:$0xf]
    %v1745 = vld [vmem:[#allocation8 + $0x510] sm:$0xf]
    %v1746 = vld [vmem:[#allocation8 + $0x514] sm:$0xf]
    %v1747 = vld [vmem:[#allocation8 + $0x518] sm:$0xf]
    %v1748 = vld [vmem:[#allocation8 + $0x51c] sm:$0xf]
    %v1749 = vld [vmem:[#allocation8 + $0x520] sm:$0xf]
    %v1750 = vld [vmem:[#allocation8 + $0x524] sm:$0xf]
    %v1751 = vld [vmem:[#allocation8 + $0x528] sm:$0xf]
    %v1752 = vld [vmem:[#allocation8 + $0x52c] sm:$0xf]
    %v1753 = vld [vmem:[#allocation8 + $0x530] sm:$0xf]
    %v1754 = vld [vmem:[#allocation8 + $0x534] sm:$0xf]
    %v1755 = vld [vmem:[#allocation8 + $0x538] sm:$0xf]
    %v1756 = vld [vmem:[#allocation8 + $0x53c] sm:$0xf]
    %v1757 = vld [vmem:[#allocation8 + $0x540] sm:$0xf]
    %v1758 = vld [vmem:[#allocation8 + $0x544] sm:$0xf]
    %v1759 = vld [vmem:[#allocation8 + $0x548] sm:$0xf]
    %v1760 = vld [vmem:[#allocation8 + $0x54c] sm:$0xf]
    %v1761 = vld [vmem:[#allocation8 + $0x550] sm:$0xf]
    %v1762 = vld [vmem:[#allocation8 + $0x554] sm:$0xf]
    %v1763 = vld [vmem:[#allocation8 + $0x558] sm:$0xf]
    %v1764 = vld [vmem:[#allocation8 + $0x55c] sm:$0xf]
    %v1765 = vld [vmem:[#allocation8 + $0x560] sm:$0xf]
    %v1766 = vld [vmem:[#allocation8 + $0x564] sm:$0xf]
    %v1767 = vld [vmem:[#allocation8 + $0x568] sm:$0xf]
    %v1768 = vld [vmem:[#allocation8 + $0x56c] sm:$0xf]
    %v1769 = vld [vmem:[#allocation8 + $0x570] sm:$0xf]
    %v1770 = vld [vmem:[#allocation8 + $0x574] sm:$0xf]
    %v1771 = vld [vmem:[#allocation8 + $0x578] sm:$0xf]
    %v1772 = vld [vmem:[#allocation8 + $0x57c] sm:$0xf]
    %v1773 = vld [vmem:[#allocation8 + $0x580] sm:$0xf]
    %v1774 = vld [vmem:[#allocation8 + $0x584] sm:$0xf]
    %v1775 = vld [vmem:[#allocation8 + $0x588] sm:$0xf]
    %v1776 = vld [vmem:[#allocation8 + $0x58c] sm:$0xf]
    %v1777 = vld [vmem:[#allocation8 + $0x590] sm:$0xf]
    %v1778 = vld [vmem:[#allocation8 + $0x594] sm:$0xf]
    %v1779 = vld [vmem:[#allocation8 + $0x598] sm:$0xf]
    %v1780 = vld [vmem:[#allocation8 + $0x59c] sm:$0xf]
    %v1781 = vld [vmem:[#allocation8 + $0x5a0] sm:$0xf]
    %v1782 = vld [vmem:[#allocation8 + $0x5a4] sm:$0xf]
    %v1783 = vld [vmem:[#allocation8 + $0x5a8] sm:$0xf]
    %v1784 = vld [vmem:[#allocation8 + $0x5ac] sm:$0xf]
    %v1785 = vld [vmem:[#allocation8 + $0x5b0] sm:$0xf]
    %v1786 = vld [vmem:[#allocation8 + $0x5b4] sm:$0xf]
    %v1787 = vld [vmem:[#allocation8 + $0x5b8] sm:$0xf]
    %v1788 = vld [vmem:[#allocation8 + $0x5bc] sm:$0xf]
    %v1789 = vld [vmem:[#allocation8 + $0x5c0] sm:$0xf]
    %v1790 = vld [vmem:[#allocation8 + $0x5c4] sm:$0xf]
    %v1791 = vld [vmem:[#allocation8 + $0x5c8] sm:$0xf]
    %v1792 = vld [vmem:[#allocation8 + $0x5cc] sm:$0xf]
    %v1793 = vld [vmem:[#allocation8 + $0x5d0] sm:$0xf]
    %v1794 = vld [vmem:[#allocation8 + $0x5d4] sm:$0xf]
    %v1795 = vld [vmem:[#allocation8 + $0x5d8] sm:$0xf]
    %v1796 = vld [vmem:[#allocation8 + $0x5dc] sm:$0xf]
    %v1797 = vld [vmem:[#allocation8 + $0x5e0] sm:$0xf]
    %v1798 = vld [vmem:[#allocation8 + $0x5e4] sm:$0xf]
    %v1799 = vld [vmem:[#allocation8 + $0x5e8] sm:$0xf]
    %v1800 = vld [vmem:[#allocation8 + $0x5ec] sm:$0xf]
    %v1801 = vld [vmem:[#allocation8 + $0x5f0] sm:$0xf]
    %v1802 = vld [vmem:[#allocation8 + $0x5f4] sm:$0xf]
    %v1803 = vld [vmem:[#allocation8 + $0x5f8] sm:$0xf]
    %v1804 = vld [vmem:[#allocation8 + $0x5fc] sm:$0xf]
    %v1805 = vld [vmem:[#allocation8 + $0x600] sm:$0xf]
    %v1806 = vld [vmem:[#allocation8 + $0x604] sm:$0xf]
    %v1807 = vld [vmem:[#allocation8 + $0x608] sm:$0xf]
    %v1808 = vld [vmem:[#allocation8 + $0x60c] sm:$0xf]
    %v1809 = vld [vmem:[#allocation8 + $0x610] sm:$0xf]
    %v1810 = vld [vmem:[#allocation8 + $0x614] sm:$0xf]
    %v1811 = vld [vmem:[#allocation8 + $0x618] sm:$0xf]
    %v1812 = vld [vmem:[#allocation8 + $0x61c] sm:$0xf]
    %v1813 = vld [vmem:[#allocation8 + $0x620] sm:$0xf]
    %v1814 = vld [vmem:[#allocation8 + $0x624] sm:$0xf]
    %v1815 = vld [vmem:[#allocation8 + $0x628] sm:$0xf]
    %v1816 = vld [vmem:[#allocation8 + $0x62c] sm:$0xf]
    %v1817 = vld [vmem:[#allocation8 + $0x630] sm:$0xf]
    %v1818 = vld [vmem:[#allocation8 + $0x634] sm:$0xf]
    %v1819 = vld [vmem:[#allocation8 + $0x638] sm:$0xf]
    %v1820 = vld [vmem:[#allocation8 + $0x63c] sm:$0xf]
    %v1821 = vld [vmem:[#allocation8 + $0x640] sm:$0xf]
    %v1822 = vld [vmem:[#allocation8 + $0x644] sm:$0xf]
    %v1823 = vld [vmem:[#allocation8 + $0x648] sm:$0xf]
    %v1824 = vld [vmem:[#allocation8 + $0x64c] sm:$0xf]
    %v1825 = vld [vmem:[#allocation8 + $0x650] sm:$0xf]
    %v1826 = vld [vmem:[#allocation8 + $0x654] sm:$0xf]
    %v1827 = vld [vmem:[#allocation8 + $0x658] sm:$0xf]
    %v1828 = vld [vmem:[#allocation8 + $0x65c] sm:$0xf]
    %v1829 = vld [vmem:[#allocation8 + $0x660] sm:$0xf]
    %v1830 = vld [vmem:[#allocation8 + $0x664] sm:$0xf]
    %v1831 = vld [vmem:[#allocation8 + $0x668] sm:$0xf]
    %v1832 = vld [vmem:[#allocation8 + $0x66c] sm:$0xf]
    %v1833 = vld [vmem:[#allocation8 + $0x670] sm:$0xf]
    %v1834 = vld [vmem:[#allocation8 + $0x674] sm:$0xf]
    %v1835 = vld [vmem:[#allocation8 + $0x678] sm:$0xf]
    %v1836 = vld [vmem:[#allocation8 + $0x67c] sm:$0xf]
    %v1837 = vunpack.c.l.bf16 %v1421
    %v1838 = vunpack.c.l.bf16 %v1422
    %v1839 = vunpack.c.l.bf16 %v1423
    %v1840 = vunpack.c.l.bf16 %v1424
    %v1841 = vunpack.c.l.bf16 %v1425
    %v1842 = vunpack.c.l.bf16 %v1426
    %v1843 = vunpack.c.l.bf16 %v1427
    %v1844 = vunpack.c.l.bf16 %v1428
    %v1845 = vunpack.c.l.bf16 %v1429
    %v1846 = vunpack.c.l.bf16 %v1430
    %v1847 = vunpack.c.l.bf16 %v1431
    %v1848 = vunpack.c.l.bf16 %v1432
    %v1849 = vunpack.c.l.bf16 %v1433
    %v1850 = vunpack.c.l.bf16 %v1434
    %v1851 = vunpack.c.l.bf16 %v1435
    %v1852 = vunpack.c.l.bf16 %v1436
    %v1853 = vunpack.c.l.bf16 %v1437
    %v1854 = vunpack.c.l.bf16 %v1438
    %v1855 = vunpack.c.l.bf16 %v1439
    %v1856 = vunpack.c.l.bf16 %v1440
    %v1857 = vunpack.c.l.bf16 %v1441
    %v1858 = vunpack.c.l.bf16 %v1442
    %v1859 = vunpack.c.l.bf16 %v1443
    %v1860 = vunpack.c.l.bf16 %v1444
    %v1861 = vunpack.c.l.bf16 %v1445
    %v1862 = vunpack.c.l.bf16 %v1446
    %v1863 = vunpack.c.l.bf16 %v1447
    %v1864 = vunpack.c.l.bf16 %v1448
    %v1865 = vunpack.c.l.bf16 %v1449
    %v1866 = vunpack.c.l.bf16 %v1450
    %v1867 = vunpack.c.l.bf16 %v1451
    %v1868 = vunpack.c.l.bf16 %v1452
    %v1869 = vunpack.c.l.bf16 %v1453
    %v1870 = vunpack.c.l.bf16 %v1454
    %v1871 = vunpack.c.l.bf16 %v1455
    %v1872 = vunpack.c.l.bf16 %v1456
    %v1873 = vunpack.c.l.bf16 %v1457
    %v1874 = vunpack.c.l.bf16 %v1458
    %v1875 = vunpack.c.l.bf16 %v1459
    %v1876 = vunpack.c.l.bf16 %v1460
    %v1877 = vunpack.c.l.bf16 %v1461
    %v1878 = vunpack.c.l.bf16 %v1462
    %v1879 = vunpack.c.l.bf16 %v1463
    %v1880 = vunpack.c.l.bf16 %v1464
    %v1881 = vunpack.c.l.bf16 %v1465
    %v1882 = vunpack.c.l.bf16 %v1466
    %v1883 = vunpack.c.l.bf16 %v1467
    %v1884 = vunpack.c.l.bf16 %v1468
    %v1885 = vunpack.c.l.bf16 %v1469
    %v1886 = vunpack.c.l.bf16 %v1470
    %v1887 = vunpack.c.l.bf16 %v1471
    %v1888 = vunpack.c.l.bf16 %v1472
    %v1889 = vunpack.c.l.bf16 %v1473
    %v1890 = vunpack.c.l.bf16 %v1474
    %v1891 = vunpack.c.l.bf16 %v1475
    %v1892 = vunpack.c.l.bf16 %v1476
    %v1893 = vunpack.c.l.bf16 %v1477
    %v1894 = vunpack.c.l.bf16 %v1478
    %v1895 = vunpack.c.l.bf16 %v1479
    %v1896 = vunpack.c.l.bf16 %v1480
    %v1897 = vunpack.c.l.bf16 %v1481
    %v1898 = vunpack.c.l.bf16 %v1482
    %v1899 = vunpack.c.l.bf16 %v1483
    %v1900 = vunpack.c.l.bf16 %v1484
    %v1901 = vunpack.c.l.bf16 %v1485
    %v1902 = vunpack.c.l.bf16 %v1486
    %v1903 = vunpack.c.l.bf16 %v1487
    %v1904 = vunpack.c.l.bf16 %v1488
    %v1905 = vunpack.c.l.bf16 %v1489
    %v1906 = vunpack.c.l.bf16 %v1490
    %v1907 = vunpack.c.l.bf16 %v1491
    %v1908 = vunpack.c.l.bf16 %v1492
    %v1909 = vunpack.c.l.bf16 %v1493
    %v1910 = vunpack.c.l.bf16 %v1494
    %v1911 = vunpack.c.l.bf16 %v1495
    %v1912 = vunpack.c.l.bf16 %v1496
    %v1913 = vunpack.c.l.bf16 %v1497
    %v1914 = vunpack.c.l.bf16 %v1498
    %v1915 = vunpack.c.l.bf16 %v1499
    %v1916 = vunpack.c.l.bf16 %v1500
    %v1917 = vunpack.c.l.bf16 %v1501
    %v1918 = vunpack.c.l.bf16 %v1502
    %v1919 = vunpack.c.l.bf16 %v1503
    %v1920 = vunpack.c.l.bf16 %v1504
    %v1921 = vunpack.c.l.bf16 %v1505
    %v1922 = vunpack.c.l.bf16 %v1506
    %v1923 = vunpack.c.l.bf16 %v1507
    %v1924 = vunpack.c.l.bf16 %v1508
    %v1925 = vunpack.c.l.bf16 %v1509
    %v1926 = vunpack.c.l.bf16 %v1510
    %v1927 = vunpack.c.l.bf16 %v1511
    %v1928 = vunpack.c.l.bf16 %v1512
    %v1929 = vunpack.c.l.bf16 %v1513
    %v1930 = vunpack.c.l.bf16 %v1514
    %v1931 = vunpack.c.l.bf16 %v1515
    %v1932 = vunpack.c.l.bf16 %v1516
    %v1933 = vunpack.c.l.bf16 %v1517
    %v1934 = vunpack.c.l.bf16 %v1518
    %v1935 = vunpack.c.l.bf16 %v1519
    %v1936 = vunpack.c.l.bf16 %v1520
    %v1937 = vunpack.c.l.bf16 %v1521
    %v1938 = vunpack.c.l.bf16 %v1522
    %v1939 = vunpack.c.l.bf16 %v1523
    %v1940 = vunpack.c.l.bf16 %v1524
    %v1941 = vunpack.c.l.bf16 %v1525
    %v1942 = vunpack.c.l.bf16 %v1526
    %v1943 = vunpack.c.l.bf16 %v1527
    %v1944 = vunpack.c.l.bf16 %v1528
    %v1945 = vunpack.c.l.bf16 %v1529
    %v1946 = vunpack.c.l.bf16 %v1530
    %v1947 = vunpack.c.l.bf16 %v1531
    %v1948 = vunpack.c.l.bf16 %v1532
    %v1949 = vunpack.c.l.bf16 %v1533
    %v1950 = vunpack.c.l.bf16 %v1534
    %v1951 = vunpack.c.l.bf16 %v1535
    %v1952 = vunpack.c.l.bf16 %v1536
    %v1953 = vunpack.c.l.bf16 %v1537
    %v1954 = vunpack.c.l.bf16 %v1538
    %v1955 = vunpack.c.l.bf16 %v1539
    %v1956 = vunpack.c.l.bf16 %v1540
    %v1957 = vunpack.c.l.bf16 %v1541
    %v1958 = vunpack.c.l.bf16 %v1542
    %v1959 = vunpack.c.l.bf16 %v1543
    %v1960 = vunpack.c.l.bf16 %v1544
    %v1961 = vunpack.c.l.bf16 %v1545
    %v1962 = vunpack.c.l.bf16 %v1546
    %v1963 = vunpack.c.l.bf16 %v1547
    %v1964 = vunpack.c.l.bf16 %v1548
    %v1965 = vunpack.c.l.bf16 %v1549
    %v1966 = vunpack.c.l.bf16 %v1550
    %v1967 = vunpack.c.l.bf16 %v1551
    %v1968 = vunpack.c.l.bf16 %v1552
    %v1969 = vunpack.c.l.bf16 %v1553
    %v1970 = vunpack.c.l.bf16 %v1554
    %v1971 = vunpack.c.l.bf16 %v1555
    %v1972 = vunpack.c.l.bf16 %v1556
    %v1973 = vunpack.c.l.bf16 %v1557
    %v1974 = vunpack.c.l.bf16 %v1558
    %v1975 = vunpack.c.l.bf16 %v1559
    %v1976 = vunpack.c.l.bf16 %v1560
    %v1977 = vunpack.c.l.bf16 %v1561
    %v1978 = vunpack.c.l.bf16 %v1562
    %v1979 = vunpack.c.l.bf16 %v1563
    %v1980 = vunpack.c.l.bf16 %v1564
    %v1981 = vunpack.c.l.bf16 %v1565
    %v1982 = vunpack.c.l.bf16 %v1566
    %v1983 = vunpack.c.l.bf16 %v1567
    %v1984 = vunpack.c.l.bf16 %v1568
    %v1985 = vunpack.c.l.bf16 %v1569
    %v1986 = vunpack.c.l.bf16 %v1570
    %v1987 = vunpack.c.l.bf16 %v1571
    %v1988 = vunpack.c.l.bf16 %v1572
    %v1989 = vunpack.c.l.bf16 %v1573
    %v1990 = vunpack.c.l.bf16 %v1574
    %v1991 = vunpack.c.l.bf16 %v1575
    %v1992 = vunpack.c.l.bf16 %v1576
    %v1993 = vunpack.c.l.bf16 %v1577
    %v1994 = vunpack.c.l.bf16 %v1578
    %v1995 = vunpack.c.l.bf16 %v1579
    %v1996 = vunpack.c.l.bf16 %v1580
    %v1997 = vunpack.c.l.bf16 %v1581
    %v1998 = vunpack.c.l.bf16 %v1582
    %v1999 = vunpack.c.l.bf16 %v1583
    %v2000 = vunpack.c.l.bf16 %v1584
    %v2001 = vunpack.c.l.bf16 %v1585
    %v2002 = vunpack.c.l.bf16 %v1586
    %v2003 = vunpack.c.l.bf16 %v1587
    %v2004 = vunpack.c.l.bf16 %v1588
    %v2005 = vunpack.c.l.bf16 %v1589
    %v2006 = vunpack.c.l.bf16 %v1590
    %v2007 = vunpack.c.l.bf16 %v1591
    %v2008 = vunpack.c.l.bf16 %v1592
    %v2009 = vunpack.c.l.bf16 %v1593
    %v2010 = vunpack.c.l.bf16 %v1594
    %v2011 = vunpack.c.l.bf16 %v1595
    %v2012 = vunpack.c.l.bf16 %v1596
    %v2013 = vunpack.c.l.bf16 %v1597
    %v2014 = vunpack.c.l.bf16 %v1598
    %v2015 = vunpack.c.l.bf16 %v1599
    %v2016 = vunpack.c.l.bf16 %v1600
    %v2017 = vunpack.c.l.bf16 %v1601
    %v2018 = vunpack.c.l.bf16 %v1602
    %v2019 = vunpack.c.l.bf16 %v1603
    %v2020 = vunpack.c.l.bf16 %v1604
    %v2021 = vunpack.c.l.bf16 %v1605
    %v2022 = vunpack.c.l.bf16 %v1606
    %v2023 = vunpack.c.l.bf16 %v1607
    %v2024 = vunpack.c.l.bf16 %v1608
    %v2025 = vunpack.c.l.bf16 %v1609
    %v2026 = vunpack.c.l.bf16 %v1610
    %v2027 = vunpack.c.l.bf16 %v1611
    %v2028 = vunpack.c.l.bf16 %v1612
    %v2029 = vunpack.c.l.bf16 %v1613
    %v2030 = vunpack.c.l.bf16 %v1614
    %v2031 = vunpack.c.l.bf16 %v1615
    %v2032 = vunpack.c.l.bf16 %v1616
    %v2033 = vunpack.c.l.bf16 %v1617
    %v2034 = vunpack.c.l.bf16 %v1618
    %v2035 = vunpack.c.l.bf16 %v1619
    %v2036 = vunpack.c.l.bf16 %v1620
    %v2037 = vunpack.c.l.bf16 %v1621
    %v2038 = vunpack.c.l.bf16 %v1622
    %v2039 = vunpack.c.l.bf16 %v1623
    %v2040 = vunpack.c.l.bf16 %v1624
    %v2041 = vunpack.c.l.bf16 %v1625
    %v2042 = vunpack.c.l.bf16 %v1626
    %v2043 = vunpack.c.l.bf16 %v1627
    %v2044 = vunpack.c.l.bf16 %v1628
    %v2045 = vunpack.c.l.bf16 %v1629
    %v2046 = vunpack.c.l.bf16 %v1630
    %v2047 = vunpack.c.l.bf16 %v1631
    %v2048 = vunpack.c.l.bf16 %v1632
    %v2049 = vunpack.c.l.bf16 %v1633
    %v2050 = vunpack.c.l.bf16 %v1634
    %v2051 = vunpack.c.l.bf16 %v1635
    %v2052 = vunpack.c.l.bf16 %v1636
    %v2053 = vunpack.c.l.bf16 %v1637
    %v2054 = vunpack.c.l.bf16 %v1638
    %v2055 = vunpack.c.l.bf16 %v1639
    %v2056 = vunpack.c.l.bf16 %v1640
    %v2057 = vunpack.c.l.bf16 %v1641
    %v2058 = vunpack.c.l.bf16 %v1642
    %v2059 = vunpack.c.l.bf16 %v1643
    %v2060 = vunpack.c.l.bf16 %v1644
    %v2061 = vunpack.c.l.bf16 %v1645
    %v2062 = vunpack.c.l.bf16 %v1646
    %v2063 = vunpack.c.l.bf16 %v1647
    %v2064 = vunpack.c.l.bf16 %v1648
    %v2065 = vunpack.c.l.bf16 %v1649
    %v2066 = vunpack.c.l.bf16 %v1650
    %v2067 = vunpack.c.l.bf16 %v1651
    %v2068 = vunpack.c.l.bf16 %v1652
    %v2069 = vunpack.c.l.bf16 %v1653
    %v2070 = vunpack.c.l.bf16 %v1654
    %v2071 = vunpack.c.l.bf16 %v1655
    %v2072 = vunpack.c.l.bf16 %v1656
    %v2073 = vunpack.c.l.bf16 %v1657
    %v2074 = vunpack.c.l.bf16 %v1658
    %v2075 = vunpack.c.l.bf16 %v1659
    %v2076 = vunpack.c.l.bf16 %v1660
    %v2077 = vunpack.c.l.bf16 %v1661
    %v2078 = vunpack.c.l.bf16 %v1662
    %v2079 = vunpack.c.l.bf16 %v1663
    %v2080 = vunpack.c.l.bf16 %v1664
    %v2081 = vunpack.c.l.bf16 %v1665
    %v2082 = vunpack.c.l.bf16 %v1666
    %v2083 = vunpack.c.l.bf16 %v1667
    %v2084 = vunpack.c.l.bf16 %v1668
    %v2085 = vunpack.c.l.bf16 %v1669
    %v2086 = vunpack.c.l.bf16 %v1670
    %v2087 = vunpack.c.l.bf16 %v1671
    %v2088 = vunpack.c.l.bf16 %v1672
    %v2089 = vunpack.c.l.bf16 %v1673
    %v2090 = vunpack.c.l.bf16 %v1674
    %v2091 = vunpack.c.l.bf16 %v1675
    %v2092 = vunpack.c.l.bf16 %v1676
    %v2093 = vunpack.c.l.bf16 %v1677
    %v2094 = vunpack.c.l.bf16 %v1678
    %v2095 = vunpack.c.l.bf16 %v1679
    %v2096 = vunpack.c.l.bf16 %v1680
    %v2097 = vunpack.c.l.bf16 %v1681
    %v2098 = vunpack.c.l.bf16 %v1682
    %v2099 = vunpack.c.l.bf16 %v1683
    %v2100 = vunpack.c.l.bf16 %v1684
    %v2101 = vunpack.c.l.bf16 %v1685
    %v2102 = vunpack.c.l.bf16 %v1686
    %v2103 = vunpack.c.l.bf16 %v1687
    %v2104 = vunpack.c.l.bf16 %v1688
    %v2105 = vunpack.c.l.bf16 %v1689
    %v2106 = vunpack.c.l.bf16 %v1690
    %v2107 = vunpack.c.l.bf16 %v1691
    %v2108 = vunpack.c.l.bf16 %v1692
    %v2109 = vunpack.c.l.bf16 %v1693
    %v2110 = vunpack.c.l.bf16 %v1694
    %v2111 = vunpack.c.l.bf16 %v1695
    %v2112 = vunpack.c.l.bf16 %v1696
    %v2113 = vunpack.c.l.bf16 %v1697
    %v2114 = vunpack.c.l.bf16 %v1698
    %v2115 = vunpack.c.l.bf16 %v1699
    %v2116 = vunpack.c.l.bf16 %v1700
    %v2117 = vunpack.c.l.bf16 %v1701
    %v2118 = vunpack.c.l.bf16 %v1702
    %v2119 = vunpack.c.l.bf16 %v1703
    %v2120 = vunpack.c.l.bf16 %v1704
    %v2121 = vunpack.c.l.bf16 %v1705
    %v2122 = vunpack.c.l.bf16 %v1706
    %v2123 = vunpack.c.l.bf16 %v1707
    %v2124 = vunpack.c.l.bf16 %v1708
    %v2125 = vunpack.c.l.bf16 %v1709
    %v2126 = vunpack.c.l.bf16 %v1710
    %v2127 = vunpack.c.l.bf16 %v1711
    %v2128 = vunpack.c.l.bf16 %v1712
    %v2129 = vunpack.c.l.bf16 %v1713
    %v2130 = vunpack.c.l.bf16 %v1714
    %v2131 = vunpack.c.l.bf16 %v1715
    %v2132 = vunpack.c.l.bf16 %v1716
    %v2133 = vunpack.c.l.bf16 %v1717
    %v2134 = vunpack.c.l.bf16 %v1718
    %v2135 = vunpack.c.l.bf16 %v1719
    %v2136 = vunpack.c.l.bf16 %v1720
    %v2137 = vunpack.c.l.bf16 %v1721
    %v2138 = vunpack.c.l.bf16 %v1722
    %v2139 = vunpack.c.l.bf16 %v1723
    %v2140 = vunpack.c.l.bf16 %v1724
    %v2141 = vunpack.c.l.bf16 %v1725
    %v2142 = vunpack.c.l.bf16 %v1726
    %v2143 = vunpack.c.l.bf16 %v1727
    %v2144 = vunpack.c.l.bf16 %v1728
    %v2145 = vunpack.c.l.bf16 %v1729
    %v2146 = vunpack.c.l.bf16 %v1730
    %v2147 = vunpack.c.l.bf16 %v1731
    %v2148 = vunpack.c.l.bf16 %v1732
    %v2149 = vunpack.c.l.bf16 %v1733
    %v2150 = vunpack.c.l.bf16 %v1734
    %v2151 = vunpack.c.l.bf16 %v1735
    %v2152 = vunpack.c.l.bf16 %v1736
    %v2153 = vunpack.c.l.bf16 %v1737
    %v2154 = vunpack.c.l.bf16 %v1738
    %v2155 = vunpack.c.l.bf16 %v1739
    %v2156 = vunpack.c.l.bf16 %v1740
    %v2157 = vunpack.c.l.bf16 %v1741
    %v2158 = vunpack.c.l.bf16 %v1742
    %v2159 = vunpack.c.l.bf16 %v1743
    %v2160 = vunpack.c.l.bf16 %v1744
    %v2161 = vunpack.c.l.bf16 %v1745
    %v2162 = vunpack.c.l.bf16 %v1746
    %v2163 = vunpack.c.l.bf16 %v1747
    %v2164 = vunpack.c.l.bf16 %v1748
    %v2165 = vunpack.c.l.bf16 %v1749
    %v2166 = vunpack.c.l.bf16 %v1750
    %v2167 = vunpack.c.l.bf16 %v1751
    %v2168 = vunpack.c.l.bf16 %v1752
    %v2169 = vunpack.c.l.bf16 %v1753
    %v2170 = vunpack.c.l.bf16 %v1754
    %v2171 = vunpack.c.l.bf16 %v1755
    %v2172 = vunpack.c.l.bf16 %v1756
    %v2173 = vunpack.c.l.bf16 %v1757
    %v2174 = vunpack.c.l.bf16 %v1758
    %v2175 = vunpack.c.l.bf16 %v1759
    %v2176 = vunpack.c.l.bf16 %v1760
    %v2177 = vunpack.c.l.bf16 %v1761
    %v2178 = vunpack.c.l.bf16 %v1762
    %v2179 = vunpack.c.l.bf16 %v1763
    %v2180 = vunpack.c.l.bf16 %v1764
    %v2181 = vunpack.c.l.bf16 %v1765
    %v2182 = vunpack.c.l.bf16 %v1766
    %v2183 = vunpack.c.l.bf16 %v1767
    %v2184 = vunpack.c.l.bf16 %v1768
    %v2185 = vunpack.c.l.bf16 %v1769
    %v2186 = vunpack.c.l.bf16 %v1770
    %v2187 = vunpack.c.l.bf16 %v1771
    %v2188 = vunpack.c.l.bf16 %v1772
    %v2189 = vunpack.c.l.bf16 %v1773
    %v2190 = vunpack.c.l.bf16 %v1774
    %v2191 = vunpack.c.l.bf16 %v1775
    %v2192 = vunpack.c.l.bf16 %v1776
    %v2193 = vunpack.c.l.bf16 %v1777
    %v2194 = vunpack.c.l.bf16 %v1778
    %v2195 = vunpack.c.l.bf16 %v1779
    %v2196 = vunpack.c.l.bf16 %v1780
    %v2197 = vunpack.c.l.bf16 %v1781
    %v2198 = vunpack.c.l.bf16 %v1782
    %v2199 = vunpack.c.l.bf16 %v1783
    %v2200 = vunpack.c.l.bf16 %v1784
    %v2201 = vunpack.c.l.bf16 %v1785
    %v2202 = vunpack.c.l.bf16 %v1786
    %v2203 = vunpack.c.l.bf16 %v1787
    %v2204 = vunpack.c.l.bf16 %v1788
    %v2205 = vunpack.c.l.bf16 %v1789
    %v2206 = vunpack.c.l.bf16 %v1790
    %v2207 = vunpack.c.l.bf16 %v1791
    %v2208 = vunpack.c.l.bf16 %v1792
    %v2209 = vunpack.c.l.bf16 %v1793
    %v2210 = vunpack.c.l.bf16 %v1794
    %v2211 = vunpack.c.l.bf16 %v1795
    %v2212 = vunpack.c.l.bf16 %v1796
    %v2213 = vunpack.c.l.bf16 %v1797
    %v2214 = vunpack.c.l.bf16 %v1798
    %v2215 = vunpack.c.l.bf16 %v1799
    %v2216 = vunpack.c.l.bf16 %v1800
    %v2217 = vunpack.c.l.bf16 %v1801
    %v2218 = vunpack.c.l.bf16 %v1802
    %v2219 = vunpack.c.l.bf16 %v1803
    %v2220 = vunpack.c.l.bf16 %v1804
    %v2221 = vunpack.c.l.bf16 %v1805
    %v2222 = vunpack.c.l.bf16 %v1806
    %v2223 = vunpack.c.l.bf16 %v1807
    %v2224 = vunpack.c.l.bf16 %v1808
    %v2225 = vunpack.c.l.bf16 %v1809
    %v2226 = vunpack.c.l.bf16 %v1810
    %v2227 = vunpack.c.l.bf16 %v1811
    %v2228 = vunpack.c.l.bf16 %v1812
    %v2229 = vunpack.c.l.bf16 %v1813
    %v2230 = vunpack.c.l.bf16 %v1814
    %v2231 = vunpack.c.l.bf16 %v1815
    %v2232 = vunpack.c.l.bf16 %v1816
    %v2233 = vunpack.c.l.bf16 %v1817
    %v2234 = vunpack.c.l.bf16 %v1818
    %v2235 = vunpack.c.l.bf16 %v1819
    %v2236 = vunpack.c.l.bf16 %v1820
    %v2237 = vunpack.c.l.bf16 %v1821
    %v2238 = vunpack.c.l.bf16 %v1822
    %v2239 = vunpack.c.l.bf16 %v1823
    %v2240 = vunpack.c.l.bf16 %v1824
    %v2241 = vunpack.c.l.bf16 %v1825
    %v2242 = vunpack.c.l.bf16 %v1826
    %v2243 = vunpack.c.l.bf16 %v1827
    %v2244 = vunpack.c.l.bf16 %v1828
    %v2245 = vunpack.c.l.bf16 %v1829
    %v2246 = vunpack.c.l.bf16 %v1830
    %v2247 = vunpack.c.l.bf16 %v1831
    %v2248 = vunpack.c.l.bf16 %v1832
    %v2249 = vunpack.c.l.bf16 %v1833
    %v2250 = vunpack.c.l.bf16 %v1834
    %v2251 = vunpack.c.l.bf16 %v1835
    %v2252 = vunpack.c.l.bf16 %v1836
    %v2253 = vld [vmem:[%s4] sm:$0x1]
    %v2255 = vlaneseq
    %v2256 = vshrl.u32 %v2255, 7
    %v2257 = vsub.s32 0, %v2256
    %v2258 = vrot.slane %v2253, %v2257
    %2260 = vmatprep.subr.mxu0 0.0
    %2261 = vmatpush1.msra.mxu0 %v1852
    %2262 = vmatprep.subr.mxu0 0.0
    %2263 = vmatpush1.msra.mxu0 %v1851
    %2264 = vmatprep.subr.mxu0 0.0
    %2265 = vmatpush1.msra.mxu0 %v1850
    %2266 = vmatprep.subr.mxu0 0.0
    %2267 = vmatpush1.msra.mxu0 %v1849
    %2268 = vmatprep.subr.mxu0 0.0
    %2269 = vmatpush1.msra.mxu0 %v1848
    %2270 = vmatprep.subr.mxu0 0.0
    %2271 = vmatpush1.msra.mxu0 %v1847
    %2272 = vmatprep.subr.mxu0 0.0
    %2273 = vmatpush1.msra.mxu0 %v1846
    %2274 = vmatprep.subr.mxu0 0.0
    %2275 = vmatpush1.msra.mxu0 %v1845
    %2276 = vmatprep.subr.mxu0 0.0
    %2277 = vmatpush1.msra.mxu0 %v1844
    %2278 = vmatprep.subr.mxu0 0.0
    %2279 = vmatpush1.msra.mxu0 %v1843
    %2280 = vmatprep.subr.mxu0 0.0
    %2281 = vmatpush1.msra.mxu0 %v1842
    %2282 = vmatprep.subr.mxu0 0.0
    %2283 = vmatpush1.msra.mxu0 %v1841
    %2284 = vmatprep.subr.mxu0 0.0
    %2285 = vmatpush1.msra.mxu0 %v1840
    %2286 = vmatprep.subr.mxu0 0.0
    %2287 = vmatpush1.msra.mxu0 %v1839
    %2288 = vmatprep.subr.mxu0 0.0
    %2289 = vmatpush1.msra.mxu0 %v1838
    %2290 = vmatprep.subr.mxu0 0.0
    %2291 = vmatpush1.msra.mxu0 %v1837
    %2292 = vmatprep.subr.mxu0 0.0
    %2293 = vmatpush2.msra.mxu0 %v1868
    %2294 = vmatprep.subr.mxu0 0.0
    %2295 = vmatpush2.msra.mxu0 %v1867
    %2296 = vmatprep.subr.mxu0 0.0
    %2297 = vmatpush2.msra.mxu0 %v1866
    %2298 = vmatprep.subr.mxu0 0.0
    %2299 = vmatpush2.msra.mxu0 %v1865
    %2300 = vmatprep.subr.mxu0 0.0
    %2301 = vmatpush2.msra.mxu0 %v1864
    %2302 = vmatprep.subr.mxu0 0.0
    %2303 = vmatpush2.msra.mxu0 %v1863
    %2304 = vmatprep.subr.mxu0 0.0
    %2305 = vmatpush2.msra.mxu0 %v1862
    %2306 = vmatprep.subr.mxu0 0.0
    %2307 = vmatpush2.msra.mxu0 %v1861
    %2308 = vmatprep.subr.mxu0 0.0
    %2309 = vmatpush2.msra.mxu0 %v1860
    %2310 = vmatprep.subr.mxu0 0.0
    %2311 = vmatpush2.msra.mxu0 %v1859
    %2312 = vmatprep.subr.mxu0 0.0
    %2313 = vmatpush2.msra.mxu0 %v1858
    %2314 = vmatprep.subr.mxu0 0.0
    %2315 = vmatpush2.msra.mxu0 %v1857
    %2316 = vmatprep.subr.mxu0 0.0
    %2317 = vmatpush2.msra.mxu0 %v1856
    %2318 = vmatprep.subr.mxu0 0.0
    %2319 = vmatpush2.msra.mxu0 %v1855
    %2320 = vmatprep.subr.mxu0 0.0
    %2321 = vmatpush2.msra.mxu0 %v1854
    %2322 = vmatprep.subr.mxu0 0.0
    %2323 = vmatpush2.msra.mxu0 %v1853
    %2324 = vmatprep.mubr.f32.mxu0 %v1396
    %2325 = vmatmul.mubr.f32.gmra.mxu0 %v1395
    %v2326 = vpop.f32.mrf.mxu0
    %v2327 = vadd.f32 %v2258, %v2326
    %v2328 = vpop.f32.mrf.mxu0
    %2329 = vdwg.mxu0
    %2330 = vmatprep.subr.mxu0 0.0
    %2331 = vmatpush1.msra.mxu0 %v1884
    %2332 = vmatprep.subr.mxu0 0.0
    %2333 = vmatpush1.msra.mxu0 %v1883
    %2334 = vmatprep.subr.mxu0 0.0
    %2335 = vmatpush1.msra.mxu0 %v1882
    %2336 = vmatprep.subr.mxu0 0.0
    %2337 = vmatpush1.msra.mxu0 %v1881
    %2338 = vmatprep.subr.mxu0 0.0
    %2339 = vmatpush1.msra.mxu0 %v1880
    %2340 = vmatprep.subr.mxu0 0.0
    %2341 = vmatpush1.msra.mxu0 %v1879
    %2342 = vmatprep.subr.mxu0 0.0
    %2343 = vmatpush1.msra.mxu0 %v1878
    %2344 = vmatprep.subr.mxu0 0.0
    %2345 = vmatpush1.msra.mxu0 %v1877
    %2346 = vmatprep.subr.mxu0 0.0
    %2347 = vmatpush1.msra.mxu0 %v1876
    %2348 = vmatprep.subr.mxu0 0.0
    %2349 = vmatpush1.msra.mxu0 %v1875
    %2350 = vmatprep.subr.mxu0 0.0
    %2351 = vmatpush1.msra.mxu0 %v1874
    %2352 = vmatprep.subr.mxu0 0.0
    %2353 = vmatpush1.msra.mxu0 %v1873
    %2354 = vmatprep.subr.mxu0 0.0
    %2355 = vmatpush1.msra.mxu0 %v1872
    %2356 = vmatprep.subr.mxu0 0.0
    %2357 = vmatpush1.msra.mxu0 %v1871
    %2358 = vmatprep.subr.mxu0 0.0
    %2359 = vmatpush1.msra.mxu0 %v1870
    %2360 = vmatprep.subr.mxu0 0.0
    %2361 = vmatpush1.msra.mxu0 %v1869
    %2362 = vmatprep.subr.mxu0 0.0
    %2363 = vmatpush2.msra.mxu0 %v1900
    %2364 = vmatprep.subr.mxu0 0.0
    %2365 = vmatpush2.msra.mxu0 %v1899
    %2366 = vmatprep.subr.mxu0 0.0
    %2367 = vmatpush2.msra.mxu0 %v1898
    %2368 = vmatprep.subr.mxu0 0.0
    %2369 = vmatpush2.msra.mxu0 %v1897
    %2370 = vmatprep.subr.mxu0 0.0
    %2371 = vmatpush2.msra.mxu0 %v1896
    %2372 = vmatprep.subr.mxu0 0.0
    %2373 = vmatpush2.msra.mxu0 %v1895
    %2374 = vmatprep.subr.mxu0 0.0
    %2375 = vmatpush2.msra.mxu0 %v1894
    %2376 = vmatprep.subr.mxu0 0.0
    %2377 = vmatpush2.msra.mxu0 %v1893
    %2378 = vmatprep.subr.mxu0 0.0
    %2379 = vmatpush2.msra.mxu0 %v1892
    %2380 = vmatprep.subr.mxu0 0.0
    %2381 = vmatpush2.msra.mxu0 %v1891
    %2382 = vmatprep.subr.mxu0 0.0
    %2383 = vmatpush2.msra.mxu0 %v1890
    %2384 = vmatprep.subr.mxu0 0.0
    %2385 = vmatpush2.msra.mxu0 %v1889
    %2386 = vmatprep.subr.mxu0 0.0
    %2387 = vmatpush2.msra.mxu0 %v1888
    %2388 = vmatprep.subr.mxu0 0.0
    %2389 = vmatpush2.msra.mxu0 %v1887
    %2390 = vmatprep.subr.mxu0 0.0
    %2391 = vmatpush2.msra.mxu0 %v1886
    %2392 = vmatprep.subr.mxu0 0.0
    %2393 = vmatpush2.msra.mxu0 %v1885
    %2394 = vmatprep.mubr.f32.mxu0 %v1398
    %2395 = vmatmul.mubr.f32.gmra.mxu0 %v1397
    %v2396 = vpop.f32.mrf.mxu0
    %v2397 = vadd.f32 %v2327, %v2396
    %v2398 = vpop.f32.mrf.mxu0
    %2399 = vdwg.mxu0
    %2400 = vmatprep.subr.mxu0 0.0
    %2401 = vmatpush1.msra.mxu0 %v1916
    %2402 = vmatprep.subr.mxu0 0.0
    %2403 = vmatpush1.msra.mxu0 %v1915
    %2404 = vmatprep.subr.mxu0 0.0
    %2405 = vmatpush1.msra.mxu0 %v1914
    %2406 = vmatprep.subr.mxu0 0.0
    %2407 = vmatpush1.msra.mxu0 %v1913
    %2408 = vmatprep.subr.mxu0 0.0
    %2409 = vmatpush1.msra.mxu0 %v1912
    %2410 = vmatprep.subr.mxu0 0.0
    %2411 = vmatpush1.msra.mxu0 %v1911
    %2412 = vmatprep.subr.mxu0 0.0
    %2413 = vmatpush1.msra.mxu0 %v1910
    %2414 = vmatprep.subr.mxu0 0.0
    %2415 = vmatpush1.msra.mxu0 %v1909
    %2416 = vmatprep.subr.mxu0 0.0
    %2417 = vmatpush1.msra.mxu0 %v1908
    %2418 = vmatprep.subr.mxu0 0.0
    %2419 = vmatpush1.msra.mxu0 %v1907
    %2420 = vmatprep.subr.mxu0 0.0
    %2421 = vmatpush1.msra.mxu0 %v1906
    %2422 = vmatprep.subr.mxu0 0.0
    %2423 = vmatpush1.msra.mxu0 %v1905
    %2424 = vmatprep.subr.mxu0 0.0
    %2425 = vmatpush1.msra.mxu0 %v1904
    %2426 = vmatprep.subr.mxu0 0.0
    %2427 = vmatpush1.msra.mxu0 %v1903
    %2428 = vmatprep.subr.mxu0 0.0
    %2429 = vmatpush1.msra.mxu0 %v1902
    %2430 = vmatprep.subr.mxu0 0.0
    %2431 = vmatpush1.msra.mxu0 %v1901
    %2432 = vmatprep.subr.mxu0 0.0
    %2433 = vmatpush2.msra.mxu0 %v1932
    %2434 = vmatprep.subr.mxu0 0.0
    %2435 = vmatpush2.msra.mxu0 %v1931
    %2436 = vmatprep.subr.mxu0 0.0
    %2437 = vmatpush2.msra.mxu0 %v1930
    %2438 = vmatprep.subr.mxu0 0.0
    %2439 = vmatpush2.msra.mxu0 %v1929
    %2440 = vmatprep.subr.mxu0 0.0
    %2441 = vmatpush2.msra.mxu0 %v1928
    %2442 = vmatprep.subr.mxu0 0.0
    %2443 = vmatpush2.msra.mxu0 %v1927
    %2444 = vmatprep.subr.mxu0 0.0
    %2445 = vmatpush2.msra.mxu0 %v1926
    %2446 = vmatprep.subr.mxu0 0.0
    %2447 = vmatpush2.msra.mxu0 %v1925
    %2448 = vmatprep.subr.mxu0 0.0
    %2449 = vmatpush2.msra.mxu0 %v1924
    %2450 = vmatprep.subr.mxu0 0.0
    %2451 = vmatpush2.msra.mxu0 %v1923
    %2452 = vmatprep.subr.mxu0 0.0
    %2453 = vmatpush2.msra.mxu0 %v1922
    %2454 = vmatprep.subr.mxu0 0.0
    %2455 = vmatpush2.msra.mxu0 %v1921
    %2456 = vmatprep.subr.mxu0 0.0
    %2457 = vmatpush2.msra.mxu0 %v1920
    %2458 = vmatprep.subr.mxu0 0.0
    %2459 = vmatpush2.msra.mxu0 %v1919
    %2460 = vmatprep.subr.mxu0 0.0
    %2461 = vmatpush2.msra.mxu0 %v1918
    %2462 = vmatprep.subr.mxu0 0.0
    %2463 = vmatpush2.msra.mxu0 %v1917
    %2464 = vmatprep.mubr.f32.mxu0 %v1400
    %2465 = vmatmul.mubr.f32.gmra.mxu0 %v1399
    %v2466 = vpop.f32.mrf.mxu0
    %v2467 = vadd.f32 %v2397, %v2466
    %v2468 = vpop.f32.mrf.mxu0
    %2469 = vdwg.mxu0
    %2470 = vmatprep.subr.mxu0 0.0
    %2471 = vmatpush1.msra.mxu0 %v1948
    %2472 = vmatprep.subr.mxu0 0.0
    %2473 = vmatpush1.msra.mxu0 %v1947
    %2474 = vmatprep.subr.mxu0 0.0
    %2475 = vmatpush1.msra.mxu0 %v1946
    %2476 = vmatprep.subr.mxu0 0.0
    %2477 = vmatpush1.msra.mxu0 %v1945
    %2478 = vmatprep.subr.mxu0 0.0
    %2479 = vmatpush1.msra.mxu0 %v1944
    %2480 = vmatprep.subr.mxu0 0.0
    %2481 = vmatpush1.msra.mxu0 %v1943
    %2482 = vmatprep.subr.mxu0 0.0
    %2483 = vmatpush1.msra.mxu0 %v1942
    %2484 = vmatprep.subr.mxu0 0.0
    %2485 = vmatpush1.msra.mxu0 %v1941
    %2486 = vmatprep.subr.mxu0 0.0
    %2487 = vmatpush1.msra.mxu0 %v1940
    %2488 = vmatprep.subr.mxu0 0.0
    %2489 = vmatpush1.msra.mxu0 %v1939
    %2490 = vmatprep.subr.mxu0 0.0
    %2491 = vmatpush1.msra.mxu0 %v1938
    %2492 = vmatprep.subr.mxu0 0.0
    %2493 = vmatpush1.msra.mxu0 %v1937
    %2494 = vmatprep.subr.mxu0 0.0
    %2495 = vmatpush1.msra.mxu0 %v1936
    %2496 = vmatprep.subr.mxu0 0.0
    %2497 = vmatpush1.msra.mxu0 %v1935
    %2498 = vmatprep.subr.mxu0 0.0
    %2499 = vmatpush1.msra.mxu0 %v1934
    %2500 = vmatprep.subr.mxu0 0.0
    %2501 = vmatpush1.msra.mxu0 %v1933
    %2502 = vmatprep.subr.mxu0 0.0
    %2503 = vmatpush2.msra.mxu0 %v1964
    %2504 = vmatprep.subr.mxu0 0.0
    %2505 = vmatpush2.msra.mxu0 %v1963
    %2506 = vmatprep.subr.mxu0 0.0
    %2507 = vmatpush2.msra.mxu0 %v1962
    %2508 = vmatprep.subr.mxu0 0.0
    %2509 = vmatpush2.msra.mxu0 %v1961
    %2510 = vmatprep.subr.mxu0 0.0
    %2511 = vmatpush2.msra.mxu0 %v1960
    %2512 = vmatprep.subr.mxu0 0.0
    %2513 = vmatpush2.msra.mxu0 %v1959
    %2514 = vmatprep.subr.mxu0 0.0
    %2515 = vmatpush2.msra.mxu0 %v1958
    %2516 = vmatprep.subr.mxu0 0.0
    %2517 = vmatpush2.msra.mxu0 %v1957
    %2518 = vmatprep.subr.mxu0 0.0
    %2519 = vmatpush2.msra.mxu0 %v1956
    %2520 = vmatprep.subr.mxu0 0.0
    %2521 = vmatpush2.msra.mxu0 %v1955
    %2522 = vmatprep.subr.mxu0 0.0
    %2523 = vmatpush2.msra.mxu0 %v1954
    %2524 = vmatprep.subr.mxu0 0.0
    %2525 = vmatpush2.msra.mxu0 %v1953
    %2526 = vmatprep.subr.mxu0 0.0
    %2527 = vmatpush2.msra.mxu0 %v1952
    %2528 = vmatprep.subr.mxu0 0.0
    %2529 = vmatpush2.msra.mxu0 %v1951
    %2530 = vmatprep.subr.mxu0 0.0
    %2531 = vmatpush2.msra.mxu0 %v1950
    %2532 = vmatprep.subr.mxu0 0.0
    %2533 = vmatpush2.msra.mxu0 %v1949
    %2534 = vmatprep.mubr.f32.mxu0 %v1402
    %2535 = vmatmul.mubr.f32.gmra.mxu0 %v1401
    %v2536 = vpop.f32.mrf.mxu0
    %v2537 = vadd.f32 %v2467, %v2536
    %v2538 = vpop.f32.mrf.mxu0
    %2539 = vdwg.mxu0
    %2540 = vmatprep.subr.mxu0 0.0
    %2541 = vmatpush1.msra.mxu0 %v1980
    %2542 = vmatprep.subr.mxu0 0.0
    %2543 = vmatpush1.msra.mxu0 %v1979
    %2544 = vmatprep.subr.mxu0 0.0
    %2545 = vmatpush1.msra.mxu0 %v1978
    %2546 = vmatprep.subr.mxu0 0.0
    %2547 = vmatpush1.msra.mxu0 %v1977
    %2548 = vmatprep.subr.mxu0 0.0
    %2549 = vmatpush1.msra.mxu0 %v1976
    %2550 = vmatprep.subr.mxu0 0.0
    %2551 = vmatpush1.msra.mxu0 %v1975
    %2552 = vmatprep.subr.mxu0 0.0
    %2553 = vmatpush1.msra.mxu0 %v1974
    %2554 = vmatprep.subr.mxu0 0.0
    %2555 = vmatpush1.msra.mxu0 %v1973
    %2556 = vmatprep.subr.mxu0 0.0
    %2557 = vmatpush1.msra.mxu0 %v1972
    %2558 = vmatprep.subr.mxu0 0.0
    %2559 = vmatpush1.msra.mxu0 %v1971
    %2560 = vmatprep.subr.mxu0 0.0
    %2561 = vmatpush1.msra.mxu0 %v1970
    %2562 = vmatprep.subr.mxu0 0.0
    %2563 = vmatpush1.msra.mxu0 %v1969
    %2564 = vmatprep.subr.mxu0 0.0
    %2565 = vmatpush1.msra.mxu0 %v1968
    %2566 = vmatprep.subr.mxu0 0.0
    %2567 = vmatpush1.msra.mxu0 %v1967
    %2568 = vmatprep.subr.mxu0 0.0
    %2569 = vmatpush1.msra.mxu0 %v1966
    %2570 = vmatprep.subr.mxu0 0.0
    %2571 = vmatpush1.msra.mxu0 %v1965
    %2572 = vmatprep.subr.mxu0 0.0
    %2573 = vmatpush2.msra.mxu0 %v1996
    %2574 = vmatprep.subr.mxu0 0.0
    %2575 = vmatpush2.msra.mxu0 %v1995
    %2576 = vmatprep.subr.mxu0 0.0
    %2577 = vmatpush2.msra.mxu0 %v1994
    %2578 = vmatprep.subr.mxu0 0.0
    %2579 = vmatpush2.msra.mxu0 %v1993
    %2580 = vmatprep.subr.mxu0 0.0
    %2581 = vmatpush2.msra.mxu0 %v1992
    %2582 = vmatprep.subr.mxu0 0.0
    %2583 = vmatpush2.msra.mxu0 %v1991
    %2584 = vmatprep.subr.mxu0 0.0
    %2585 = vmatpush2.msra.mxu0 %v1990
    %2586 = vmatprep.subr.mxu0 0.0
    %2587 = vmatpush2.msra.mxu0 %v1989
    %2588 = vmatprep.subr.mxu0 0.0
    %2589 = vmatpush2.msra.mxu0 %v1988
    %2590 = vmatprep.subr.mxu0 0.0
    %2591 = vmatpush2.msra.mxu0 %v1987
    %2592 = vmatprep.subr.mxu0 0.0
    %2593 = vmatpush2.msra.mxu0 %v1986
    %2594 = vmatprep.subr.mxu0 0.0
    %2595 = vmatpush2.msra.mxu0 %v1985
    %2596 = vmatprep.subr.mxu0 0.0
    %2597 = vmatpush2.msra.mxu0 %v1984
    %2598 = vmatprep.subr.mxu0 0.0
    %2599 = vmatpush2.msra.mxu0 %v1983
    %2600 = vmatprep.subr.mxu0 0.0
    %2601 = vmatpush2.msra.mxu0 %v1982
    %2602 = vmatprep.subr.mxu0 0.0
    %2603 = vmatpush2.msra.mxu0 %v1981
    %2604 = vmatprep.mubr.f32.mxu0 %v1404
    %2605 = vmatmul.mubr.f32.gmra.mxu0 %v1403
    %v2606 = vpop.f32.mrf.mxu0
    %v2607 = vadd.f32 %v2537, %v2606
    %v2608 = vpop.f32.mrf.mxu0
    %2609 = vdwg.mxu0
    %2610 = vmatprep.subr.mxu0 0.0
    %2611 = vmatpush1.msra.mxu0 %v2012
    %2612 = vmatprep.subr.mxu0 0.0
    %2613 = vmatpush1.msra.mxu0 %v2011
    %2614 = vmatprep.subr.mxu0 0.0
    %2615 = vmatpush1.msra.mxu0 %v2010
    %2616 = vmatprep.subr.mxu0 0.0
    %2617 = vmatpush1.msra.mxu0 %v2009
    %2618 = vmatprep.subr.mxu0 0.0
    %2619 = vmatpush1.msra.mxu0 %v2008
    %2620 = vmatprep.subr.mxu0 0.0
    %2621 = vmatpush1.msra.mxu0 %v2007
    %2622 = vmatprep.subr.mxu0 0.0
    %2623 = vmatpush1.msra.mxu0 %v2006
    %2624 = vmatprep.subr.mxu0 0.0
    %2625 = vmatpush1.msra.mxu0 %v2005
    %2626 = vmatprep.subr.mxu0 0.0
    %2627 = vmatpush1.msra.mxu0 %v2004
    %2628 = vmatprep.subr.mxu0 0.0
    %2629 = vmatpush1.msra.mxu0 %v2003
    %2630 = vmatprep.subr.mxu0 0.0
    %2631 = vmatpush1.msra.mxu0 %v2002
    %2632 = vmatprep.subr.mxu0 0.0
    %2633 = vmatpush1.msra.mxu0 %v2001
    %2634 = vmatprep.subr.mxu0 0.0
    %2635 = vmatpush1.msra.mxu0 %v2000
    %2636 = vmatprep.subr.mxu0 0.0
    %2637 = vmatpush1.msra.mxu0 %v1999
    %2638 = vmatprep.subr.mxu0 0.0
    %2639 = vmatpush1.msra.mxu0 %v1998
    %2640 = vmatprep.subr.mxu0 0.0
    %2641 = vmatpush1.msra.mxu0 %v1997
    %2642 = vmatprep.subr.mxu0 0.0
    %2643 = vmatpush2.msra.mxu0 %v2028
    %2644 = vmatprep.subr.mxu0 0.0
    %2645 = vmatpush2.msra.mxu0 %v2027
    %2646 = vmatprep.subr.mxu0 0.0
    %2647 = vmatpush2.msra.mxu0 %v2026
    %2648 = vmatprep.subr.mxu0 0.0
    %2649 = vmatpush2.msra.mxu0 %v2025
    %2650 = vmatprep.subr.mxu0 0.0
    %2651 = vmatpush2.msra.mxu0 %v2024
    %2652 = vmatprep.subr.mxu0 0.0
    %2653 = vmatpush2.msra.mxu0 %v2023
    %2654 = vmatprep.subr.mxu0 0.0
    %2655 = vmatpush2.msra.mxu0 %v2022
    %2656 = vmatprep.subr.mxu0 0.0
    %2657 = vmatpush2.msra.mxu0 %v2021
    %2658 = vmatprep.subr.mxu0 0.0
    %2659 = vmatpush2.msra.mxu0 %v2020
    %2660 = vmatprep.subr.mxu0 0.0
    %2661 = vmatpush2.msra.mxu0 %v2019
    %2662 = vmatprep.subr.mxu0 0.0
    %2663 = vmatpush2.msra.mxu0 %v2018
    %2664 = vmatprep.subr.mxu0 0.0
    %2665 = vmatpush2.msra.mxu0 %v2017
    %2666 = vmatprep.subr.mxu0 0.0
    %2667 = vmatpush2.msra.mxu0 %v2016
    %2668 = vmatprep.subr.mxu0 0.0
    %2669 = vmatpush2.msra.mxu0 %v2015
    %2670 = vmatprep.subr.mxu0 0.0
    %2671 = vmatpush2.msra.mxu0 %v2014
    %2672 = vmatprep.subr.mxu0 0.0
    %2673 = vmatpush2.msra.mxu0 %v2013
    %2674 = vmatprep.mubr.f32.mxu0 %v1406
    %2675 = vmatmul.mubr.f32.gmra.mxu0 %v1405
    %v2676 = vpop.f32.mrf.mxu0
    %v2677 = vadd.f32 %v2607, %v2676
    %v2678 = vpop.f32.mrf.mxu0
    %2679 = vdwg.mxu0
    %2680 = vmatprep.subr.mxu0 0.0
    %2681 = vmatpush1.msra.mxu0 %v2044
    %2682 = vmatprep.subr.mxu0 0.0
    %2683 = vmatpush1.msra.mxu0 %v2043
    %2684 = vmatprep.subr.mxu0 0.0
    %2685 = vmatpush1.msra.mxu0 %v2042
    %2686 = vmatprep.subr.mxu0 0.0
    %2687 = vmatpush1.msra.mxu0 %v2041
    %2688 = vmatprep.subr.mxu0 0.0
    %2689 = vmatpush1.msra.mxu0 %v2040
    %2690 = vmatprep.subr.mxu0 0.0
    %2691 = vmatpush1.msra.mxu0 %v2039
    %2692 = vmatprep.subr.mxu0 0.0
    %2693 = vmatpush1.msra.mxu0 %v2038
    %2694 = vmatprep.subr.mxu0 0.0
    %2695 = vmatpush1.msra.mxu0 %v2037
    %2696 = vmatprep.subr.mxu0 0.0
    %2697 = vmatpush1.msra.mxu0 %v2036
    %2698 = vmatprep.subr.mxu0 0.0
    %2699 = vmatpush1.msra.mxu0 %v2035
    %2700 = vmatprep.subr.mxu0 0.0
    %2701 = vmatpush1.msra.mxu0 %v2034
    %2702 = vmatprep.subr.mxu0 0.0
    %2703 = vmatpush1.msra.mxu0 %v2033
    %2704 = vmatprep.subr.mxu0 0.0
    %2705 = vmatpush1.msra.mxu0 %v2032
    %2706 = vmatprep.subr.mxu0 0.0
    %2707 = vmatpush1.msra.mxu0 %v2031
    %2708 = vmatprep.subr.mxu0 0.0
    %2709 = vmatpush1.msra.mxu0 %v2030
    %2710 = vmatprep.subr.mxu0 0.0
    %2711 = vmatpush1.msra.mxu0 %v2029
    %2712 = vmatprep.subr.mxu0 0.0
    %2713 = vmatpush2.msra.mxu0 %v2060
    %2714 = vmatprep.subr.mxu0 0.0
    %2715 = vmatpush2.msra.mxu0 %v2059
    %2716 = vmatprep.subr.mxu0 0.0
    %2717 = vmatpush2.msra.mxu0 %v2058
    %2718 = vmatprep.subr.mxu0 0.0
    %2719 = vmatpush2.msra.mxu0 %v2057
    %2720 = vmatprep.subr.mxu0 0.0
    %2721 = vmatpush2.msra.mxu0 %v2056
    %2722 = vmatprep.subr.mxu0 0.0
    %2723 = vmatpush2.msra.mxu0 %v2055
    %2724 = vmatprep.subr.mxu0 0.0
    %2725 = vmatpush2.msra.mxu0 %v2054
    %2726 = vmatprep.subr.mxu0 0.0
    %2727 = vmatpush2.msra.mxu0 %v2053
    %2728 = vmatprep.subr.mxu0 0.0
    %2729 = vmatpush2.msra.mxu0 %v2052
    %2730 = vmatprep.subr.mxu0 0.0
    %2731 = vmatpush2.msra.mxu0 %v2051
    %2732 = vmatprep.subr.mxu0 0.0
    %2733 = vmatpush2.msra.mxu0 %v2050
    %2734 = vmatprep.subr.mxu0 0.0
    %2735 = vmatpush2.msra.mxu0 %v2049
    %2736 = vmatprep.subr.mxu0 0.0
    %2737 = vmatpush2.msra.mxu0 %v2048
    %2738 = vmatprep.subr.mxu0 0.0
    %2739 = vmatpush2.msra.mxu0 %v2047
    %2740 = vmatprep.subr.mxu0 0.0
    %2741 = vmatpush2.msra.mxu0 %v2046
    %2742 = vmatprep.subr.mxu0 0.0
    %2743 = vmatpush2.msra.mxu0 %v2045
    %2744 = vmatprep.mubr.f32.mxu0 %v1408
    %2745 = vmatmul.mubr.f32.gmra.mxu0 %v1407
    %v2746 = vpop.f32.mrf.mxu0
    %v2747 = vadd.f32 %v2677, %v2746
    %v2748 = vpop.f32.mrf.mxu0
    %2749 = vdwg.mxu0
    %2750 = vmatprep.subr.mxu0 0.0
    %2751 = vmatpush1.msra.mxu0 %v2076
    %2752 = vmatprep.subr.mxu0 0.0
    %2753 = vmatpush1.msra.mxu0 %v2075
    %2754 = vmatprep.subr.mxu0 0.0
    %2755 = vmatpush1.msra.mxu0 %v2074
    %2756 = vmatprep.subr.mxu0 0.0
    %2757 = vmatpush1.msra.mxu0 %v2073
    %2758 = vmatprep.subr.mxu0 0.0
    %2759 = vmatpush1.msra.mxu0 %v2072
    %2760 = vmatprep.subr.mxu0 0.0
    %2761 = vmatpush1.msra.mxu0 %v2071
    %2762 = vmatprep.subr.mxu0 0.0
    %2763 = vmatpush1.msra.mxu0 %v2070
    %2764 = vmatprep.subr.mxu0 0.0
    %2765 = vmatpush1.msra.mxu0 %v2069
    %2766 = vmatprep.subr.mxu0 0.0
    %2767 = vmatpush1.msra.mxu0 %v2068
    %2768 = vmatprep.subr.mxu0 0.0
    %2769 = vmatpush1.msra.mxu0 %v2067
    %2770 = vmatprep.subr.mxu0 0.0
    %2771 = vmatpush1.msra.mxu0 %v2066
    %2772 = vmatprep.subr.mxu0 0.0
    %2773 = vmatpush1.msra.mxu0 %v2065
    %2774 = vmatprep.subr.mxu0 0.0
    %2775 = vmatpush1.msra.mxu0 %v2064
    %2776 = vmatprep.subr.mxu0 0.0
    %2777 = vmatpush1.msra.mxu0 %v2063
    %2778 = vmatprep.subr.mxu0 0.0
    %2779 = vmatpush1.msra.mxu0 %v2062
    %2780 = vmatprep.subr.mxu0 0.0
    %2781 = vmatpush1.msra.mxu0 %v2061
    %2782 = vmatprep.subr.mxu0 0.0
    %2783 = vmatpush2.msra.mxu0 %v2092
    %2784 = vmatprep.subr.mxu0 0.0
    %2785 = vmatpush2.msra.mxu0 %v2091
    %2786 = vmatprep.subr.mxu0 0.0
    %2787 = vmatpush2.msra.mxu0 %v2090
    %2788 = vmatprep.subr.mxu0 0.0
    %2789 = vmatpush2.msra.mxu0 %v2089
    %2790 = vmatprep.subr.mxu0 0.0
    %2791 = vmatpush2.msra.mxu0 %v2088
    %2792 = vmatprep.subr.mxu0 0.0
    %2793 = vmatpush2.msra.mxu0 %v2087
    %2794 = vmatprep.subr.mxu0 0.0
    %2795 = vmatpush2.msra.mxu0 %v2086
    %2796 = vmatprep.subr.mxu0 0.0
    %2797 = vmatpush2.msra.mxu0 %v2085
    %2798 = vmatprep.subr.mxu0 0.0
    %2799 = vmatpush2.msra.mxu0 %v2084
    %2800 = vmatprep.subr.mxu0 0.0
    %2801 = vmatpush2.msra.mxu0 %v2083
    %2802 = vmatprep.subr.mxu0 0.0
    %2803 = vmatpush2.msra.mxu0 %v2082
    %2804 = vmatprep.subr.mxu0 0.0
    %2805 = vmatpush2.msra.mxu0 %v2081
    %2806 = vmatprep.subr.mxu0 0.0
    %2807 = vmatpush2.msra.mxu0 %v2080
    %2808 = vmatprep.subr.mxu0 0.0
    %2809 = vmatpush2.msra.mxu0 %v2079
    %2810 = vmatprep.subr.mxu0 0.0
    %2811 = vmatpush2.msra.mxu0 %v2078
    %2812 = vmatprep.subr.mxu0 0.0
    %2813 = vmatpush2.msra.mxu0 %v2077
    %2814 = vmatprep.mubr.f32.mxu0 %v1410
    %2815 = vmatmul.mubr.f32.gmra.mxu0 %v1409
    %v2816 = vpop.f32.mrf.mxu0
    %v2817 = vadd.f32 %v2747, %v2816
    %v2818 = vpop.f32.mrf.mxu0
    %2819 = vdwg.mxu0
    %2820 = vmatprep.subr.mxu0 0.0
    %2821 = vmatpush1.msra.mxu0 %v2108
    %2822 = vmatprep.subr.mxu0 0.0
    %2823 = vmatpush1.msra.mxu0 %v2107
    %2824 = vmatprep.subr.mxu0 0.0
    %2825 = vmatpush1.msra.mxu0 %v2106
    %2826 = vmatprep.subr.mxu0 0.0
    %2827 = vmatpush1.msra.mxu0 %v2105
    %2828 = vmatprep.subr.mxu0 0.0
    %2829 = vmatpush1.msra.mxu0 %v2104
    %2830 = vmatprep.subr.mxu0 0.0
    %2831 = vmatpush1.msra.mxu0 %v2103
    %2832 = vmatprep.subr.mxu0 0.0
    %2833 = vmatpush1.msra.mxu0 %v2102
    %2834 = vmatprep.subr.mxu0 0.0
    %2835 = vmatpush1.msra.mxu0 %v2101
    %2836 = vmatprep.subr.mxu0 0.0
    %2837 = vmatpush1.msra.mxu0 %v2100
    %2838 = vmatprep.subr.mxu0 0.0
    %2839 = vmatpush1.msra.mxu0 %v2099
    %2840 = vmatprep.subr.mxu0 0.0
    %2841 = vmatpush1.msra.mxu0 %v2098
    %2842 = vmatprep.subr.mxu0 0.0
    %2843 = vmatpush1.msra.mxu0 %v2097
    %2844 = vmatprep.subr.mxu0 0.0
    %2845 = vmatpush1.msra.mxu0 %v2096
    %2846 = vmatprep.subr.mxu0 0.0
    %2847 = vmatpush1.msra.mxu0 %v2095
    %2848 = vmatprep.subr.mxu0 0.0
    %2849 = vmatpush1.msra.mxu0 %v2094
    %2850 = vmatprep.subr.mxu0 0.0
    %2851 = vmatpush1.msra.mxu0 %v2093
    %2852 = vmatprep.subr.mxu0 0.0
    %2853 = vmatpush2.msra.mxu0 %v2124
    %2854 = vmatprep.subr.mxu0 0.0
    %2855 = vmatpush2.msra.mxu0 %v2123
    %2856 = vmatprep.subr.mxu0 0.0
    %2857 = vmatpush2.msra.mxu0 %v2122
    %2858 = vmatprep.subr.mxu0 0.0
    %2859 = vmatpush2.msra.mxu0 %v2121
    %2860 = vmatprep.subr.mxu0 0.0
    %2861 = vmatpush2.msra.mxu0 %v2120
    %2862 = vmatprep.subr.mxu0 0.0
    %2863 = vmatpush2.msra.mxu0 %v2119
    %2864 = vmatprep.subr.mxu0 0.0
    %2865 = vmatpush2.msra.mxu0 %v2118
    %2866 = vmatprep.subr.mxu0 0.0
    %2867 = vmatpush2.msra.mxu0 %v2117
    %2868 = vmatprep.subr.mxu0 0.0
    %2869 = vmatpush2.msra.mxu0 %v2116
    %2870 = vmatprep.subr.mxu0 0.0
    %2871 = vmatpush2.msra.mxu0 %v2115
    %2872 = vmatprep.subr.mxu0 0.0
    %2873 = vmatpush2.msra.mxu0 %v2114
    %2874 = vmatprep.subr.mxu0 0.0
    %2875 = vmatpush2.msra.mxu0 %v2113
    %2876 = vmatprep.subr.mxu0 0.0
    %2877 = vmatpush2.msra.mxu0 %v2112
    %2878 = vmatprep.subr.mxu0 0.0
    %2879 = vmatpush2.msra.mxu0 %v2111
    %2880 = vmatprep.subr.mxu0 0.0
    %2881 = vmatpush2.msra.mxu0 %v2110
    %2882 = vmatprep.subr.mxu0 0.0
    %2883 = vmatpush2.msra.mxu0 %v2109
    %2884 = vmatprep.mubr.f32.mxu0 %v1412
    %2885 = vmatmul.mubr.f32.gmra.mxu0 %v1411
    %v2886 = vpop.f32.mrf.mxu0
    %v2887 = vadd.f32 %v2817, %v2886
    %v2888 = vpop.f32.mrf.mxu0
    %2889 = vdwg.mxu0
    %2890 = vmatprep.subr.mxu0 0.0
    %2891 = vmatpush1.msra.mxu0 %v2140
    %2892 = vmatprep.subr.mxu0 0.0
    %2893 = vmatpush1.msra.mxu0 %v2139
    %2894 = vmatprep.subr.mxu0 0.0
    %2895 = vmatpush1.msra.mxu0 %v2138
    %2896 = vmatprep.subr.mxu0 0.0
    %2897 = vmatpush1.msra.mxu0 %v2137
    %2898 = vmatprep.subr.mxu0 0.0
    %2899 = vmatpush1.msra.mxu0 %v2136
    %2900 = vmatprep.subr.mxu0 0.0
    %2901 = vmatpush1.msra.mxu0 %v2135
    %2902 = vmatprep.subr.mxu0 0.0
    %2903 = vmatpush1.msra.mxu0 %v2134
    %2904 = vmatprep.subr.mxu0 0.0
    %2905 = vmatpush1.msra.mxu0 %v2133
    %2906 = vmatprep.subr.mxu0 0.0
    %2907 = vmatpush1.msra.mxu0 %v2132
    %2908 = vmatprep.subr.mxu0 0.0
    %2909 = vmatpush1.msra.mxu0 %v2131
    %2910 = vmatprep.subr.mxu0 0.0
    %2911 = vmatpush1.msra.mxu0 %v2130
    %2912 = vmatprep.subr.mxu0 0.0
    %2913 = vmatpush1.msra.mxu0 %v2129
    %2914 = vmatprep.subr.mxu0 0.0
    %2915 = vmatpush1.msra.mxu0 %v2128
    %2916 = vmatprep.subr.mxu0 0.0
    %2917 = vmatpush1.msra.mxu0 %v2127
    %2918 = vmatprep.subr.mxu0 0.0
    %2919 = vmatpush1.msra.mxu0 %v2126
    %2920 = vmatprep.subr.mxu0 0.0
    %2921 = vmatpush1.msra.mxu0 %v2125
    %2922 = vmatprep.subr.mxu0 0.0
    %2923 = vmatpush2.msra.mxu0 %v2156
    %2924 = vmatprep.subr.mxu0 0.0
    %2925 = vmatpush2.msra.mxu0 %v2155
    %2926 = vmatprep.subr.mxu0 0.0
    %2927 = vmatpush2.msra.mxu0 %v2154
    %2928 = vmatprep.subr.mxu0 0.0
    %2929 = vmatpush2.msra.mxu0 %v2153
    %2930 = vmatprep.subr.mxu0 0.0
    %2931 = vmatpush2.msra.mxu0 %v2152
    %2932 = vmatprep.subr.mxu0 0.0
    %2933 = vmatpush2.msra.mxu0 %v2151
    %2934 = vmatprep.subr.mxu0 0.0
    %2935 = vmatpush2.msra.mxu0 %v2150
    %2936 = vmatprep.subr.mxu0 0.0
    %2937 = vmatpush2.msra.mxu0 %v2149
    %2938 = vmatprep.subr.mxu0 0.0
    %2939 = vmatpush2.msra.mxu0 %v2148
    %2940 = vmatprep.subr.mxu0 0.0
    %2941 = vmatpush2.msra.mxu0 %v2147
    %2942 = vmatprep.subr.mxu0 0.0
    %2943 = vmatpush2.msra.mxu0 %v2146
    %2944 = vmatprep.subr.mxu0 0.0
    %2945 = vmatpush2.msra.mxu0 %v2145
    %2946 = vmatprep.subr.mxu0 0.0
    %2947 = vmatpush2.msra.mxu0 %v2144
    %2948 = vmatprep.subr.mxu0 0.0
    %2949 = vmatpush2.msra.mxu0 %v2143
    %2950 = vmatprep.subr.mxu0 0.0
    %2951 = vmatpush2.msra.mxu0 %v2142
    %2952 = vmatprep.subr.mxu0 0.0
    %2953 = vmatpush2.msra.mxu0 %v2141
    %2954 = vmatprep.mubr.f32.mxu0 %v1414
    %2955 = vmatmul.mubr.f32.gmra.mxu0 %v1413
    %v2956 = vpop.f32.mrf.mxu0
    %v2957 = vadd.f32 %v2887, %v2956
    %v2958 = vpop.f32.mrf.mxu0
    %2959 = vdwg.mxu0
    %2960 = vmatprep.subr.mxu0 0.0
    %2961 = vmatpush1.msra.mxu0 %v2172
    %2962 = vmatprep.subr.mxu0 0.0
    %2963 = vmatpush1.msra.mxu0 %v2171
    %2964 = vmatprep.subr.mxu0 0.0
    %2965 = vmatpush1.msra.mxu0 %v2170
    %2966 = vmatprep.subr.mxu0 0.0
    %2967 = vmatpush1.msra.mxu0 %v2169
    %2968 = vmatprep.subr.mxu0 0.0
    %2969 = vmatpush1.msra.mxu0 %v2168
    %2970 = vmatprep.subr.mxu0 0.0
    %2971 = vmatpush1.msra.mxu0 %v2167
    %2972 = vmatprep.subr.mxu0 0.0
    %2973 = vmatpush1.msra.mxu0 %v2166
    %2974 = vmatprep.subr.mxu0 0.0
    %2975 = vmatpush1.msra.mxu0 %v2165
    %2976 = vmatprep.subr.mxu0 0.0
    %2977 = vmatpush1.msra.mxu0 %v2164
    %2978 = vmatprep.subr.mxu0 0.0
    %2979 = vmatpush1.msra.mxu0 %v2163
    %2980 = vmatprep.subr.mxu0 0.0
    %2981 = vmatpush1.msra.mxu0 %v2162
    %2982 = vmatprep.subr.mxu0 0.0
    %2983 = vmatpush1.msra.mxu0 %v2161
    %2984 = vmatprep.subr.mxu0 0.0
    %2985 = vmatpush1.msra.mxu0 %v2160
    %2986 = vmatprep.subr.mxu0 0.0
    %2987 = vmatpush1.msra.mxu0 %v2159
    %2988 = vmatprep.subr.mxu0 0.0
    %2989 = vmatpush1.msra.mxu0 %v2158
    %2990 = vmatprep.subr.mxu0 0.0
    %2991 = vmatpush1.msra.mxu0 %v2157
    %2992 = vmatprep.subr.mxu0 0.0
    %2993 = vmatpush2.msra.mxu0 %v2188
    %2994 = vmatprep.subr.mxu0 0.0
    %2995 = vmatpush2.msra.mxu0 %v2187
    %2996 = vmatprep.subr.mxu0 0.0
    %2997 = vmatpush2.msra.mxu0 %v2186
    %2998 = vmatprep.subr.mxu0 0.0
    %2999 = vmatpush2.msra.mxu0 %v2185
    %3000 = vmatprep.subr.mxu0 0.0
    %3001 = vmatpush2.msra.mxu0 %v2184
    %3002 = vmatprep.subr.mxu0 0.0
    %3003 = vmatpush2.msra.mxu0 %v2183
    %3004 = vmatprep.subr.mxu0 0.0
    %3005 = vmatpush2.msra.mxu0 %v2182
    %3006 = vmatprep.subr.mxu0 0.0
    %3007 = vmatpush2.msra.mxu0 %v2181
    %3008 = vmatprep.subr.mxu0 0.0
    %3009 = vmatpush2.msra.mxu0 %v2180
    %3010 = vmatprep.subr.mxu0 0.0
    %3011 = vmatpush2.msra.mxu0 %v2179
    %3012 = vmatprep.subr.mxu0 0.0
    %3013 = vmatpush2.msra.mxu0 %v2178
    %3014 = vmatprep.subr.mxu0 0.0
    %3015 = vmatpush2.msra.mxu0 %v2177
    %3016 = vmatprep.subr.mxu0 0.0
    %3017 = vmatpush2.msra.mxu0 %v2176
    %3018 = vmatprep.subr.mxu0 0.0
    %3019 = vmatpush2.msra.mxu0 %v2175
    %3020 = vmatprep.subr.mxu0 0.0
    %3021 = vmatpush2.msra.mxu0 %v2174
    %3022 = vmatprep.subr.mxu0 0.0
    %3023 = vmatpush2.msra.mxu0 %v2173
    %3024 = vmatprep.mubr.f32.mxu0 %v1416
    %3025 = vmatmul.mubr.f32.gmra.mxu0 %v1415
    %v3026 = vpop.f32.mrf.mxu0
    %v3027 = vadd.f32 %v2957, %v3026
    %v3028 = vpop.f32.mrf.mxu0
    %3029 = vdwg.mxu0
    %3030 = vmatprep.subr.mxu0 0.0
    %3031 = vmatpush1.msra.mxu0 %v2204
    %3032 = vmatprep.subr.mxu0 0.0
    %3033 = vmatpush1.msra.mxu0 %v2203
    %3034 = vmatprep.subr.mxu0 0.0
    %3035 = vmatpush1.msra.mxu0 %v2202
    %3036 = vmatprep.subr.mxu0 0.0
    %3037 = vmatpush1.msra.mxu0 %v2201
    %3038 = vmatprep.subr.mxu0 0.0
    %3039 = vmatpush1.msra.mxu0 %v2200
    %3040 = vmatprep.subr.mxu0 0.0
    %3041 = vmatpush1.msra.mxu0 %v2199
    %3042 = vmatprep.subr.mxu0 0.0
    %3043 = vmatpush1.msra.mxu0 %v2198
    %3044 = vmatprep.subr.mxu0 0.0
    %3045 = vmatpush1.msra.mxu0 %v2197
    %3046 = vmatprep.subr.mxu0 0.0
    %3047 = vmatpush1.msra.mxu0 %v2196
    %3048 = vmatprep.subr.mxu0 0.0
    %3049 = vmatpush1.msra.mxu0 %v2195
    %3050 = vmatprep.subr.mxu0 0.0
    %3051 = vmatpush1.msra.mxu0 %v2194
    %3052 = vmatprep.subr.mxu0 0.0
    %3053 = vmatpush1.msra.mxu0 %v2193
    %3054 = vmatprep.subr.mxu0 0.0
    %3055 = vmatpush1.msra.mxu0 %v2192
    %3056 = vmatprep.subr.mxu0 0.0
    %3057 = vmatpush1.msra.mxu0 %v2191
    %3058 = vmatprep.subr.mxu0 0.0
    %3059 = vmatpush1.msra.mxu0 %v2190
    %3060 = vmatprep.subr.mxu0 0.0
    %3061 = vmatpush1.msra.mxu0 %v2189
    %3062 = vmatprep.subr.mxu0 0.0
    %3063 = vmatpush2.msra.mxu0 %v2220
    %3064 = vmatprep.subr.mxu0 0.0
    %3065 = vmatpush2.msra.mxu0 %v2219
    %3066 = vmatprep.subr.mxu0 0.0
    %3067 = vmatpush2.msra.mxu0 %v2218
    %3068 = vmatprep.subr.mxu0 0.0
    %3069 = vmatpush2.msra.mxu0 %v2217
    %3070 = vmatprep.subr.mxu0 0.0
    %3071 = vmatpush2.msra.mxu0 %v2216
    %3072 = vmatprep.subr.mxu0 0.0
    %3073 = vmatpush2.msra.mxu0 %v2215
    %3074 = vmatprep.subr.mxu0 0.0
    %3075 = vmatpush2.msra.mxu0 %v2214
    %3076 = vmatprep.subr.mxu0 0.0
    %3077 = vmatpush2.msra.mxu0 %v2213
    %3078 = vmatprep.subr.mxu0 0.0
    %3079 = vmatpush2.msra.mxu0 %v2212
    %3080 = vmatprep.subr.mxu0 0.0
    %3081 = vmatpush2.msra.mxu0 %v2211
    %3082 = vmatprep.subr.mxu0 0.0
    %3083 = vmatpush2.msra.mxu0 %v2210
    %3084 = vmatprep.subr.mxu0 0.0
    %3085 = vmatpush2.msra.mxu0 %v2209
    %3086 = vmatprep.subr.mxu0 0.0
    %3087 = vmatpush2.msra.mxu0 %v2208
    %3088 = vmatprep.subr.mxu0 0.0
    %3089 = vmatpush2.msra.mxu0 %v2207
    %3090 = vmatprep.subr.mxu0 0.0
    %3091 = vmatpush2.msra.mxu0 %v2206
    %3092 = vmatprep.subr.mxu0 0.0
    %3093 = vmatpush2.msra.mxu0 %v2205
    %3094 = vmatprep.mubr.f32.mxu0 %v1418
    %3095 = vmatmul.mubr.f32.gmra.mxu0 %v1417
    %v3096 = vpop.f32.mrf.mxu0
    %v3097 = vadd.f32 %v3027, %v3096
    %v3098 = vpop.f32.mrf.mxu0
    %3099 = vdwg.mxu0
    %3100 = vmatprep.subr.mxu0 0.0
    %3101 = vmatpush1.msra.mxu0 %v2236
    %3102 = vmatprep.subr.mxu0 0.0
    %3103 = vmatpush1.msra.mxu0 %v2235
    %3104 = vmatprep.subr.mxu0 0.0
    %3105 = vmatpush1.msra.mxu0 %v2234
    %3106 = vmatprep.subr.mxu0 0.0
    %3107 = vmatpush1.msra.mxu0 %v2233
    %3108 = vmatprep.subr.mxu0 0.0
    %3109 = vmatpush1.msra.mxu0 %v2232
    %3110 = vmatprep.subr.mxu0 0.0
    %3111 = vmatpush1.msra.mxu0 %v2231
    %3112 = vmatprep.subr.mxu0 0.0
    %3113 = vmatpush1.msra.mxu0 %v2230
    %3114 = vmatprep.subr.mxu0 0.0
    %3115 = vmatpush1.msra.mxu0 %v2229
    %3116 = vmatprep.subr.mxu0 0.0
    %3117 = vmatpush1.msra.mxu0 %v2228
    %3118 = vmatprep.subr.mxu0 0.0
    %3119 = vmatpush1.msra.mxu0 %v2227
    %3120 = vmatprep.subr.mxu0 0.0
    %3121 = vmatpush1.msra.mxu0 %v2226
    %3122 = vmatprep.subr.mxu0 0.0
    %3123 = vmatpush1.msra.mxu0 %v2225
    %3124 = vmatprep.subr.mxu0 0.0
    %3125 = vmatpush1.msra.mxu0 %v2224
    %3126 = vmatprep.subr.mxu0 0.0
    %3127 = vmatpush1.msra.mxu0 %v2223
    %3128 = vmatprep.subr.mxu0 0.0
    %3129 = vmatpush1.msra.mxu0 %v2222
    %3130 = vmatprep.subr.mxu0 0.0
    %3131 = vmatpush1.msra.mxu0 %v2221
    %3132 = vmatprep.subr.mxu0 0.0
    %3133 = vmatpush2.msra.mxu0 %v2252
    %3134 = vmatprep.subr.mxu0 0.0
    %3135 = vmatpush2.msra.mxu0 %v2251
    %3136 = vmatprep.subr.mxu0 0.0
    %3137 = vmatpush2.msra.mxu0 %v2250
    %3138 = vmatprep.subr.mxu0 0.0
    %3139 = vmatpush2.msra.mxu0 %v2249
    %3140 = vmatprep.subr.mxu0 0.0
    %3141 = vmatpush2.msra.mxu0 %v2248
    %3142 = vmatprep.subr.mxu0 0.0
    %3143 = vmatpush2.msra.mxu0 %v2247
    %3144 = vmatprep.subr.mxu0 0.0
    %3145 = vmatpush2.msra.mxu0 %v2246
    %3146 = vmatprep.subr.mxu0 0.0
    %3147 = vmatpush2.msra.mxu0 %v2245
    %3148 = vmatprep.subr.mxu0 0.0
    %3149 = vmatpush2.msra.mxu0 %v2244
    %3150 = vmatprep.subr.mxu0 0.0
    %3151 = vmatpush2.msra.mxu0 %v2243
    %3152 = vmatprep.subr.mxu0 0.0
    %3153 = vmatpush2.msra.mxu0 %v2242
    %3154 = vmatprep.subr.mxu0 0.0
    %3155 = vmatpush2.msra.mxu0 %v2241
    %3156 = vmatprep.subr.mxu0 0.0
    %3157 = vmatpush2.msra.mxu0 %v2240
    %3158 = vmatprep.subr.mxu0 0.0
    %3159 = vmatpush2.msra.mxu0 %v2239
    %3160 = vmatprep.subr.mxu0 0.0
    %3161 = vmatpush2.msra.mxu0 %v2238
    %3162 = vmatprep.subr.mxu0 0.0
    %3163 = vmatpush2.msra.mxu0 %v2237
    %3164 = vmatprep.mubr.f32.mxu0 %v1420
    %3165 = vmatmul.mubr.f32.gmra.mxu0 %v1419
    %v3166 = vpop.f32.mrf.mxu0
    %v3167 = vadd.f32 %v3097, %v3166
    %v3168 = vpop.f32.mrf.mxu0
    %3169 = vdwg.mxu0
    %v3170 = vld [vmem:[#allocation10] sm:$0xf]
    %v3171 = vld [vmem:[#allocation10 + $0x4] sm:$0xf]
    %v3172 = vld [vmem:[#allocation10 + $0x8] sm:$0xf]
    %v3173 = vld [vmem:[#allocation10 + $0xc] sm:$0xf]
    %v3174 = vld [vmem:[#allocation10 + $0x10] sm:$0xf]
    %v3175 = vld [vmem:[#allocation10 + $0x14] sm:$0xf]
    %v3176 = vld [vmem:[#allocation10 + $0x18] sm:$0xf]
    %v3177 = vld [vmem:[#allocation10 + $0x1c] sm:$0xf]
    %v3178 = vld [vmem:[#allocation10 + $0x20] sm:$0xf]
    %v3179 = vld [vmem:[#allocation10 + $0x24] sm:$0xf]
    %v3180 = vld [vmem:[#allocation10 + $0x28] sm:$0xf]
    %v3181 = vld [vmem:[#allocation10 + $0x2c] sm:$0xf]
    %v3182 = vld [vmem:[#allocation10 + $0x30] sm:$0xf]
    %v3183 = vld [vmem:[#allocation10 + $0x34] sm:$0xf]
    %v3184 = vld [vmem:[#allocation10 + $0x38] sm:$0xf]
    %v3185 = vld [vmem:[#allocation10 + $0x3c] sm:$0xf]
    %v3186 = vunpack.c.l.bf16 %v3170
    %v3187 = vunpack.c.l.bf16 %v3171
    %v3188 = vunpack.c.l.bf16 %v3172
    %v3189 = vunpack.c.l.bf16 %v3173
    %v3190 = vunpack.c.l.bf16 %v3174
    %v3191 = vunpack.c.l.bf16 %v3175
    %v3192 = vunpack.c.l.bf16 %v3176
    %v3193 = vunpack.c.l.bf16 %v3177
    %v3194 = vunpack.c.l.bf16 %v3178
    %v3195 = vunpack.c.l.bf16 %v3179
    %v3196 = vunpack.c.l.bf16 %v3180
    %v3197 = vunpack.c.l.bf16 %v3181
    %v3198 = vunpack.c.l.bf16 %v3182
    %v3199 = vunpack.c.l.bf16 %v3183
    %v3200 = vunpack.c.l.bf16 %v3184
    %v3201 = vunpack.c.l.bf16 %v3185
    %v3202 = vld [vmem:[%s6] sm:$0x1]
    %v3204 = vlaneseq
    %v3205 = vshrl.u32 %v3204, 7
    %v3206 = vsub.s32 0, %v3205
    %v3207 = vrot.slane %v3202, %v3206
    %3209 = vmatprep.subr.mxu0 0.0
    %3210 = vmatpush1.msra.mxu0 %v3201
    %3211 = vmatprep.subr.mxu0 0.0
    %3212 = vmatpush1.msra.mxu0 %v3200
    %3213 = vmatprep.subr.mxu0 0.0
    %3214 = vmatpush1.msra.mxu0 %v3199
    %3215 = vmatprep.subr.mxu0 0.0
    %3216 = vmatpush1.msra.mxu0 %v3198
    %3217 = vmatprep.subr.mxu0 0.0
    %3218 = vmatpush1.msra.mxu0 %v3197
    %3219 = vmatprep.subr.mxu0 0.0
    %3220 = vmatpush1.msra.mxu0 %v3196
    %3221 = vmatprep.subr.mxu0 0.0
    %3222 = vmatpush1.msra.mxu0 %v3195
    %3223 = vmatprep.subr.mxu0 0.0
    %3224 = vmatpush1.msra.mxu0 %v3194
    %3225 = vmatprep.subr.mxu0 0.0
    %3226 = vmatpush1.msra.mxu0 %v3193
    %3227 = vmatprep.subr.mxu0 0.0
    %3228 = vmatpush1.msra.mxu0 %v3192
    %3229 = vmatprep.subr.mxu0 0.0
    %3230 = vmatpush1.msra.mxu0 %v3191
    %3231 = vmatprep.subr.mxu0 0.0
    %3232 = vmatpush1.msra.mxu0 %v3190
    %3233 = vmatprep.subr.mxu0 0.0
    %3234 = vmatpush1.msra.mxu0 %v3189
    %3235 = vmatprep.subr.mxu0 0.0
    %3236 = vmatpush1.msra.mxu0 %v3188
    %3237 = vmatprep.subr.mxu0 0.0
    %3238 = vmatpush1.msra.mxu0 %v3187
    %3239 = vmatprep.subr.mxu0 0.0
    %3240 = vmatpush1.msra.mxu0 %v3186
    %3241 = vmatprep.subr.mxu0 0.0
    %3242 = vmatpush2.msra.mxu0 0.0
    %3243 = vmatprep.subr.mxu0 0.0
    %3244 = vmatpush2.msra.mxu0 0.0
    %3245 = vmatprep.subr.mxu0 0.0
    %3246 = vmatpush2.msra.mxu0 0.0
    %3247 = vmatprep.subr.mxu0 0.0
    %3248 = vmatpush2.msra.mxu0 0.0
    %3249 = vmatprep.subr.mxu0 0.0
    %3250 = vmatpush2.msra.mxu0 0.0
    %3251 = vmatprep.subr.mxu0 0.0
    %3252 = vmatpush2.msra.mxu0 0.0
    %3253 = vmatprep.subr.mxu0 0.0
    %3254 = vmatpush2.msra.mxu0 0.0
    %3255 = vmatprep.subr.mxu0 0.0
    %3256 = vmatpush2.msra.mxu0 0.0
    %3257 = vmatprep.subr.mxu0 0.0
    %3258 = vmatpush2.msra.mxu0 0.0
    %3259 = vmatprep.subr.mxu0 0.0
    %3260 = vmatpush2.msra.mxu0 0.0
    %3261 = vmatprep.subr.mxu0 0.0
    %3262 = vmatpush2.msra.mxu0 0.0
    %3263 = vmatprep.subr.mxu0 0.0
    %3264 = vmatpush2.msra.mxu0 0.0
    %3265 = vmatprep.subr.mxu0 0.0
    %3266 = vmatpush2.msra.mxu0 0.0
    %3267 = vmatprep.subr.mxu0 0.0
    %3268 = vmatpush2.msra.mxu0 0.0
    %3269 = vmatprep.subr.mxu0 0.0
    %3270 = vmatpush2.msra.mxu0 0.0
    %3271 = vmatprep.subr.mxu0 0.0
    %3272 = vmatpush2.msra.mxu0 0.0
    %3273 = vmatprep.mubr.f32.mxu0 0.0
    %3274 = vmatmul.mubr.f32.gmra.mxu0 %v3167
    %v3275 = vpop.f32.mrf.mxu0
    %v3276 = vadd.f32 %v3207, %v3275
    %v3277 = vpop.f32.mrf.mxu0
    %3278 = vdwg.mxu0
    %3279 = vst [vmem:[#allocation11] sm:$0xff] %v3276
    // Predicated region
    $region50: #{tpu_custom_call.1} parent=1 // pred_check
      _
    $region51: #{tpu_custom_call.1} parent=1 // pred_check_branch
      %3281 = sbr.rel (0) target = $region53
    $region52: #{tpu_custom_call.1} parent=1 // pred_region
      %s3283 = ssub.s32 128, 128
      %3284 = vsyncadd [#allocation4], %s3283
      %s3286 = sshll.u32 [#allocation11], 4
      %s3287 = int_to_ptr.vmem [resolvable:$true] %s3286
      %3289 = dma.vmem_to_hbm [thread:$0]  %s3287, 128, %s7, [#allocation4]
    $region53: #{tpu_custom_call.1} parent=1 // pred_fallthru
      _
    // Predicated region
    $region54: #{tpu_custom_call.1} parent=1 // pred_check
      _
    $region55: #{tpu_custom_call.1} parent=1 // pred_check_branch
      %3291 = sbr.rel (0) target = $region57
    $region56: #{tpu_custom_call.1} parent=1 // pred_region
      %3292 = dma.done [#allocation4], 128
    $region57: #{tpu_custom_call.1} parent=1 // pred_fallthru
      _
    %3293 = vsyncpa [#allocation3], 1
    %3294 = vsyncpa [#allocation6], 1
    %3295 = vsyncpa [#allocation9], 1
    %3296 = vsyncpa [#allocation4], 1

</llo_original>
